<compile_context>
chip_gen: v6e
topology: v6e:2x2x1
jax: 0.10.0
libtpu: 0.0.40
codegen_flags: <defaults>
</compile_context>

<pallas_src>
import functools

import jax
import jax.numpy as jnp
import numpy as np
from jax import lax
from jax.experimental import pallas as pl
from jax.experimental.pallas import tpu as pltpu

EPS = 1e-5  # nn.InstanceNorm2d default eps


def _round_up(x, m):
    return (x + m - 1) // m * m


def _pick_ctile(c, target=256):
    """Largest multiple of 128 <= target dividing c (c itself if c % 128 != 0)."""
    if c % 128 != 0:
        return c
    t = max(128, (min(target, c) // 128) * 128)
    while c % t != 0:
        t -= 128
    return t


@functools.lru_cache(maxsize=None)
def _vmem_limit_bytes():
    cap = 64 * 1024 * 1024              # conservative fallback (v7x-sized VMEM)
    try:
        cap = int(pltpu.get_tpu_info().vmem_capacity_bytes)
    except Exception:
        pass
    return min(int(cap * 3 // 4), 100 * 1024 * 1024)


def _cparams(dims):
    return pltpu.CompilerParams(dimension_semantics=dims,
                                vmem_limit_bytes=_vmem_limit_bytes())


# ---------------------------------------------------------------------------
# In-kernel helpers
# ---------------------------------------------------------------------------
def _inorm(v, axis):
    """Per-channel InstanceNorm over the given (spatial) axis; biased var like PyTorch."""
    mean = jnp.mean(v, axis=axis, keepdims=True)
    c = v - mean
    var = jnp.mean(c * c, axis=axis, keepdims=True)
    return c * lax.rsqrt(var + EPS)


# ---------------------------------------------------------------------------
# Kernel 1: conv1 (1x1) + bn1 + ReLU   (matmul with IN epilogue, per-sample block)
# ---------------------------------------------------------------------------
def _conv1_in_relu_kernel(x_ref, w_ref, o_ref):
    # x_ref: (1, HW, Cin) bf16 ; w_ref: (Cin, tn) bf16 ; o_ref: (1, HW, tn) bf16
    acc = jnp.dot(x_ref[0], w_ref[...], preferred_element_type=jnp.float32)
    y = jnp.maximum(_inorm(acc, 0), 0.0)
    o_ref[0] = y.astype(o_ref.dtype)


def _conv1_bn_relu(xf, w1):
    N, HW, cin_p = xf.shape
    cmid_p = w1.shape[1]
    tn = _pick_ctile(cmid_p)
    return pl.pallas_call(
        _conv1_in_relu_kernel,
        out_shape=jax.ShapeDtypeStruct((N, HW, cmid_p), jnp.bfloat16),
        grid=(N, cmid_p // tn),
        in_specs=[pl.BlockSpec((1, HW, cin_p), lambda n, j: (n, 0, 0)),
                  pl.BlockSpec((cin_p, tn), lambda n, j: (0, j))],
        out_specs=pl.BlockSpec((1, HW, tn), lambda n, j: (n, 0, j)),
        compiler_params=_cparams(("parallel", "parallel")),
    )(xf, w1)


# ---------------------------------------------------------------------------
# Kernel 2: conv2 (3x3, pad=1, stride=1) + bn2 + ReLU
#   Flattened-strip 9-tap accumulation on a width-padded sample (Wp % 8 == 0):
#   only the kw = 1, 2 strip loads are sublane-misaligned; kh offsets are aligned views.
# ---------------------------------------------------------------------------
def _conv3x3_in_relu_kernel(x_ref, w_ref, o_ref, *, H, W, Wp):
    # x_ref: (1, (H+3)*Wp, Cin) bf16  (spatially zero-padded sample, flattened)
    # w_ref: (3, 3, Cin, tn) bf16 ; o_ref: (1, H*W, tn) bf16
    L = H * Wp                 # accumulator rows (includes Wp-W junk columns per row)
    Lb = (H + 2) * Wp          # strip length covering all 3 kh offsets
    acc = None
    for kw in range(3):
        base = x_ref[0, kw:kw + Lb, :]             # kw=0 aligned; kw=1,2 misaligned
        for kh in range(3):
            part = base[kh * Wp:kh * Wp + L, :]    # aligned view (Wp % 8 == 0)
            d = jnp.dot(part, w_ref[kh, kw], preferred_element_type=jnp.float32)
            acc = d if acc is None else acc + d    # tap 0 assigns: no zero-init pass
    c = acc.shape[-1]
    # drop the width-padding junk columns, then fused IN + ReLU epilogue
    flat = acc.reshape(H, Wp, c)[:, :W, :].reshape(H * W, c)
    y = jnp.maximum(_inorm(flat, 0), 0.0)
    o_ref[0] = y.astype(o_ref.dtype)


def _conv3x3_bn_relu(h1, w2, H, W):
    N, _, cmid_p = h1.shape
    Wp = _round_up(W + 2, 8)   # width padded so in-kernel kh shifts stay sublane-aligned
    Hp = H + 3                 # 1 top halo + 1 bottom halo + 1 safety row for last strip
    # TODO(synk): fold this spatial pad into the conv1 epilogue write to save one bf16
    # HBM pass over h1 (write the padded layout directly from kernel 1).
    h1p = jnp.pad(h1.reshape(N, H, W, cmid_p),
                  ((0, 0), (1, 2), (1, Wp - W - 1), (0, 0)))
    h1p = h1p.reshape(N, Hp * Wp, cmid_p)
    tn = _pick_ctile(cmid_p)
    # TODO(synk): on v6e/v7x pack taps along K (K = 3*Cin per kw column) to better fill
    # the 256-deep MXU; on v7x band the grid over output rows for very large H*W.
    return pl.pallas_call(
        functools.partial(_conv3x3_in_relu_kernel, H=H, W=W, Wp=Wp),
        out_shape=jax.ShapeDtypeStruct((N, H * W, cmid_p), jnp.bfloat16),
        grid=(N, cmid_p // tn),
        in_specs=[pl.BlockSpec((1, Hp * Wp, cmid_p), lambda n, j: (n, 0, 0)),
                  pl.BlockSpec((3, 3, cmid_p, tn), lambda n, j: (0, 0, 0, j))],
        out_specs=pl.BlockSpec((1, H * W, tn), lambda n, j: (n, 0, j)),
        compiler_params=_cparams(("parallel", "parallel")),
    )(h1p, w2)


# ---------------------------------------------------------------------------
# Kernel 3: conv3 (1x1) + downsample conv (1x1) + bn3 + downsample-IN + add + ReLU
#   One kernel: both matmuls and both instance norms, residual add and final ReLU,
#   so neither f32 branch ever touches HBM.
# ---------------------------------------------------------------------------
def _final_fused_kernel(h_ref, x_ref, w3_ref, wd_ref, o_ref):
    a = jnp.dot(h_ref[0], w3_ref[...], preferred_element_type=jnp.float32)   # conv3
    b = jnp.dot(x_ref[0], wd_ref[...], preferred_element_type=jnp.float32)   # downsample
    y = jnp.maximum(_inorm(a, 0) + _inorm(b, 0), 0.0)
    o_ref[0] = y.astype(o_ref.dtype)


def _final_fused(h2, xf, w3, wd):
    N, HW, cmid_p = h2.shape
    cin_p = xf.shape[-1]
    cout_p = w3.shape[1]
    tn = _pick_ctile(cout_p)
    return pl.pallas_call(
        _final_fused_kernel,
        out_shape=jax.ShapeDtypeStruct((N, HW, cout_p), jnp.float32),
        grid=(N, cout_p // tn),
        in_specs=[pl.BlockSpec((1, HW, cmid_p), lambda n, j: (n, 0, 0)),
                  pl.BlockSpec((1, HW, cin_p), lambda n, j: (n, 0, 0)),
                  pl.BlockSpec((cmid_p, tn), lambda n, j: (0, j)),
                  pl.BlockSpec((cin_p, tn), lambda n, j: (0, j))],
        out_specs=pl.BlockSpec((1, HW, tn), lambda n, j: (n, 0, j)),
        compiler_params=_cparams(("parallel", "parallel")),
    )(h2, xf, w3, wd)


# ---------------------------------------------------------------------------
# Parameters
# ---------------------------------------------------------------------------
def init_params(key, inplanes, planes, expansion=4):
    """PyTorch-layout (OIHW) float32 weights for the four convs (all bias=False)."""
    k1, k2, k3, k4 = jax.random.split(key, 4)
    s = 0.1
    return {
        "w1": s * jax.random.normal(k1, (planes, inplanes, 1, 1), jnp.float32),
        "w2": s * jax.random.normal(k2, (planes, planes, 3, 3), jnp.float32),
        "w3": s * jax.random.normal(k3, (planes * expansion, planes, 1, 1), jnp.float32),
        "wd": s * jax.random.normal(k4, (planes * expansion, inplanes, 1, 1), jnp.float32),
    }


def prepare_params(params, inplanes, planes, expansion=4):
    """OIHW f32 -> kernel layouts, channel dims zero-padded to multiples of 128, bf16."""
    cin_p = _round_up(inplanes, 128)
    cmid_p = _round_up(planes, 128)
    cout_p = _round_up(planes * expansion, 128)

    def pad2(w, r, c):
        return jnp.pad(w, ((0, r - w.shape[0]), (0, c - w.shape[1])))

    w1 = params["w1"][:, :, 0, 0].T                       # (inplanes, planes)
    w3 = params["w3"][:, :, 0, 0].T                       # (planes, planes*exp)
    wd = params["wd"][:, :, 0, 0].T                       # (inplanes, planes*exp)
    w2 = jnp.transpose(params["w2"], (2, 3, 1, 0))        # (kh, kw, in, out)
    w2 = jnp.pad(w2, ((0, 0), (0, 0), (0, cmid_p - planes), (0, cmid_p - planes)))
    return {
        "w1": pad2(w1, cin_p, cmid_p).astype(jnp.bfloat16),
        "w2": w2.astype(jnp.bfloat16),
        "w3": pad2(w3, cmid_p, cout_p).astype(jnp.bfloat16),
        "wd": pad2(wd, cin_p, cout_p).astype(jnp.bfloat16),
    }


# ---------------------------------------------------------------------------
# BottleneckV0 forward
# ---------------------------------------------------------------------------
def bottleneck_v0_forward(x_nchw, kparams, out_channels, stride=1):
    # TODO(synk): stride != 1 (module default is 1) needs a subsampled-stats epilogue;
    # only the default stride=1 path is implemented in the fused kernels.
    assert stride == 1, "fused Pallas path implements the module-default stride=1"
    N, _, H, W = x_nchw.shape
    x = jnp.transpose(x_nchw, (0, 2, 3, 1))                      # NCHW -> NHWC
    cin_p = kparams["w1"].shape[0]
    if x.shape[-1] < cin_p:                                      # pad channels once
        x = jnp.pad(x, ((0, 0), (0, 0), (0, 0), (0, cin_p - x.shape[-1])))
    xf = x.astype(jnp.bfloat16).reshape(N, H * W, cin_p)

    h1 = _conv1_bn_relu(xf, kparams["w1"])                       # conv1 + bn1 + relu
    h2 = _conv3x3_bn_relu(h1, kparams["w2"], H, W)               # conv2 + bn2 + relu
    y = _final_fused(h2, xf, kparams["w3"], kparams["wd"])       # conv3+ds+bn3+IN+add+relu
    y = y[..., :out_channels].reshape(N, H, W, out_channels)     # drop channel padding
    return jnp.transpose(y, (0, 3, 1, 2))                        # NHWC -> NCHW


# ---------------------------------------------------------------------------
# Pure-JAX reference (same mixed-precision policy: bf16 conv operands, f32 accum/norm)
# ---------------------------------------------------------------------------
def reference_forward(x_nchw, params, stride=1):
    def conv(x, w, stride=1, padding="VALID"):
        return lax.conv_general_dilated(
            x.astype(jnp.bfloat16), w.astype(jnp.bfloat16),
            (stride, stride), padding,
            dimension_numbers=("NCHW", "OIHW", "NCHW"),
            preferred_element_type=jnp.float32)

    def inorm(x):
        mean = jnp.mean(x, axis=(2, 3), keepdims=True)
        xc = x - mean
        var = jnp.mean(xc * xc, axis=(2, 3), keepdims=True)
        return xc * lax.rsqrt(var + EPS)

    relu = lambda v: jnp.maximum(v, 0.0)
    out = relu(inorm(conv(x_nchw, params["w1"])))
    out = relu(inorm(conv(out, params["w2"], stride=stride,
                          padding=((1, 1), (1, 1)))))
    out = inorm(conv(out, params["w3"]))
    res = inorm(conv(x_nchw, params["wd"], stride=stride))
    return relu(out + res)


if __name__ == "__main__":
    key = jax.random.PRNGKey(0)
    kx, kp = jax.random.split(key)

    N, inplanes, H, W = 2, 4, 16, 16
    planes, stride, expansion = 4, 1, 4

    x = jax.random.normal(kx, (N, inplanes, H, W), jnp.float32)
    params = init_params(kp, inplanes, planes, expansion)
    kparams = prepare_params(params, inplanes, planes, expansion)

    fwd = jax.jit(functools.partial(bottleneck_v0_forward,
                                    out_channels=planes * expansion,
                                    stride=stride))
    out = jax.block_until_ready(fwd(x, kparams))

    ref = jax.block_until_ready(reference_forward(x, params, stride=stride))
    np.testing.assert_allclose(np.asarray(out), np.asarray(ref),
                               rtol=1e-2, atol=1e-2)
    print("KERNEL_OK")
</pallas_src>

<mosaic_0001>
module attributes {stable_mosaic.version = 11 : i64} {
  func.func @_conv1_in_relu_kernel(%arg0: i32, %arg1: i32, %arg2: memref<1x256x128xbf16, #tpu.memory_space<vmem>>, %arg3: memref<128x128xbf16, #tpu.memory_space<vmem>>, %arg4: memref<1x256x128xbf16, #tpu.memory_space<vmem>>) attributes {dimension_semantics = [#tpu.dimension_semantics<parallel>, #tpu.dimension_semantics<parallel>], iteration_bounds = array<i64: 2, 1>, scalar_prefetch = 0 : i64, scratch_operands = 0 : i64, tpu.core_type = #tpu.core_type<tc>, window_params = [{transform_indices = @transform_0, window_bounds = array<i64: 1, 256, 128>}, {transform_indices = @transform_1, window_bounds = array<i64: 128, 128>}, {transform_indices = @transform_2, window_bounds = array<i64: 1, 256, 128>}]} {
    %c0 = arith.constant 0 : index
    %c0_0 = arith.constant 0 : index
    %c0_1 = arith.constant 0 : index
    %0 = vector.load %arg2[%c0, %c0_0, %c0_1] : memref<1x256x128xbf16, #tpu.memory_space<vmem>>, vector<1x256x128xbf16>
    %1 = vector.shape_cast %0 : vector<1x256x128xbf16> to vector<256x128xbf16>
    %c0_2 = arith.constant 0 : index
    %c0_3 = arith.constant 0 : index
    %2 = vector.load %arg3[%c0_2, %c0_3] : memref<128x128xbf16, #tpu.memory_space<vmem>>, vector<128x128xbf16>
    %cst = arith.constant dense<0.000000e+00> : vector<256x128xf32>
    %3 = tpu.matmul %1, %2, %cst {dimension_numbers = #tpu.dot_dimension_numbers<[1], [0], [0], [1], [0, 0, 1, 1], [], []>} : vector<256x128xbf16>, vector<128x128xbf16>, vector<256x128xf32> -> vector<256x128xf32>
    %cst_4 = arith.constant dense<0.000000e+00> : vector<128xf32>
    %4 = vector.multi_reduction <add>, %3, %cst_4 [0] : vector<256x128xf32> to vector<128xf32>
    %5 = vector.shape_cast %4 : vector<128xf32> to vector<1x128xf32>
    %cst_5 = arith.constant 2.560000e+02 : f32
    %6 = vector.broadcast %cst_5 : f32 to vector<1x128xf32>
    %7 = arith.divf %5, %6 : vector<1x128xf32>
    %8 = vector.broadcast %7 : vector<1x128xf32> to vector<256x128xf32>
    %9 = arith.subf %3, %8 : vector<256x128xf32>
    %10 = arith.mulf %9, %9 : vector<256x128xf32>
    %cst_6 = arith.constant dense<0.000000e+00> : vector<128xf32>
    %11 = vector.multi_reduction <add>, %10, %cst_6 [0] : vector<256x128xf32> to vector<128xf32>
    %12 = vector.shape_cast %11 : vector<128xf32> to vector<1x128xf32>
    %cst_7 = arith.constant 2.560000e+02 : f32
    %13 = vector.broadcast %cst_7 : f32 to vector<1x128xf32>
    %14 = arith.divf %12, %13 : vector<1x128xf32>
    %cst_8 = arith.constant 9.99999974E-6 : f32
    %15 = vector.broadcast %cst_8 : f32 to vector<1x128xf32>
    %16 = arith.addf %14, %15 : vector<1x128xf32>
    %17 = math.rsqrt %16 : vector<1x128xf32>
    %18 = vector.broadcast %17 : vector<1x128xf32> to vector<256x128xf32>
    %19 = arith.mulf %9, %18 : vector<256x128xf32>
    %cst_9 = arith.constant 0.000000e+00 : f32
    %20 = vector.broadcast %cst_9 : f32 to vector<256x128xf32>
    %21 = arith.maximumf %19, %20 : vector<256x128xf32>
    %22 = arith.truncf %21 : vector<256x128xf32> to vector<256x128xbf16>
    %c0_10 = arith.constant 0 : index
    %c0_11 = arith.constant 0 : index
    %c0_12 = arith.constant 0 : index
    %23 = vector.load %arg4[%c0_10, %c0_11, %c0_12] : memref<1x256x128xbf16, #tpu.memory_space<vmem>>, vector<1x256x128xbf16>
    %24 = vector.shape_cast %23 : vector<1x256x128xbf16> to vector<256x128xbf16>
    %25 = vector.shape_cast %22 : vector<256x128xbf16> to vector<1x256x128xbf16>
    tpu.vector_store %arg4[%c0_10, %c0_11, %c0_12], %25 {strides = array<i32>} : memref<1x256x128xbf16, #tpu.memory_space<vmem>>, vector<1x256x128xbf16>,
    return
  }
  func.func @transform_0(%arg0: i32, %arg1: i32) -> (i32, i32, i32) {
    %c0_i32 = arith.constant 0 : i32
    %c0_i32_0 = arith.constant 0 : i32
    %c0_i32_1 = arith.constant 0 : i32
    return %arg0, %c0_i32, %c0_i32_0 : i32, i32, i32
  }
  func.func @transform_1(%arg0: i32, %arg1: i32) -> (i32, i32) {
    %c0_i32 = arith.constant 0 : i32
    %c0_i32_0 = arith.constant 0 : i32
    return %c0_i32, %arg1 : i32, i32
  }
  func.func @transform_2(%arg0: i32, %arg1: i32) -> (i32, i32, i32) {
    %c0_i32 = arith.constant 0 : i32
    %c0_i32_0 = arith.constant 0 : i32
    return %arg0, %c0_i32, %arg1 : i32, i32, i32
  }
}

module attributes {stable_mosaic.version = 11 : i64} {
  func.func @_conv3x3_in_relu_kernel(%arg0: i32, %arg1: i32, %arg2: memref<1x456x128xbf16, #tpu.memory_space<vmem>>, %arg3: memref<3x3x128x128xbf16, #tpu.memory_space<vmem>>, %arg4: memref<1x256x128xbf16, #tpu.memory_space<vmem>>) attributes {dimension_semantics = [#tpu.dimension_semantics<parallel>, #tpu.dimension_semantics<parallel>], iteration_bounds = array<i64: 2, 1>, scalar_prefetch = 0 : i64, scratch_operands = 0 : i64, tpu.core_type = #tpu.core_type<tc>, window_params = [{transform_indices = @transform_0, window_bounds = array<i64: 1, 456, 128>}, {transform_indices = @transform_1, window_bounds = array<i64: 3, 3, 128, 128>}, {transform_indices = @transform_2, window_bounds = array<i64: 1, 256, 128>}]} {
    %c0 = arith.constant 0 : index
    %c0_0 = arith.constant 0 : index
    %c0_1 = arith.constant 0 : index
    %0 = vector.load %arg2[%c0, %c0_0, %c0_1] : memref<1x456x128xbf16, #tpu.memory_space<vmem>>, vector<1x432x128xbf16>
    %1 = vector.shape_cast %0 : vector<1x432x128xbf16> to vector<432x128xbf16>
    %2 = vector.extract_strided_slice %1 {offsets = [0, 0], sizes = [384, 128], strides = [1, 1]} : vector<432x128xbf16> to vector<384x128xbf16>
    %c0_2 = arith.constant 0 : index
    %c0_3 = arith.constant 0 : index
    %c0_4 = arith.constant 0 : index
    %c0_5 = arith.constant 0 : index
    %3 = vector.load %arg3[%c0_2, %c0_3, %c0_4, %c0_5] : memref<3x3x128x128xbf16, #tpu.memory_space<vmem>>, vector<1x1x128x128xbf16>
    %4 = vector.shape_cast %3 : vector<1x1x128x128xbf16> to vector<128x128xbf16>
    %cst = arith.constant dense<0.000000e+00> : vector<384x128xf32>
    %5 = tpu.matmul %2, %4, %cst {dimension_numbers = #tpu.dot_dimension_numbers<[1], [0], [0], [1], [0, 0, 1, 1], [], []>} : vector<384x128xbf16>, vector<128x128xbf16>, vector<384x128xf32> -> vector<384x128xf32>
    %6 = vector.extract_strided_slice %1 {offsets = [24, 0], sizes = [384, 128], strides = [1, 1]} : vector<432x128xbf16> to vector<384x128xbf16>
    %c1 = arith.constant 1 : index
    %c0_6 = arith.constant 0 : index
    %c0_7 = arith.constant 0 : index
    %c0_8 = arith.constant 0 : index
    %7 = vector.load %arg3[%c1, %c0_6, %c0_7, %c0_8] : memref<3x3x128x128xbf16, #tpu.memory_space<vmem>>, vector<1x1x128x128xbf16>
    %8 = vector.shape_cast %7 : vector<1x1x128x128xbf16> to vector<128x128xbf16>
    %cst_9 = arith.constant dense<0.000000e+00> : vector<384x128xf32>
    %9 = tpu.matmul %6, %8, %cst_9 {dimension_numbers = #tpu.dot_dimension_numbers<[1], [0], [0], [1], [0, 0, 1, 1], [], []>} : vector<384x128xbf16>, vector<128x128xbf16>, vector<384x128xf32> -> vector<384x128xf32>
    %10 = arith.addf %5, %9 : vector<384x128xf32>
    %11 = vector.extract_strided_slice %1 {offsets = [48, 0], sizes = [384, 128], strides = [1, 1]} : vector<432x128xbf16> to vector<384x128xbf16>
    %c2 = arith.constant 2 : index
    %c0_10 = arith.constant 0 : index
    %c0_11 = arith.constant 0 : index
    %c0_12 = arith.constant 0 : index
    %12 = vector.load %arg3[%c2, %c0_10, %c0_11, %c0_12] : memref<3x3x128x128xbf16, #tpu.memory_space<vmem>>, vector<1x1x128x128xbf16>
    %13 = vector.shape_cast %12 : vector<1x1x128x128xbf16> to vector<128x128xbf16>
    %cst_13 = arith.constant dense<0.000000e+00> : vector<384x128xf32>
    %14 = tpu.matmul %11, %13, %cst_13 {dimension_numbers = #tpu.dot_dimension_numbers<[1], [0], [0], [1], [0, 0, 1, 1], [], []>} : vector<384x128xbf16>, vector<128x128xbf16>, vector<384x128xf32> -> vector<384x128xf32>
    %15 = arith.addf %10, %14 : vector<384x128xf32>
    %c0_14 = arith.constant 0 : index
    %c1_15 = arith.constant 1 : index
    %c0_16 = arith.constant 0 : index
    %16 = vector.load %arg2[%c0_14, %c1_15, %c0_16] : memref<1x456x128xbf16, #tpu.memory_space<vmem>>, vector<1x432x128xbf16>
    %17 = vector.shape_cast %16 : vector<1x432x128xbf16> to vector<432x128xbf16>
    %18 = vector.extract_strided_slice %17 {offsets = [0, 0], sizes = [384, 128], strides = [1, 1]} : vector<432x128xbf16> to vector<384x128xbf16>
    %c0_17 = arith.constant 0 : index
    %c1_18 = arith.constant 1 : index
    %c0_19 = arith.constant 0 : index
    %c0_20 = arith.constant 0 : index
    %19 = vector.load %arg3[%c0_17, %c1_18, %c0_19, %c0_20] : memref<3x3x128x128xbf16, #tpu.memory_space<vmem>>, vector<1x1x128x128xbf16>
    %20 = vector.shape_cast %19 : vector<1x1x128x128xbf16> to vector<128x128xbf16>
    %cst_21 = arith.constant dense<0.000000e+00> : vector<384x128xf32>
    %21 = tpu.matmul %18, %20, %cst_21 {dimension_numbers = #tpu.dot_dimension_numbers<[1], [0], [0], [1], [0, 0, 1, 1], [], []>} : vector<384x128xbf16>, vector<128x128xbf16>, vector<384x128xf32> -> vector<384x128xf32>
    %22 = arith.addf %15, %21 : vector<384x128xf32>
    %23 = vector.extract_strided_slice %17 {offsets = [24, 0], sizes = [384, 128], strides = [1, 1]} : vector<432x128xbf16> to vector<384x128xbf16>
    %c1_22 = arith.constant 1 : index
    %c1_23 = arith.constant 1 : index
    %c0_24 = arith.constant 0 : index
    %c0_25 = arith.constant 0 : index
    %24 = vector.load %arg3[%c1_22, %c1_23, %c0_24, %c0_25] : memref<3x3x128x128xbf16, #tpu.memory_space<vmem>>, vector<1x1x128x128xbf16>
    %25 = vector.shape_cast %24 : vector<1x1x128x128xbf16> to vector<128x128xbf16>
    %cst_26 = arith.constant dense<0.000000e+00> : vector<384x128xf32>
    %26 = tpu.matmul %23, %25, %cst_26 {dimension_numbers = #tpu.dot_dimension_numbers<[1], [0], [0], [1], [0, 0, 1, 1], [], []>} : vector<384x128xbf16>, vector<128x128xbf16>, vector<384x128xf32> -> vector<384x128xf32>
    %27 = arith.addf %22, %26 : vector<384x128xf32>
    %28 = vector.extract_strided_slice %17 {offsets = [48, 0], sizes = [384, 128], strides = [1, 1]} : vector<432x128xbf16> to vector<384x128xbf16>
    %c2_27 = arith.constant 2 : index
    %c1_28 = arith.constant 1 : index
    %c0_29 = arith.constant 0 : index
    %c0_30 = arith.constant 0 : index
    %29 = vector.load %arg3[%c2_27, %c1_28, %c0_29, %c0_30] : memref<3x3x128x128xbf16, #tpu.memory_space<vmem>>, vector<1x1x128x128xbf16>
    %30 = vector.shape_cast %29 : vector<1x1x128x128xbf16> to vector<128x128xbf16>
    %cst_31 = arith.constant dense<0.000000e+00> : vector<384x128xf32>
    %31 = tpu.matmul %28, %30, %cst_31 {dimension_numbers = #tpu.dot_dimension_numbers<[1], [0], [0], [1], [0, 0, 1, 1], [], []>} : vector<384x128xbf16>, vector<128x128xbf16>, vector<384x128xf32> -> vector<384x128xf32>
    %32 = arith.addf %27, %31 : vector<384x128xf32>
    %c0_32 = arith.constant 0 : index
    %c2_33 = arith.constant 2 : index
    %c0_34 = arith.constant 0 : index
    %33 = vector.load %arg2[%c0_32, %c2_33, %c0_34] : memref<1x456x128xbf16, #tpu.memory_space<vmem>>, vector<1x432x128xbf16>
    %34 = vector.shape_cast %33 : vector<1x432x128xbf16> to vector<432x128xbf16>
    %35 = vector.extract_strided_slice %34 {offsets = [0, 0], sizes = [384, 128], strides = [1, 1]} : vector<432x128xbf16> to vector<384x128xbf16>
    %c0_35 = arith.constant 0 : index
    %c2_36 = arith.constant 2 : index
    %c0_37 = arith.constant 0 : index
    %c0_38 = arith.constant 0 : index
    %36 = vector.load %arg3[%c0_35, %c2_36, %c0_37, %c0_38] : memref<3x3x128x128xbf16, #tpu.memory_space<vmem>>, vector<1x1x128x128xbf16>
    %37 = vector.shape_cast %36 : vector<1x1x128x128xbf16> to vector<128x128xbf16>
    %cst_39 = arith.constant dense<0.000000e+00> : vector<384x128xf32>
    %38 = tpu.matmul %35, %37, %cst_39 {dimension_numbers = #tpu.dot_dimension_numbers<[1], [0], [0], [1], [0, 0, 1, 1], [], []>} : vector<384x128xbf16>, vector<128x128xbf16>, vector<384x128xf32> -> vector<384x128xf32>
    %39 = arith.addf %32, %38 : vector<384x128xf32>
    %40 = vector.extract_strided_slice %34 {offsets = [24, 0], sizes = [384, 128], strides = [1, 1]} : vector<432x128xbf16> to vector<384x128xbf16>
    %c1_40 = arith.constant 1 : index
    %c2_41 = arith.constant 2 : index
    %c0_42 = arith.constant 0 : index
    %c0_43 = arith.constant 0 : index
    %41 = vector.load %arg3[%c1_40, %c2_41, %c0_42, %c0_43] : memref<3x3x128x128xbf16, #tpu.memory_space<vmem>>, vector<1x1x128x128xbf16>
    %42 = vector.shape_cast %41 : vector<1x1x128x128xbf16> to vector<128x128xbf16>
    %cst_44 = arith.constant dense<0.000000e+00> : vector<384x128xf32>
    %43 = tpu.matmul %40, %42, %cst_44 {dimension_numbers = #tpu.dot_dimension_numbers<[1], [0], [0], [1], [0, 0, 1, 1], [], []>} : vector<384x128xbf16>, vector<128x128xbf16>, vector<384x128xf32> -> vector<384x128xf32>
    %44 = arith.addf %39, %43 : vector<384x128xf32>
    %45 = vector.extract_strided_slice %34 {offsets = [48, 0], sizes = [384, 128], strides = [1, 1]} : vector<432x128xbf16> to vector<384x128xbf16>
    %c2_45 = arith.constant 2 : index
    %c2_46 = arith.constant 2 : index
    %c0_47 = arith.constant 0 : index
    %c0_48 = arith.constant 0 : index
    %46 = vector.load %arg3[%c2_45, %c2_46, %c0_47, %c0_48] : memref<3x3x128x128xbf16, #tpu.memory_space<vmem>>, vector<1x1x128x128xbf16>
    %47 = vector.shape_cast %46 : vector<1x1x128x128xbf16> to vector<128x128xbf16>
    %cst_49 = arith.constant dense<0.000000e+00> : vector<384x128xf32>
    %48 = tpu.matmul %45, %47, %cst_49 {dimension_numbers = #tpu.dot_dimension_numbers<[1], [0], [0], [1], [0, 0, 1, 1], [], []>} : vector<384x128xbf16>, vector<128x128xbf16>, vector<384x128xf32> -> vector<384x128xf32>
    %49 = arith.addf %44, %48 : vector<384x128xf32>
    %50 = vector.shape_cast %49 : vector<384x128xf32> to vector<16x24x128xf32>
    %51 = vector.extract_strided_slice %50 {offsets = [0, 0, 0], sizes = [16, 16, 128], strides = [1, 1, 1]} : vector<16x24x128xf32> to vector<16x16x128xf32>
    %52 = vector.shape_cast %51 : vector<16x16x128xf32> to vector<256x128xf32>
    %cst_50 = arith.constant dense<0.000000e+00> : vector<128xf32>
    %53 = vector.multi_reduction <add>, %52, %cst_50 [0] : vector<256x128xf32> to vector<128xf32>
    %54 = vector.shape_cast %53 : vector<128xf32> to vector<1x128xf32>
    %cst_51 = arith.constant 2.560000e+02 : f32
    %55 = vector.broadcast %cst_51 : f32 to vector<1x128xf32>
    %56 = arith.divf %54, %55 : vector<1x128xf32>
    %57 = vector.broadcast %56 : vector<1x128xf32> to vector<256x128xf32>
    %58 = arith.subf %52, %57 : vector<256x128xf32>
    %59 = arith.mulf %58, %58 : vector<256x128xf32>
    %cst_52 = arith.constant dense<0.000000e+00> : vector<128xf32>
    %60 = vector.multi_reduction <add>, %59, %cst_52 [0] : vector<256x128xf32> to vector<128xf32>
    %61 = vector.shape_cast %60 : vector<128xf32> to vector<1x128xf32>
    %cst_53 = arith.constant 2.560000e+02 : f32
    %62 = vector.broadcast %cst_53 : f32 to vector<1x128xf32>
    %63 = arith.divf %61, %62 : vector<1x128xf32>
    %cst_54 = arith.constant 9.99999974E-6 : f32
    %64 = vector.broadcast %cst_54 : f32 to vector<1x128xf32>
    %65 = arith.addf %63, %64 : vector<1x128xf32>
    %66 = math.rsqrt %65 : vector<1x128xf32>
    %67 = vector.broadcast %66 : vector<1x128xf32> to vector<256x128xf32>
    %68 = arith.mulf %58, %67 : vector<256x128xf32>
    %cst_55 = arith.constant 0.000000e+00 : f32
    %69 = vector.broadcast %cst_55 : f32 to vector<256x128xf32>
    %70 = arith.maximumf %68, %69 : vector<256x128xf32>
    %71 = arith.truncf %70 : vector<256x128xf32> to vector<256x128xbf16>
    %c0_56 = arith.constant 0 : index
    %c0_57 = arith.constant 0 : index
    %c0_58 = arith.constant 0 : index
    %72 = vector.load %arg4[%c0_56, %c0_57, %c0_58] : memref<1x256x128xbf16, #tpu.memory_space<vmem>>, vector<1x256x128xbf16>
    %73 = vector.shape_cast %72 : vector<1x256x128xbf16> to vector<256x128xbf16>
    %74 = vector.shape_cast %71 : vector<256x128xbf16> to vector<1x256x128xbf16>
    tpu.vector_store %arg4[%c0_56, %c0_57, %c0_58], %74 {strides = array<i32>} : memref<1x256x128xbf16, #tpu.memory_space<vmem>>, vector<1x256x128xbf16>,
    return
  }
  func.func @transform_0(%arg0: i32, %arg1: i32) -> (i32, i32, i32) {
    %c0_i32 = arith.constant 0 : i32
    %c0_i32_0 = arith.constant 0 : i32
    %c0_i32_1 = arith.constant 0 : i32
    return %arg0, %c0_i32, %c0_i32_0 : i32, i32, i32
  }
  func.func @transform_1(%arg0: i32, %arg1: i32) -> (i32, i32, i32, i32) {
    %c0_i32 = arith.constant 0 : i32
    %c0_i32_0 = arith.constant 0 : i32
    %c0_i32_1 = arith.constant 0 : i32
    %c0_i32_2 = arith.constant 0 : i32
    return %c0_i32, %c0_i32_0, %c0_i32_1, %arg1 : i32, i32, i32, i32
  }
  func.func @transform_2(%arg0: i32, %arg1: i32) -> (i32, i32, i32) {
    %c0_i32 = arith.constant 0 : i32
    %c0_i32_0 = arith.constant 0 : i32
    return %arg0, %c0_i32, %arg1 : i32, i32, i32
  }
}

module attributes {stable_mosaic.version = 11 : i64} {
  func.func @_final_fused_kernel(%arg0: i32, %arg1: i32, %arg2: memref<1x256x128xbf16, #tpu.memory_space<vmem>>, %arg3: memref<1x256x128xbf16, #tpu.memory_space<vmem>>, %arg4: memref<128x128xbf16, #tpu.memory_space<vmem>>, %arg5: memref<128x128xbf16, #tpu.memory_space<vmem>>, %arg6: memref<1x256x128xf32, #tpu.memory_space<vmem>>) attributes {dimension_semantics = [#tpu.dimension_semantics<parallel>, #tpu.dimension_semantics<parallel>], iteration_bounds = array<i64: 2, 1>, scalar_prefetch = 0 : i64, scratch_operands = 0 : i64, tpu.core_type = #tpu.core_type<tc>, window_params = [{transform_indices = @transform_0, window_bounds = array<i64: 1, 256, 128>}, {transform_indices = @transform_1, window_bounds = array<i64: 1, 256, 128>}, {transform_indices = @transform_2, window_bounds = array<i64: 128, 128>}, {transform_indices = @transform_3, window_bounds = array<i64: 128, 128>}, {transform_indices = @transform_4, window_bounds = array<i64: 1, 256, 128>}]} {
    %c0 = arith.constant 0 : index
    %c0_0 = arith.constant 0 : index
    %c0_1 = arith.constant 0 : index
    %0 = vector.load %arg2[%c0, %c0_0, %c0_1] : memref<1x256x128xbf16, #tpu.memory_space<vmem>>, vector<1x256x128xbf16>
    %1 = vector.shape_cast %0 : vector<1x256x128xbf16> to vector<256x128xbf16>
    %c0_2 = arith.constant 0 : index
    %c0_3 = arith.constant 0 : index
    %2 = vector.load %arg4[%c0_2, %c0_3] : memref<128x128xbf16, #tpu.memory_space<vmem>>, vector<128x128xbf16>
    %cst = arith.constant dense<0.000000e+00> : vector<256x128xf32>
    %3 = tpu.matmul %1, %2, %cst {dimension_numbers = #tpu.dot_dimension_numbers<[1], [0], [0], [1], [0, 0, 1, 1], [], []>} : vector<256x128xbf16>, vector<128x128xbf16>, vector<256x128xf32> -> vector<256x128xf32>
    %c0_4 = arith.constant 0 : index
    %c0_5 = arith.constant 0 : index
    %c0_6 = arith.constant 0 : index
    %4 = vector.load %arg3[%c0_4, %c0_5, %c0_6] : memref<1x256x128xbf16, #tpu.memory_space<vmem>>, vector<1x256x128xbf16>
    %5 = vector.shape_cast %4 : vector<1x256x128xbf16> to vector<256x128xbf16>
    %c0_7 = arith.constant 0 : index
    %c0_8 = arith.constant 0 : index
    %6 = vector.load %arg5[%c0_7, %c0_8] : memref<128x128xbf16, #tpu.memory_space<vmem>>, vector<128x128xbf16>
    %cst_9 = arith.constant dense<0.000000e+00> : vector<256x128xf32>
    %7 = tpu.matmul %5, %6, %cst_9 {dimension_numbers = #tpu.dot_dimension_numbers<[1], [0], [0], [1], [0, 0, 1, 1], [], []>} : vector<256x128xbf16>, vector<128x128xbf16>, vector<256x128xf32> -> vector<256x128xf32>
    %cst_10 = arith.constant dense<0.000000e+00> : vector<128xf32>
    %8 = vector.multi_reduction <add>, %3, %cst_10 [0] : vector<256x128xf32> to vector<128xf32>
    %9 = vector.shape_cast %8 : vector<128xf32> to vector<1x128xf32>
    %cst_11 = arith.constant 2.560000e+02 : f32
    %10 = vector.broadcast %cst_11 : f32 to vector<1x128xf32>
    %11 = arith.divf %9, %10 : vector<1x128xf32>
    %12 = vector.broadcast %11 : vector<1x128xf32> to vector<256x128xf32>
    %13 = arith.subf %3, %12 : vector<256x128xf32>
    %14 = arith.mulf %13, %13 : vector<256x128xf32>
    %cst_12 = arith.constant dense<0.000000e+00> : vector<128xf32>
    %15 = vector.multi_reduction <add>, %14, %cst_12 [0] : vector<256x128xf32> to vector<128xf32>
    %16 = vector.shape_cast %15 : vector<128xf32> to vector<1x128xf32>
    %cst_13 = arith.constant 2.560000e+02 : f32
    %17 = vector.broadcast %cst_13 : f32 to vector<1x128xf32>
    %18 = arith.divf %16, %17 : vector<1x128xf32>
    %cst_14 = arith.constant 9.99999974E-6 : f32
    %19 = vector.broadcast %cst_14 : f32 to vector<1x128xf32>
    %20 = arith.addf %18, %19 : vector<1x128xf32>
    %21 = math.rsqrt %20 : vector<1x128xf32>
    %22 = vector.broadcast %21 : vector<1x128xf32> to vector<256x128xf32>
    %23 = arith.mulf %13, %22 : vector<256x128xf32>
    %cst_15 = arith.constant dense<0.000000e+00> : vector<128xf32>
    %24 = vector.multi_reduction <add>, %7, %cst_15 [0] : vector<256x128xf32> to vector<128xf32>
    %25 = vector.shape_cast %24 : vector<128xf32> to vector<1x128xf32>
    %cst_16 = arith.constant 2.560000e+02 : f32
    %26 = vector.broadcast %cst_16 : f32 to vector<1x128xf32>
    %27 = arith.divf %25, %26 : vector<1x128xf32>
    %28 = vector.broadcast %27 : vector<1x128xf32> to vector<256x128xf32>
    %29 = arith.subf %7, %28 : vector<256x128xf32>
    %30 = arith.mulf %29, %29 : vector<256x128xf32>
    %cst_17 = arith.constant dense<0.000000e+00> : vector<128xf32>
    %31 = vector.multi_reduction <add>, %30, %cst_17 [0] : vector<256x128xf32> to vector<128xf32>
    %32 = vector.shape_cast %31 : vector<128xf32> to vector<1x128xf32>
    %cst_18 = arith.constant 2.560000e+02 : f32
    %33 = vector.broadcast %cst_18 : f32 to vector<1x128xf32>
    %34 = arith.divf %32, %33 : vector<1x128xf32>
    %cst_19 = arith.constant 9.99999974E-6 : f32
    %35 = vector.broadcast %cst_19 : f32 to vector<1x128xf32>
    %36 = arith.addf %34, %35 : vector<1x128xf32>
    %37 = math.rsqrt %36 : vector<1x128xf32>
    %38 = vector.broadcast %37 : vector<1x128xf32> to vector<256x128xf32>
    %39 = arith.mulf %29, %38 : vector<256x128xf32>
    %40 = arith.addf %23, %39 : vector<256x128xf32>
    %cst_20 = arith.constant 0.000000e+00 : f32
    %41 = vector.broadcast %cst_20 : f32 to vector<256x128xf32>
    %42 = arith.maximumf %40, %41 : vector<256x128xf32>
    %c0_21 = arith.constant 0 : index
    %c0_22 = arith.constant 0 : index
    %c0_23 = arith.constant 0 : index
    %43 = vector.load %arg6[%c0_21, %c0_22, %c0_23] : memref<1x256x128xf32, #tpu.memory_space<vmem>>, vector<1x256x128xf32>
    %44 = vector.shape_cast %43 : vector<1x256x128xf32> to vector<256x128xf32>
    %45 = vector.shape_cast %42 : vector<256x128xf32> to vector<1x256x128xf32>
    tpu.vector_store %arg6[%c0_21, %c0_22, %c0_23], %45 {strides = array<i32>} : memref<1x256x128xf32, #tpu.memory_space<vmem>>, vector<1x256x128xf32>,
    return
  }
  func.func @transform_0(%arg0: i32, %arg1: i32) -> (i32, i32, i32) {
    %c0_i32 = arith.constant 0 : i32
    %c0_i32_0 = arith.constant 0 : i32
    %c0_i32_1 = arith.constant 0 : i32
    return %arg0, %c0_i32, %c0_i32_0 : i32, i32, i32
  }
  func.func @transform_1(%arg0: i32, %arg1: i32) -> (i32, i32, i32) {
    %c0_i32 = arith.constant 0 : i32
    %c0_i32_0 = arith.constant 0 : i32
    %c0_i32_1 = arith.constant 0 : i32
    return %arg0, %c0_i32, %c0_i32_0 : i32, i32, i32
  }
  func.func @transform_2(%arg0: i32, %arg1: i32) -> (i32, i32) {
    %c0_i32 = arith.constant 0 : i32
    %c0_i32_0 = arith.constant 0 : i32
    return %c0_i32, %arg1 : i32, i32
  }
  func.func @transform_3(%arg0: i32, %arg1: i32) -> (i32, i32) {
    %c0_i32 = arith.constant 0 : i32
    %c0_i32_0 = arith.constant 0 : i32
    return %c0_i32, %arg1 : i32, i32
  }
  func.func @transform_4(%arg0: i32, %arg1: i32) -> (i32, i32, i32) {
    %c0_i32 = arith.constant 0 : i32
    %c0_i32_0 = arith.constant 0 : i32
    return %arg0, %c0_i32, %arg1 : i32, i32, i32
  }
}

</mosaic_0001>

<llo_original>
// kernel: bottleneck_v0_forward.3
$region0: #{bottleneck_v0_forward.3}
  #allocation0 [shape = 'u32[]', space=smem, size = 0x4, offset = 0x4, fixed_abs, tag = 'smem constant byte address 0x4 - core index']
  #allocation1 [shape = 'u32[144,128]{1,0:T(1,128)}', space=vmem, size = 0x12000, scoped, tag = 'internal scratch']
  %s0 = inlined_call_operand.vmem [shape: bf16[2,256,128], index: 0, kind: input, shape index: {}]
  %s1 = inlined_call_operand.vmem [shape: bf16[128,128], index: 1, kind: input, shape index: {}]
  %s2 = inlined_call_operand.vmem [shape: bf16[2,256,128], index: 2, kind: output, shape index: {}]
  %s3 = sld [smem:[#allocation0]]
  $region41: #{bottleneck_v0_forward.3} parent=0
    _
  %s5 = ssub.s32 1, %s3
  %s6 = scalar_select 0, %s5, %s3
  loop: start=0, step=1, limit=4
  $region2: #{bottleneck_v0_forward.3} parent=0 // loop_pre_header
    _
  $region3: #{bottleneck_v0_forward.3} parent=0 // loop_header
    %s8 = sphi 0, %s12
    %p9 = scmp.ge.s32.totalorder %s8, 4
    %s15 = sphi 0, %s27
    %s16 = sphi 0, %s23
    %s17 = sphi 0, %s15
    %s18 = sphi 0, %s16
    %s19 = sphi 0, %s17
    %s20 = sphi 0, %s18
    %s30 = sphi 0, %s32
    %s33 = sphi 0, %s30
    %s34 = sphi 0, %s33
    %s50 = sphi 0, %s34
    %s56 = sphi 0, %s58
    %s59 = sphi 0, %s56
    %s60 = sphi 0, %s59
    %s76 = sphi 0, %s60
    %s84 = sphi 0, %s86
    %s87 = sphi 0, %s84
    %s88 = sphi 0, %s87
    %s104 = sphi 0, %s88
  $region4: #{bottleneck_v0_forward.3} parent=0 // loop_header_branch
    %11 = sbr.rel (%p9) target = $region8
  $region5: #{bottleneck_v0_forward.3} parent=0 // loop_body
    %s13 = ssub.s32 %s8, 1
    %s14 = ssub.s32 %s8, 2
    %s21 = sadd.s32 1, %s16
    %p22 = scmp.ge.s32.totalorder %s21, 1
    %s23 = scalar_select %p22, 0, %s21
    %s24 = sadd.s32 1, %s15
    %s25 = scalar_select %p22, %s24, %s15
    %p26 = scmp.ge.s32.totalorder %s25, 2
    %s27 = scalar_select %p26, 0, %s25
    %s28 = ssub.s32 %s15, %s27
    %p29 = scmp.eq.s32.totalorder %s28, 0
    %s31 = sadd.s32 %s30, 1
    %s32 = scalar_select %p29, %s30, %s31
    %p35 = pneg %p29
    %p36 = scmp.eq.s32.totalorder %s8, 1
    %p37 = por %p35, %p36
    %p38 = scmp.ne.s32.totalorder %s30, %s33
    %p39 = scmp.eq.s32.totalorder %s8, 0
    %p40 = por %p38, %p39
    %p41 = scmp.ne.s32.totalorder %s30, %s33
    %p42 = scmp.eq.s32.totalorder %s13, 1
    %p43 = por %p41, %p42
    %p44 = scmp.ne.s32.totalorder %s33, %s34
    %p45 = scmp.eq.s32.totalorder %s13, 0
    %p46 = por %p44, %p45
    %p47 = scmp.ne.s32.totalorder %s33, %s34
    %p48 = scmp.eq.s32.totalorder %s14, 1
    %p49 = por %p47, %p48
    %p51 = scmp.ne.s32.totalorder %s34, %s50
    %p52 = scmp.eq.s32.totalorder %s14, 0
    %p53 = por %p51, %p52
    %s54 = ssub.s32 %s16, %s23
    %p55 = scmp.eq.s32.totalorder %s54, 0
    %s57 = sadd.s32 %s56, 1
    %s58 = scalar_select %p55, %s56, %s57
    %p61 = pneg %p55
    %p62 = scmp.eq.s32.totalorder %s8, 1
    %p63 = por %p61, %p62
    %p64 = scmp.ne.s32.totalorder %s56, %s59
    %p65 = scmp.eq.s32.totalorder %s8, 0
    %p66 = por %p64, %p65
    %p67 = scmp.ne.s32.totalorder %s56, %s59
    %p68 = scmp.eq.s32.totalorder %s13, 1
    %p69 = por %p67, %p68
    %p70 = scmp.ne.s32.totalorder %s59, %s60
    %p71 = scmp.eq.s32.totalorder %s13, 0
    %p72 = por %p70, %p71
    %p73 = scmp.ne.s32.totalorder %s59, %s60
    %p74 = scmp.eq.s32.totalorder %s14, 1
    %p75 = por %p73, %p74
    %p77 = scmp.ne.s32.totalorder %s60, %s76
    %p78 = scmp.eq.s32.totalorder %s14, 0
    %p79 = por %p77, %p78
    %s80 = ssub.s32 %s15, %s27
    %s81 = ssub.s32 %s16, %s23
    %s82 = sor.u32 %s80, %s81
    %p83 = scmp.eq.s32.totalorder %s82, 0
    %s85 = sadd.s32 %s84, 1
    %s86 = scalar_select %p83, %s84, %s85
    %p89 = pneg %p83
    %p90 = scmp.eq.s32.totalorder %s8, 1
    %p91 = por %p89, %p90
    %p92 = scmp.ne.s32.totalorder %s84, %s87
    %p93 = scmp.eq.s32.totalorder %s8, 0
    %p94 = por %p92, %p93
    %p95 = scmp.ne.s32.totalorder %s84, %s87
    %p96 = scmp.eq.s32.totalorder %s13, 1
    %p97 = por %p95, %p96
    %p98 = scmp.ne.s32.totalorder %s87, %s88
    %p99 = scmp.eq.s32.totalorder %s13, 0
    %p100 = por %p98, %p99
    %p101 = scmp.ne.s32.totalorder %s87, %s88
    %p102 = scmp.eq.s32.totalorder %s14, 1
    %p103 = por %p101, %p102
    %p105 = scmp.ne.s32.totalorder %s88, %s104
    %p106 = scmp.eq.s32.totalorder %s14, 0
    %p107 = por %p105, %p106
    %p108 = scmp.le.s32.totalorder 1, %s8
    %p109 = scmp.lt.s32.totalorder %s8, 3
    %p110 = pnand %p108, %p109
    %p111 = pneg %p110
    // Predicated region
    $region9: #{bottleneck_v0_forward.3} parent=5 // pred_check
      _
    $region10: #{bottleneck_v0_forward.3} parent=5 // pred_check_branch
      %113 = sbr.rel (%p110) target = $region12
    $region11: #{bottleneck_v0_forward.3} parent=5 // pred_region
      %s114 = ssub.s32 %s8, 1
      // Predicated region
      $region13: #{bottleneck_v0_forward.3} parent=11 // pred_check
        %p115 = pneg %p72
      $region14: #{bottleneck_v0_forward.3} parent=11 // pred_check_branch
        %117 = sbr.rel (%p115) target = $region16
      $region15: #{bottleneck_v0_forward.3} parent=11 // pred_region
        %p118 = scmp.lt.s32.totalorder %s18, 0
        %s119 = scalar_select %p118, %s18, 0
        %s120 = smul.addr %s119, 4
        %s121 = scalar_lea.vmem %s1, %s120
      $region16: #{bottleneck_v0_forward.3} parent=11 // pred_fallthru
        _
    $region12: #{bottleneck_v0_forward.3} parent=5 // pred_fallthru
      _
    %p122 = scmp.lt.s32.totalorder %s8, 2
    // Predicated region
    $region17: #{bottleneck_v0_forward.3} parent=5 // pred_check
      %p123 = pneg %p122
    $region18: #{bottleneck_v0_forward.3} parent=5 // pred_check_branch
      %125 = sbr.rel (%p123) target = $region20
    $region19: #{bottleneck_v0_forward.3} parent=5 // pred_region
      // Predicated region
      $region21: #{bottleneck_v0_forward.3} parent=19 // pred_check
        %p126 = pneg %p40
      $region22: #{bottleneck_v0_forward.3} parent=19 // pred_check_branch
        %128 = sbr.rel (%p126) target = $region24
      $region23: #{bottleneck_v0_forward.3} parent=19 // pred_region
        %p129 = scmp.lt.s32.totalorder %s15, 1
        %s130 = scalar_select %p129, %s15, 1
        %s131 = smul.addr %s130, 32
        %s132 = smul.addr %s131, 4
        %s133 = scalar_lea.vmem %s0, %s132
      $region24: #{bottleneck_v0_forward.3} parent=19 // pred_fallthru
        _
    $region20: #{bottleneck_v0_forward.3} parent=5 // pred_fallthru
      _
    %p134 = scmp.le.s32.totalorder 1, %s8
    %p135 = scmp.lt.s32.totalorder %s8, 3
    %p136 = pnand %p134, %p135
    %p137 = pneg %p136
    // Predicated region
    $region25: #{bottleneck_v0_forward.3} parent=5 // pred_check
      _
    $region26: #{bottleneck_v0_forward.3} parent=5 // pred_check_branch
      %139 = sbr.rel (%p136) target = $region28
    $region27: #{bottleneck_v0_forward.3} parent=5 // pred_region
      %s140 = ssub.s32 %s8, 1
      %p141 = scmp.lt.s32.totalorder %s17, 1
      %s142 = scalar_select %p141, %s17, 1
      %s143 = smul.addr %s142, 32
      %s144 = smul.addr %s143, 4
      %s145 = scalar_lea.vmem %s0, %s144
      %p146 = pneg %p46
      %p147 = pneg %p43
      %p148 = scmp.lt.s32.totalorder %s18, 0
      %s149 = scalar_select %p148, %s18, 0
      %s150 = smul.addr %s149, 4
      %s151 = scalar_lea.vmem %s1, %s150
      %p152 = pneg %p72
      %p153 = pneg %p69
      %p154 = pneg %p100
      %p155 = pneg %p97
      %p156 = scmp.lt.s32.totalorder %s17, 1
      %s157 = scalar_select %p156, %s17, 1
      %p158 = scmp.lt.s32.totalorder %s18, 0
      %s159 = scalar_select %p158, %s18, 0
      %s160 = smul.addr %s157, 32
      %s161 = sadd.s32 %s159, %s160
      %s162 = smul.addr %s161, 4
      %s163 = scalar_lea.vmem %s2, %s162
      %p164 = scmp.lt.s32.totalorder %s17, 1
      %s165 = scalar_select %p164, %s17, 1
      %s166 = smul.addr %s165, 32
      %s167 = smul.addr %s166, 4
      %s168 = scalar_lea.vmem %s0, %s167
      %p169 = scmp.lt.s32.totalorder %s18, 0
      %s170 = scalar_select %p169, %s18, 0
      %s171 = smul.addr %s170, 4
      %s172 = scalar_lea.vmem %s1, %s171
      %p173 = scmp.lt.s32.totalorder %s17, 1
      %s174 = scalar_select %p173, %s17, 1
      %p175 = scmp.lt.s32.totalorder %s18, 0
      %s176 = scalar_select %p175, %s18, 0
      %s177 = smul.addr %s174, 32
      %s178 = sadd.s32 %s176, %s177
      %s179 = smul.addr %s178, 4
      %s180 = scalar_lea.vmem %s2, %s179
      %v182 = vld [vmem:[%s168] sm:$0xf]
      %v183 = vld [vmem:[%s168 + $0x4] sm:$0xf]
      %v184 = vld [vmem:[%s168 + $0x8] sm:$0xf]
      %v185 = vld [vmem:[%s168 + $0xc] sm:$0xf]
      %v186 = vld [vmem:[%s168 + $0x10] sm:$0xf]
      %v187 = vld [vmem:[%s168 + $0x14] sm:$0xf]
      %v188 = vld [vmem:[%s168 + $0x18] sm:$0xf]
      %v189 = vld [vmem:[%s168 + $0x1c] sm:$0xf]
      %v190 = vld [vmem:[%s168 + $0x20] sm:$0xf]
      %v191 = vld [vmem:[%s168 + $0x24] sm:$0xf]
      %v192 = vld [vmem:[%s168 + $0x28] sm:$0xf]
      %v193 = vld [vmem:[%s168 + $0x2c] sm:$0xf]
      %v194 = vld [vmem:[%s168 + $0x30] sm:$0xf]
      %v195 = vld [vmem:[%s168 + $0x34] sm:$0xf]
      %v196 = vld [vmem:[%s168 + $0x38] sm:$0xf]
      %v197 = vld [vmem:[%s168 + $0x3c] sm:$0xf]
      %v198 = vld [vmem:[%s168 + $0x40] sm:$0xf]
      %v199 = vld [vmem:[%s168 + $0x44] sm:$0xf]
      %v200 = vld [vmem:[%s168 + $0x48] sm:$0xf]
      %v201 = vld [vmem:[%s168 + $0x4c] sm:$0xf]
      %v202 = vld [vmem:[%s168 + $0x50] sm:$0xf]
      %v203 = vld [vmem:[%s168 + $0x54] sm:$0xf]
      %v204 = vld [vmem:[%s168 + $0x58] sm:$0xf]
      %v205 = vld [vmem:[%s168 + $0x5c] sm:$0xf]
      %v206 = vld [vmem:[%s168 + $0x60] sm:$0xf]
      %v207 = vld [vmem:[%s168 + $0x64] sm:$0xf]
      %v208 = vld [vmem:[%s168 + $0x68] sm:$0xf]
      %v209 = vld [vmem:[%s168 + $0x6c] sm:$0xf]
      %v210 = vld [vmem:[%s168 + $0x70] sm:$0xf]
      %v211 = vld [vmem:[%s168 + $0x74] sm:$0xf]
      %v212 = vld [vmem:[%s168 + $0x78] sm:$0xf]
      %v213 = vld [vmem:[%s168 + $0x7c] sm:$0xf]
      %v214 = vld [vmem:[%s172] sm:$0xf]
      %v215 = vld [vmem:[%s172 + $0x4] sm:$0xf]
      %v216 = vld [vmem:[%s172 + $0x8] sm:$0xf]
      %v217 = vld [vmem:[%s172 + $0xc] sm:$0xf]
      %v218 = vld [vmem:[%s172 + $0x10] sm:$0xf]
      %v219 = vld [vmem:[%s172 + $0x14] sm:$0xf]
      %v220 = vld [vmem:[%s172 + $0x18] sm:$0xf]
      %v221 = vld [vmem:[%s172 + $0x1c] sm:$0xf]
      %v222 = vld [vmem:[%s172 + $0x20] sm:$0xf]
      %v223 = vld [vmem:[%s172 + $0x24] sm:$0xf]
      %v224 = vld [vmem:[%s172 + $0x28] sm:$0xf]
      %v225 = vld [vmem:[%s172 + $0x2c] sm:$0xf]
      %v226 = vld [vmem:[%s172 + $0x30] sm:$0xf]
      %v227 = vld [vmem:[%s172 + $0x34] sm:$0xf]
      %v228 = vld [vmem:[%s172 + $0x38] sm:$0xf]
      %v229 = vld [vmem:[%s172 + $0x3c] sm:$0xf]
      %v262 = vunpack.c.l.b16 %v182
      %v263 = vunpack.c.l.b16 %v183
      %v264 = vunpack.c.l.b16 %v184
      %v265 = vunpack.c.l.b16 %v185
      %v266 = vunpack.c.l.b16 %v186
      %v267 = vunpack.c.l.b16 %v187
      %v268 = vunpack.c.l.b16 %v188
      %v269 = vunpack.c.l.b16 %v189
      %v270 = vunpack.c.l.b16 %v190
      %v271 = vunpack.c.l.b16 %v191
      %v272 = vunpack.c.l.b16 %v192
      %v273 = vunpack.c.l.b16 %v193
      %v274 = vunpack.c.l.b16 %v194
      %v275 = vunpack.c.l.b16 %v195
      %v276 = vunpack.c.l.b16 %v196
      %v277 = vunpack.c.l.b16 %v197
      %v278 = vunpack.c.l.b16 %v198
      %v279 = vunpack.c.l.b16 %v199
      %v280 = vunpack.c.l.b16 %v200
      %v281 = vunpack.c.l.b16 %v201
      %v282 = vunpack.c.l.b16 %v202
      %v283 = vunpack.c.l.b16 %v203
      %v284 = vunpack.c.l.b16 %v204
      %v285 = vunpack.c.l.b16 %v205
      %v286 = vunpack.c.l.b16 %v206
      %v287 = vunpack.c.l.b16 %v207
      %v288 = vunpack.c.l.b16 %v208
      %v289 = vunpack.c.l.b16 %v209
      %v290 = vunpack.c.l.b16 %v210
      %v291 = vunpack.c.l.b16 %v211
      %v292 = vunpack.c.l.b16 %v212
      %v293 = vunpack.c.l.b16 %v213
      %v294 = vpack.c.b16 %v263, %v262
      %v295 = vpack.c.b16 %v265, %v264
      %v296 = vpack.c.b16 %v267, %v266
      %v297 = vpack.c.b16 %v269, %v268
      %v298 = vpack.c.b16 %v271, %v270
      %v299 = vpack.c.b16 %v273, %v272
      %v300 = vpack.c.b16 %v275, %v274
      %v301 = vpack.c.b16 %v277, %v276
      %v302 = vpack.c.b16 %v279, %v278
      %v303 = vpack.c.b16 %v281, %v280
      %v304 = vpack.c.b16 %v283, %v282
      %v305 = vpack.c.b16 %v285, %v284
      %v306 = vpack.c.b16 %v287, %v286
      %v307 = vpack.c.b16 %v289, %v288
      %v308 = vpack.c.b16 %v291, %v290
      %v309 = vpack.c.b16 %v293, %v292
      %v342 = vunpack.c.l.b16 %v214
      %v343 = vunpack.c.l.b16 %v215
      %v344 = vunpack.c.l.b16 %v216
      %v345 = vunpack.c.l.b16 %v217
      %v346 = vunpack.c.l.b16 %v218
      %v347 = vunpack.c.l.b16 %v219
      %v348 = vunpack.c.l.b16 %v220
      %v349 = vunpack.c.l.b16 %v221
      %v350 = vunpack.c.l.b16 %v222
      %v351 = vunpack.c.l.b16 %v223
      %v352 = vunpack.c.l.b16 %v224
      %v353 = vunpack.c.l.b16 %v225
      %v354 = vunpack.c.l.b16 %v226
      %v355 = vunpack.c.l.b16 %v227
      %v356 = vunpack.c.l.b16 %v228
      %v357 = vunpack.c.l.b16 %v229
      %v358 = vpack.c.b16 %v343, %v342
      %v359 = vpack.c.b16 %v345, %v344
      %v360 = vpack.c.b16 %v347, %v346
      %v361 = vpack.c.b16 %v349, %v348
      %v362 = vpack.c.b16 %v351, %v350
      %v363 = vpack.c.b16 %v353, %v352
      %v364 = vpack.c.b16 %v355, %v354
      %v365 = vpack.c.b16 %v357, %v356
      %374 = vmatprep.subr.bf16.mxu0 0
      %375 = vmatpush1.bf16.msra.mxu0 %v365
      %376 = vmatprep.subr.bf16.mxu0 0
      %377 = vmatpush1.bf16.msra.mxu0 %v364
      %378 = vmatprep.subr.bf16.mxu0 0
      %379 = vmatpush1.bf16.msra.mxu0 %v363
      %380 = vmatprep.subr.bf16.mxu0 0
      %381 = vmatpush1.bf16.msra.mxu0 %v362
      %382 = vmatprep.subr.bf16.mxu0 0
      %383 = vmatpush1.bf16.msra.mxu0 %v361
      %384 = vmatprep.subr.bf16.mxu0 0
      %385 = vmatpush1.bf16.msra.mxu0 %v360
      %386 = vmatprep.subr.bf16.mxu0 0
      %387 = vmatpush1.bf16.msra.mxu0 %v359
      %388 = vmatprep.subr.bf16.mxu0 0
      %389 = vmatpush1.bf16.msra.mxu0 %v358
      %390 = vmatprep.subr.bf16.mxu0 0
      %391 = vmatpush2.bf16.msra.mxu0 0
      %392 = vmatprep.subr.bf16.mxu0 0
      %393 = vmatpush2.bf16.msra.mxu0 0
      %394 = vmatprep.subr.bf16.mxu0 0
      %395 = vmatpush2.bf16.msra.mxu0 0
      %396 = vmatprep.subr.bf16.mxu0 0
      %397 = vmatpush2.bf16.msra.mxu0 0
      %398 = vmatprep.subr.bf16.mxu0 0
      %399 = vmatpush2.bf16.msra.mxu0 0
      %400 = vmatprep.subr.bf16.mxu0 0
      %401 = vmatpush2.bf16.msra.mxu0 0
      %402 = vmatprep.subr.bf16.mxu0 0
      %403 = vmatpush2.bf16.msra.mxu0 0
      %404 = vmatprep.subr.bf16.mxu0 0
      %405 = vmatpush2.bf16.msra.mxu0 0
      %406 = vmatprep.mubr.bf16.mxu0 0
      %407 = vmatmul.mubr.bf16.gmra.mxu0 %v294
      %v408 = vpop.f32.mrf.mxu0
      %v409 = vadd.f32 0.0, %v408
      %v410 = vpop.f32.mrf.mxu0
      %v411 = vpop.f32.mrf.mxu0
      %v412 = vadd.f32 0.0, %v411
      %v413 = vpop.f32.mrf.mxu0
      %414 = vmatprep.mubr.bf16.mxu0 0
      %415 = vmatmul.mubr.bf16.gmra.mxu0 %v295
      %v416 = vpop.f32.mrf.mxu0
      %v417 = vadd.f32 0.0, %v416
      %v418 = vpop.f32.mrf.mxu0
      %v419 = vpop.f32.mrf.mxu0
      %v420 = vadd.f32 0.0, %v419
      %v421 = vpop.f32.mrf.mxu0
      %422 = vmatprep.mubr.bf16.mxu0 0
      %423 = vmatmul.mubr.bf16.gmra.mxu0 %v296
      %v424 = vpop.f32.mrf.mxu0
      %v425 = vadd.f32 0.0, %v424
      %v426 = vpop.f32.mrf.mxu0
      %v427 = vpop.f32.mrf.mxu0
      %v428 = vadd.f32 0.0, %v427
      %v429 = vpop.f32.mrf.mxu0
      %430 = vmatprep.mubr.bf16.mxu0 0
      %431 = vmatmul.mubr.bf16.gmra.mxu0 %v297
      %v432 = vpop.f32.mrf.mxu0
      %v433 = vadd.f32 0.0, %v432
      %v434 = vpop.f32.mrf.mxu0
      %v435 = vpop.f32.mrf.mxu0
      %v436 = vadd.f32 0.0, %v435
      %v437 = vpop.f32.mrf.mxu0
      %438 = vmatprep.mubr.bf16.mxu0 0
      %439 = vmatmul.mubr.bf16.gmra.mxu0 %v298
      %v440 = vpop.f32.mrf.mxu0
      %v441 = vadd.f32 0.0, %v440
      %v442 = vpop.f32.mrf.mxu0
      %v443 = vpop.f32.mrf.mxu0
      %v444 = vadd.f32 0.0, %v443
      %v445 = vpop.f32.mrf.mxu0
      %446 = vmatprep.mubr.bf16.mxu0 0
      %447 = vmatmul.mubr.bf16.gmra.mxu0 %v299
      %v448 = vpop.f32.mrf.mxu0
      %v449 = vadd.f32 0.0, %v448
      %v450 = vpop.f32.mrf.mxu0
      %v451 = vpop.f32.mrf.mxu0
      %v452 = vadd.f32 0.0, %v451
      %v453 = vpop.f32.mrf.mxu0
      %454 = vmatprep.mubr.bf16.mxu0 0
      %455 = vmatmul.mubr.bf16.gmra.mxu0 %v300
      %v456 = vpop.f32.mrf.mxu0
      %v457 = vadd.f32 0.0, %v456
      %v458 = vpop.f32.mrf.mxu0
      %v459 = vpop.f32.mrf.mxu0
      %v460 = vadd.f32 0.0, %v459
      %v461 = vpop.f32.mrf.mxu0
      %462 = vmatprep.mubr.bf16.mxu0 0
      %463 = vmatmul.mubr.bf16.gmra.mxu0 %v301
      %v464 = vpop.f32.mrf.mxu0
      %v465 = vadd.f32 0.0, %v464
      %v466 = vpop.f32.mrf.mxu0
      %v467 = vpop.f32.mrf.mxu0
      %v468 = vadd.f32 0.0, %v467
      %v469 = vpop.f32.mrf.mxu0
      %470 = vmatprep.mubr.bf16.mxu0 0
      %471 = vmatmul.mubr.bf16.gmra.mxu0 %v302
      %v472 = vpop.f32.mrf.mxu0
      %v473 = vadd.f32 0.0, %v472
      %v474 = vpop.f32.mrf.mxu0
      %v475 = vpop.f32.mrf.mxu0
      %v476 = vadd.f32 0.0, %v475
      %v477 = vpop.f32.mrf.mxu0
      %478 = vmatprep.mubr.bf16.mxu0 0
      %479 = vmatmul.mubr.bf16.gmra.mxu0 %v303
      %v480 = vpop.f32.mrf.mxu0
      %v481 = vadd.f32 0.0, %v480
      %v482 = vpop.f32.mrf.mxu0
      %v483 = vpop.f32.mrf.mxu0
      %v484 = vadd.f32 0.0, %v483
      %v485 = vpop.f32.mrf.mxu0
      %486 = vmatprep.mubr.bf16.mxu0 0
      %487 = vmatmul.mubr.bf16.gmra.mxu0 %v304
      %v488 = vpop.f32.mrf.mxu0
      %v489 = vadd.f32 0.0, %v488
      %v490 = vpop.f32.mrf.mxu0
      %v491 = vpop.f32.mrf.mxu0
      %v492 = vadd.f32 0.0, %v491
      %v493 = vpop.f32.mrf.mxu0
      %494 = vmatprep.mubr.bf16.mxu0 0
      %495 = vmatmul.mubr.bf16.gmra.mxu0 %v305
      %v496 = vpop.f32.mrf.mxu0
      %v497 = vadd.f32 0.0, %v496
      %v498 = vpop.f32.mrf.mxu0
      %v499 = vpop.f32.mrf.mxu0
      %v500 = vadd.f32 0.0, %v499
      %v501 = vpop.f32.mrf.mxu0
      %502 = vmatprep.mubr.bf16.mxu0 0
      %503 = vmatmul.mubr.bf16.gmra.mxu0 %v306
      %v504 = vpop.f32.mrf.mxu0
      %v505 = vadd.f32 0.0, %v504
      %v506 = vpop.f32.mrf.mxu0
      %v507 = vpop.f32.mrf.mxu0
      %v508 = vadd.f32 0.0, %v507
      %v509 = vpop.f32.mrf.mxu0
      %510 = vmatprep.mubr.bf16.mxu0 0
      %511 = vmatmul.mubr.bf16.gmra.mxu0 %v307
      %v512 = vpop.f32.mrf.mxu0
      %v513 = vadd.f32 0.0, %v512
      %v514 = vpop.f32.mrf.mxu0
      %v515 = vpop.f32.mrf.mxu0
      %v516 = vadd.f32 0.0, %v515
      %v517 = vpop.f32.mrf.mxu0
      %518 = vmatprep.mubr.bf16.mxu0 0
      %519 = vmatmul.mubr.bf16.gmra.mxu0 %v308
      %v520 = vpop.f32.mrf.mxu0
      %v521 = vadd.f32 0.0, %v520
      %v522 = vpop.f32.mrf.mxu0
      %v523 = vpop.f32.mrf.mxu0
      %v524 = vadd.f32 0.0, %v523
      %v525 = vpop.f32.mrf.mxu0
      %526 = vmatprep.mubr.bf16.mxu0 0
      %527 = vmatmul.mubr.bf16.gmra.mxu0 %v309
      %v528 = vpop.f32.mrf.mxu0
      %v529 = vadd.f32 0.0, %v528
      %v530 = vpop.f32.mrf.mxu0
      %v531 = vpop.f32.mrf.mxu0
      %v532 = vadd.f32 0.0, %v531
      %v533 = vpop.f32.mrf.mxu0
      %534 = vdwg.mxu0
      %v535 = vadd.f32 %v409, %v412
      %v536 = vadd.f32 %v535, %v417
      %v537 = vadd.f32 %v536, %v420
      %v538 = vadd.f32 %v537, %v425
      %v539 = vadd.f32 %v538, %v428
      %v540 = vadd.f32 %v539, %v433
      %v541 = vadd.f32 %v540, %v436
      %v542 = vadd.f32 %v541, %v441
      %v543 = vadd.f32 %v542, %v444
      %v544 = vadd.f32 %v543, %v449
      %v545 = vadd.f32 %v544, %v452
      %v546 = vadd.f32 %v545, %v457
      %v547 = vadd.f32 %v546, %v460
      %v548 = vadd.f32 %v547, %v465
      %v549 = vadd.f32 %v548, %v468
      %v550 = vadd.f32 %v549, %v473
      %v551 = vadd.f32 %v550, %v476
      %v552 = vadd.f32 %v551, %v481
      %v553 = vadd.f32 %v552, %v484
      %v554 = vadd.f32 %v553, %v489
      %v555 = vadd.f32 %v554, %v492
      %v556 = vadd.f32 %v555, %v497
      %v557 = vadd.f32 %v556, %v500
      %v558 = vadd.f32 %v557, %v505
      %v559 = vadd.f32 %v558, %v508
      %v560 = vadd.f32 %v559, %v513
      %v561 = vadd.f32 %v560, %v516
      %v562 = vadd.f32 %v561, %v521
      %v563 = vadd.f32 %v562, %v524
      %v564 = vadd.f32 %v563, %v529
      %v565 = vadd.f32 %v564, %v532
      %v566 = vrot.slane %v565, 4
      %v567 = vadd.f32 %v565, %v566
      %v568 = vrot.slane %v567, 2
      %v569 = vadd.f32 %v567, %v568
      %v570 = vrot.slane %v569, 1
      %v571 = vadd.f32 %v569, %v570
      %v572 = vrcp.pop 256.0
      %v573 = vmul.f32 %v571, %v572
      %v574 = vsub.f32 %v409, %v573
      %v575 = vsub.f32 %v412, %v573
      %v576 = vsub.f32 %v417, %v573
      %v577 = vsub.f32 %v420, %v573
      %v578 = vsub.f32 %v425, %v573
      %v579 = vsub.f32 %v428, %v573
      %v580 = vsub.f32 %v433, %v573
      %v581 = vsub.f32 %v436, %v573
      %v582 = vsub.f32 %v441, %v573
      %v583 = vsub.f32 %v444, %v573
      %v584 = vsub.f32 %v449, %v573
      %v585 = vsub.f32 %v452, %v573
      %v586 = vsub.f32 %v457, %v573
      %v587 = vsub.f32 %v460, %v573
      %v588 = vsub.f32 %v465, %v573
      %v589 = vsub.f32 %v468, %v573
      %v590 = vsub.f32 %v473, %v573
      %v591 = vsub.f32 %v476, %v573
      %v592 = vsub.f32 %v481, %v573
      %v593 = vsub.f32 %v484, %v573
      %v594 = vsub.f32 %v489, %v573
      %v595 = vsub.f32 %v492, %v573
      %v596 = vsub.f32 %v497, %v573
      %v597 = vsub.f32 %v500, %v573
      %v598 = vsub.f32 %v505, %v573
      %v599 = vsub.f32 %v508, %v573
      %v600 = vsub.f32 %v513, %v573
      %v601 = vsub.f32 %v516, %v573
      %v602 = vsub.f32 %v521, %v573
      %v603 = vsub.f32 %v524, %v573
      %v604 = vsub.f32 %v529, %v573
      %v605 = vsub.f32 %v532, %v573
      %v606 = vmul.f32 %v574, %v574
      %v607 = vmul.f32 %v575, %v575
      %v608 = vmul.f32 %v576, %v576
      %v609 = vmul.f32 %v577, %v577
      %v610 = vmul.f32 %v578, %v578
      %v611 = vmul.f32 %v579, %v579
      %v612 = vmul.f32 %v580, %v580
      %v613 = vmul.f32 %v581, %v581
      %v614 = vmul.f32 %v582, %v582
      %v615 = vmul.f32 %v583, %v583
      %v616 = vmul.f32 %v584, %v584
      %v617 = vmul.f32 %v585, %v585
      %v618 = vmul.f32 %v586, %v586
      %v619 = vmul.f32 %v587, %v587
      %v620 = vmul.f32 %v588, %v588
      %v621 = vmul.f32 %v589, %v589
      %v622 = vmul.f32 %v590, %v590
      %v623 = vmul.f32 %v591, %v591
      %v624 = vmul.f32 %v592, %v592
      %v625 = vmul.f32 %v593, %v593
      %v626 = vmul.f32 %v594, %v594
      %v627 = vmul.f32 %v595, %v595
      %v628 = vmul.f32 %v596, %v596
      %v629 = vmul.f32 %v597, %v597
      %v630 = vmul.f32 %v598, %v598
      %v631 = vmul.f32 %v599, %v599
      %v632 = vmul.f32 %v600, %v600
      %v633 = vmul.f32 %v601, %v601
      %v634 = vmul.f32 %v602, %v602
      %v635 = vmul.f32 %v603, %v603
      %v636 = vmul.f32 %v604, %v604
      %v637 = vmul.f32 %v605, %v605
      %v638 = vadd.f32 %v606, %v607
      %v639 = vadd.f32 %v638, %v608
      %v640 = vadd.f32 %v639, %v609
      %v641 = vadd.f32 %v640, %v610
      %v642 = vadd.f32 %v641, %v611
      %v643 = vadd.f32 %v642, %v612
      %v644 = vadd.f32 %v643, %v613
      %v645 = vadd.f32 %v644, %v614
      %v646 = vadd.f32 %v645, %v615
      %v647 = vadd.f32 %v646, %v616
      %v648 = vadd.f32 %v647, %v617
      %v649 = vadd.f32 %v648, %v618
      %v650 = vadd.f32 %v649, %v619
      %v651 = vadd.f32 %v650, %v620
      %v652 = vadd.f32 %v651, %v621
      %v653 = vadd.f32 %v652, %v622
      %v654 = vadd.f32 %v653, %v623
      %v655 = vadd.f32 %v654, %v624
      %v656 = vadd.f32 %v655, %v625
      %v657 = vadd.f32 %v656, %v626
      %v658 = vadd.f32 %v657, %v627
      %v659 = vadd.f32 %v658, %v628
      %v660 = vadd.f32 %v659, %v629
      %v661 = vadd.f32 %v660, %v630
      %v662 = vadd.f32 %v661, %v631
      %v663 = vadd.f32 %v662, %v632
      %v664 = vadd.f32 %v663, %v633
      %v665 = vadd.f32 %v664, %v634
      %v666 = vadd.f32 %v665, %v635
      %v667 = vadd.f32 %v666, %v636
      %v668 = vadd.f32 %v667, %v637
      %v669 = vrot.slane %v668, 4
      %v670 = vadd.f32 %v668, %v669
      %v671 = vrot.slane %v670, 2
      %v672 = vadd.f32 %v670, %v671
      %v673 = vrot.slane %v672, 1
      %v674 = vadd.f32 %v672, %v673
      %v675 = vmul.f32 %v674, %v572
      %v676 = vadd.f32 %v675, 1e-05
      %v677 = vrsqrt.pop %v676
      %v678 = vmul.f32 %v574, %v677
      %v679 = vmul.f32 %v575, %v677
      %v680 = vmul.f32 %v576, %v677
      %v681 = vmul.f32 %v577, %v677
      %v682 = vmul.f32 %v578, %v677
      %v683 = vmul.f32 %v579, %v677
      %v684 = vmul.f32 %v580, %v677
      %v685 = vmul.f32 %v581, %v677
      %v686 = vmul.f32 %v582, %v677
      %v687 = vmul.f32 %v583, %v677
      %v688 = vmul.f32 %v584, %v677
      %v689 = vmul.f32 %v585, %v677
      %v690 = vmul.f32 %v586, %v677
      %v691 = vmul.f32 %v587, %v677
      %v692 = vmul.f32 %v588, %v677
      %v693 = vmul.f32 %v589, %v677
      %v694 = vmul.f32 %v590, %v677
      %v695 = vmul.f32 %v591, %v677
      %v696 = vmul.f32 %v592, %v677
      %v697 = vmul.f32 %v593, %v677
      %v698 = vmul.f32 %v594, %v677
      %v699 = vmul.f32 %v595, %v677
      %v700 = vmul.f32 %v596, %v677
      %v701 = vmul.f32 %v597, %v677
      %v702 = vmul.f32 %v598, %v677
      %v703 = vmul.f32 %v599, %v677
      %v704 = vmul.f32 %v600, %v677
      %v705 = vmul.f32 %v601, %v677
      %v706 = vmul.f32 %v602, %v677
      %v707 = vmul.f32 %v603, %v677
      %v708 = vmul.f32 %v604, %v677
      %v709 = vmul.f32 %v605, %v677
      %v710 = vmax.f32 %v678, 0.0
      %v711 = vmax.f32 %v679, 0.0
      %v712 = vmax.f32 %v680, 0.0
      %v713 = vmax.f32 %v681, 0.0
      %v714 = vmax.f32 %v682, 0.0
      %v715 = vmax.f32 %v683, 0.0
      %v716 = vmax.f32 %v684, 0.0
      %v717 = vmax.f32 %v685, 0.0
      %v718 = vmax.f32 %v686, 0.0
      %v719 = vmax.f32 %v687, 0.0
      %v720 = vmax.f32 %v688, 0.0
      %v721 = vmax.f32 %v689, 0.0
      %v722 = vmax.f32 %v690, 0.0
      %v723 = vmax.f32 %v691, 0.0
      %v724 = vmax.f32 %v692, 0.0
      %v725 = vmax.f32 %v693, 0.0
      %v726 = vmax.f32 %v694, 0.0
      %v727 = vmax.f32 %v695, 0.0
      %v728 = vmax.f32 %v696, 0.0
      %v729 = vmax.f32 %v697, 0.0
      %v730 = vmax.f32 %v698, 0.0
      %v731 = vmax.f32 %v699, 0.0
      %v732 = vmax.f32 %v700, 0.0
      %v733 = vmax.f32 %v701, 0.0
      %v734 = vmax.f32 %v702, 0.0
      %v735 = vmax.f32 %v703, 0.0
      %v736 = vmax.f32 %v704, 0.0
      %v737 = vmax.f32 %v705, 0.0
      %v738 = vmax.f32 %v706, 0.0
      %v739 = vmax.f32 %v707, 0.0
      %v740 = vmax.f32 %v708, 0.0
      %v741 = vmax.f32 %v709, 0.0
      %v742 = vpack.c.bf16 %v711, %v710
      %v743 = vpack.c.bf16 %v713, %v712
      %v744 = vpack.c.bf16 %v715, %v714
      %v745 = vpack.c.bf16 %v717, %v716
      %v746 = vpack.c.bf16 %v719, %v718
      %v747 = vpack.c.bf16 %v721, %v720
      %v748 = vpack.c.bf16 %v723, %v722
      %v749 = vpack.c.bf16 %v725, %v724
      %v750 = vpack.c.bf16 %v727, %v726
      %v751 = vpack.c.bf16 %v729, %v728
      %v752 = vpack.c.bf16 %v731, %v730
      %v753 = vpack.c.bf16 %v733, %v732
      %v754 = vpack.c.bf16 %v735, %v734
      %v755 = vpack.c.bf16 %v737, %v736
      %v756 = vpack.c.bf16 %v739, %v738
      %v757 = vpack.c.bf16 %v741, %v740
      %v774 = vunpack.c.l.b16 %v742
      %v775 = vunpack.c.h.b16 %v742
      %v776 = vunpack.c.l.b16 %v743
      %v777 = vunpack.c.h.b16 %v743
      %v778 = vunpack.c.l.b16 %v744
      %v779 = vunpack.c.h.b16 %v744
      %v780 = vunpack.c.l.b16 %v745
      %v781 = vunpack.c.h.b16 %v745
      %v782 = vunpack.c.l.b16 %v746
      %v783 = vunpack.c.h.b16 %v746
      %v784 = vunpack.c.l.b16 %v747
      %v785 = vunpack.c.h.b16 %v747
      %v786 = vunpack.c.l.b16 %v748
      %v787 = vunpack.c.h.b16 %v748
      %v788 = vunpack.c.l.b16 %v749
      %v789 = vunpack.c.h.b16 %v749
      %v790 = vunpack.c.l.b16 %v750
      %v791 = vunpack.c.h.b16 %v750
      %v792 = vunpack.c.l.b16 %v751
      %v793 = vunpack.c.h.b16 %v751
      %v794 = vunpack.c.l.b16 %v752
      %v795 = vunpack.c.h.b16 %v752
      %v796 = vunpack.c.l.b16 %v753
      %v797 = vunpack.c.h.b16 %v753
      %v798 = vunpack.c.l.b16 %v754
      %v799 = vunpack.c.h.b16 %v754
      %v800 = vunpack.c.l.b16 %v755
      %v801 = vunpack.c.h.b16 %v755
      %v802 = vunpack.c.l.b16 %v756
      %v803 = vunpack.c.h.b16 %v756
      %v804 = vunpack.c.l.b16 %v757
      %v805 = vunpack.c.h.b16 %v757
      %v806 = vpack.c.b16 %v774, %v774
      %v807 = vpack.c.b16 %v775, %v775
      %v808 = vpack.c.b16 %v776, %v776
      %v809 = vpack.c.b16 %v777, %v777
      %v810 = vpack.c.b16 %v778, %v778
      %v811 = vpack.c.b16 %v779, %v779
      %v812 = vpack.c.b16 %v780, %v780
      %v813 = vpack.c.b16 %v781, %v781
      %v814 = vpack.c.b16 %v782, %v782
      %v815 = vpack.c.b16 %v783, %v783
      %v816 = vpack.c.b16 %v784, %v784
      %v817 = vpack.c.b16 %v785, %v785
      %v818 = vpack.c.b16 %v786, %v786
      %v819 = vpack.c.b16 %v787, %v787
      %v820 = vpack.c.b16 %v788, %v788
      %v821 = vpack.c.b16 %v789, %v789
      %v822 = vpack.c.b16 %v790, %v790
      %v823 = vpack.c.b16 %v791, %v791
      %v824 = vpack.c.b16 %v792, %v792
      %v825 = vpack.c.b16 %v793, %v793
      %v826 = vpack.c.b16 %v794, %v794
      %v827 = vpack.c.b16 %v795, %v795
      %v828 = vpack.c.b16 %v796, %v796
      %v829 = vpack.c.b16 %v797, %v797
      %v830 = vpack.c.b16 %v798, %v798
      %v831 = vpack.c.b16 %v799, %v799
      %v832 = vpack.c.b16 %v800, %v800
      %v833 = vpack.c.b16 %v801, %v801
      %v834 = vpack.c.b16 %v802, %v802
      %v835 = vpack.c.b16 %v803, %v803
      %v836 = vpack.c.b16 %v804, %v804
      %v837 = vpack.c.b16 %v805, %v805
      %870 = vst [vmem:[%s180] sm:$0xf] %v806
      %871 = vst [vmem:[%s180 + $0x4] sm:$0xf] %v807
      %872 = vst [vmem:[%s180 + $0x8] sm:$0xf] %v808
      %873 = vst [vmem:[%s180 + $0xc] sm:$0xf] %v809
      %874 = vst [vmem:[%s180 + $0x10] sm:$0xf] %v810
      %875 = vst [vmem:[%s180 + $0x14] sm:$0xf] %v811
      %876 = vst [vmem:[%s180 + $0x18] sm:$0xf] %v812
      %877 = vst [vmem:[%s180 + $0x1c] sm:$0xf] %v813
      %878 = vst [vmem:[%s180 + $0x20] sm:$0xf] %v814
      %879 = vst [vmem:[%s180 + $0x24] sm:$0xf] %v815
      %880 = vst [vmem:[%s180 + $0x28] sm:$0xf] %v816
      %881 = vst [vmem:[%s180 + $0x2c] sm:$0xf] %v817
      %882 = vst [vmem:[%s180 + $0x30] sm:$0xf] %v818
      %883 = vst [vmem:[%s180 + $0x34] sm:$0xf] %v819
      %884 = vst [vmem:[%s180 + $0x38] sm:$0xf] %v820
      %885 = vst [vmem:[%s180 + $0x3c] sm:$0xf] %v821
      %886 = vst [vmem:[%s180 + $0x40] sm:$0xf] %v822
      %887 = vst [vmem:[%s180 + $0x44] sm:$0xf] %v823
      %888 = vst [vmem:[%s180 + $0x48] sm:$0xf] %v824
      %889 = vst [vmem:[%s180 + $0x4c] sm:$0xf] %v825
      %890 = vst [vmem:[%s180 + $0x50] sm:$0xf] %v826
      %891 = vst [vmem:[%s180 + $0x54] sm:$0xf] %v827
      %892 = vst [vmem:[%s180 + $0x58] sm:$0xf] %v828
      %893 = vst [vmem:[%s180 + $0x5c] sm:$0xf] %v829
      %894 = vst [vmem:[%s180 + $0x60] sm:$0xf] %v830
      %895 = vst [vmem:[%s180 + $0x64] sm:$0xf] %v831
      %896 = vst [vmem:[%s180 + $0x68] sm:$0xf] %v832
      %897 = vst [vmem:[%s180 + $0x6c] sm:$0xf] %v833
      %898 = vst [vmem:[%s180 + $0x70] sm:$0xf] %v834
      %899 = vst [vmem:[%s180 + $0x74] sm:$0xf] %v835
      %900 = vst [vmem:[%s180 + $0x78] sm:$0xf] %v836
      %901 = vst [vmem:[%s180 + $0x7c] sm:$0xf] %v837
      %p902 = scmp.lt.s32.totalorder %s17, 1
      %s903 = scalar_select %p902, %s17, 1
      %p904 = scmp.lt.s32.totalorder %s18, 0
      %s905 = scalar_select %p904, %s18, 0
      %s906 = smul.addr %s903, 32
      %s907 = sadd.s32 %s905, %s906
      %s908 = smul.addr %s907, 4
      %s909 = scalar_lea.vmem %s2, %s908
      // Predicated region
      $region29: #{bottleneck_v0_forward.3} parent=27 // pred_check
        %p910 = pneg %p97
      $region30: #{bottleneck_v0_forward.3} parent=27 // pred_check_branch
        %912 = sbr.rel (%p910) target = $region32
      $region31: #{bottleneck_v0_forward.3} parent=27 // pred_region
        _
      $region32: #{bottleneck_v0_forward.3} parent=27 // pred_fallthru
        _
    $region28: #{bottleneck_v0_forward.3} parent=5 // pred_fallthru
      _
    %p913 = scmp.le.s32.totalorder 2, %s8
    // Predicated region
    $region33: #{bottleneck_v0_forward.3} parent=5 // pred_check
      %p914 = pneg %p913
    $region34: #{bottleneck_v0_forward.3} parent=5 // pred_check_branch
      %916 = sbr.rel (%p914) target = $region36
    $region35: #{bottleneck_v0_forward.3} parent=5 // pred_region
      %s917 = ssub.s32 %s8, 2
      // Predicated region
      $region37: #{bottleneck_v0_forward.3} parent=35 // pred_check
        %p918 = pneg %p103
      $region38: #{bottleneck_v0_forward.3} parent=35 // pred_check_branch
        %920 = sbr.rel (%p918) target = $region40
      $region39: #{bottleneck_v0_forward.3} parent=35 // pred_region
        %p921 = scmp.lt.s32.totalorder %s19, 1
        %s922 = scalar_select %p921, %s19, 1
        %p923 = scmp.lt.s32.totalorder %s20, 0
        %s924 = scalar_select %p923, %s20, 0
        %s925 = smul.addr %s922, 32
        %s926 = sadd.s32 %s924, %s925
        %s927 = smul.addr %s926, 4
        %s928 = scalar_lea.vmem %s2, %s927
      $region40: #{bottleneck_v0_forward.3} parent=35 // pred_fallthru
        _
    $region36: #{bottleneck_v0_forward.3} parent=5 // pred_fallthru
      _
  $region6: #{bottleneck_v0_forward.3} parent=0 // loop_footer
    %s12 = sadd.s32 1, %s8
  $region7: #{bottleneck_v0_forward.3} parent=0 // loop_footer_branch
    %7 = sbr.rel target = $region3
  $region8: #{bottleneck_v0_forward.3} parent=0 // loop_exit
    _

// kernel: bottleneck_v0_forward.5
$region0: #{bottleneck_v0_forward.5}
  #allocation0 [shape = 'u32[]', space=smem, size = 0x4, offset = 0x4, fixed_abs, tag = 'smem constant byte address 0x4 - core index']
  #allocation1 [shape = 'u32[144,128]{1,0:T(1,128)}', space=vmem, size = 0x12000, scoped, tag = 'internal scratch']
  %s0 = inlined_call_operand.vmem [shape: bf16[2,256,128], index: 0, kind: input, shape index: {}]
  %s1 = inlined_call_operand.vmem [shape: bf16[2,256,128], index: 1, kind: input, shape index: {}]
  %s2 = inlined_call_operand.vmem [shape: bf16[128,128], index: 2, kind: input, shape index: {}]
  %s3 = inlined_call_operand.vmem [shape: bf16[128,128], index: 3, kind: input, shape index: {}]
  %s4 = inlined_call_operand.vmem [shape: f32[2,256,128], index: 4, kind: output, shape index: {}]
  %s5 = sld [smem:[#allocation0]]
  $region49: #{bottleneck_v0_forward.5} parent=0
    _
  %s7 = ssub.s32 1, %s5
  %s8 = scalar_select 0, %s7, %s5
  loop: start=0, step=1, limit=4
  $region2: #{bottleneck_v0_forward.5} parent=0 // loop_pre_header
    _
  $region3: #{bottleneck_v0_forward.5} parent=0 // loop_header
    %s10 = sphi 0, %s14
    %p11 = scmp.ge.s32.totalorder %s10, 4
    %s17 = sphi 0, %s29
    %s18 = sphi 0, %s25
    %s19 = sphi 0, %s17
    %s20 = sphi 0, %s18
    %s21 = sphi 0, %s19
    %s22 = sphi 0, %s20
    %s32 = sphi 0, %s34
    %s35 = sphi 0, %s32
    %s36 = sphi 0, %s35
    %s52 = sphi 0, %s36
    %s58 = sphi 0, %s60
    %s61 = sphi 0, %s58
    %s62 = sphi 0, %s61
    %s78 = sphi 0, %s62
    %s84 = sphi 0, %s86
    %s87 = sphi 0, %s84
    %s88 = sphi 0, %s87
    %s104 = sphi 0, %s88
    %s110 = sphi 0, %s112
    %s113 = sphi 0, %s110
    %s114 = sphi 0, %s113
    %s130 = sphi 0, %s114
    %s138 = sphi 0, %s140
    %s141 = sphi 0, %s138
    %s142 = sphi 0, %s141
    %s158 = sphi 0, %s142
  $region4: #{bottleneck_v0_forward.5} parent=0 // loop_header_branch
    %13 = sbr.rel (%p11) target = $region8
  $region5: #{bottleneck_v0_forward.5} parent=0 // loop_body
    %s15 = ssub.s32 %s10, 1
    %s16 = ssub.s32 %s10, 2
    %s23 = sadd.s32 1, %s18
    %p24 = scmp.ge.s32.totalorder %s23, 1
    %s25 = scalar_select %p24, 0, %s23
    %s26 = sadd.s32 1, %s17
    %s27 = scalar_select %p24, %s26, %s17
    %p28 = scmp.ge.s32.totalorder %s27, 2
    %s29 = scalar_select %p28, 0, %s27
    %s30 = ssub.s32 %s17, %s29
    %p31 = scmp.eq.s32.totalorder %s30, 0
    %s33 = sadd.s32 %s32, 1
    %s34 = scalar_select %p31, %s32, %s33
    %p37 = pneg %p31
    %p38 = scmp.eq.s32.totalorder %s10, 1
    %p39 = por %p37, %p38
    %p40 = scmp.ne.s32.totalorder %s32, %s35
    %p41 = scmp.eq.s32.totalorder %s10, 0
    %p42 = por %p40, %p41
    %p43 = scmp.ne.s32.totalorder %s32, %s35
    %p44 = scmp.eq.s32.totalorder %s15, 1
    %p45 = por %p43, %p44
    %p46 = scmp.ne.s32.totalorder %s35, %s36
    %p47 = scmp.eq.s32.totalorder %s15, 0
    %p48 = por %p46, %p47
    %p49 = scmp.ne.s32.totalorder %s35, %s36
    %p50 = scmp.eq.s32.totalorder %s16, 1
    %p51 = por %p49, %p50
    %p53 = scmp.ne.s32.totalorder %s36, %s52
    %p54 = scmp.eq.s32.totalorder %s16, 0
    %p55 = por %p53, %p54
    %s56 = ssub.s32 %s17, %s29
    %p57 = scmp.eq.s32.totalorder %s56, 0
    %s59 = sadd.s32 %s58, 1
    %s60 = scalar_select %p57, %s58, %s59
    %p63 = pneg %p57
    %p64 = scmp.eq.s32.totalorder %s10, 1
    %p65 = por %p63, %p64
    %p66 = scmp.ne.s32.totalorder %s58, %s61
    %p67 = scmp.eq.s32.totalorder %s10, 0
    %p68 = por %p66, %p67
    %p69 = scmp.ne.s32.totalorder %s58, %s61
    %p70 = scmp.eq.s32.totalorder %s15, 1
    %p71 = por %p69, %p70
    %p72 = scmp.ne.s32.totalorder %s61, %s62
    %p73 = scmp.eq.s32.totalorder %s15, 0
    %p74 = por %p72, %p73
    %p75 = scmp.ne.s32.totalorder %s61, %s62
    %p76 = scmp.eq.s32.totalorder %s16, 1
    %p77 = por %p75, %p76
    %p79 = scmp.ne.s32.totalorder %s62, %s78
    %p80 = scmp.eq.s32.totalorder %s16, 0
    %p81 = por %p79, %p80
    %s82 = ssub.s32 %s18, %s25
    %p83 = scmp.eq.s32.totalorder %s82, 0
    %s85 = sadd.s32 %s84, 1
    %s86 = scalar_select %p83, %s84, %s85
    %p89 = pneg %p83
    %p90 = scmp.eq.s32.totalorder %s10, 1
    %p91 = por %p89, %p90
    %p92 = scmp.ne.s32.totalorder %s84, %s87
    %p93 = scmp.eq.s32.totalorder %s10, 0
    %p94 = por %p92, %p93
    %p95 = scmp.ne.s32.totalorder %s84, %s87
    %p96 = scmp.eq.s32.totalorder %s15, 1
    %p97 = por %p95, %p96
    %p98 = scmp.ne.s32.totalorder %s87, %s88
    %p99 = scmp.eq.s32.totalorder %s15, 0
    %p100 = por %p98, %p99
    %p101 = scmp.ne.s32.totalorder %s87, %s88
    %p102 = scmp.eq.s32.totalorder %s16, 1
    %p103 = por %p101, %p102
    %p105 = scmp.ne.s32.totalorder %s88, %s104
    %p106 = scmp.eq.s32.totalorder %s16, 0
    %p107 = por %p105, %p106
    %s108 = ssub.s32 %s18, %s25
    %p109 = scmp.eq.s32.totalorder %s108, 0
    %s111 = sadd.s32 %s110, 1
    %s112 = scalar_select %p109, %s110, %s111
    %p115 = pneg %p109
    %p116 = scmp.eq.s32.totalorder %s10, 1
    %p117 = por %p115, %p116
    %p118 = scmp.ne.s32.totalorder %s110, %s113
    %p119 = scmp.eq.s32.totalorder %s10, 0
    %p120 = por %p118, %p119
    %p121 = scmp.ne.s32.totalorder %s110, %s113
    %p122 = scmp.eq.s32.totalorder %s15, 1
    %p123 = por %p121, %p122
    %p124 = scmp.ne.s32.totalorder %s113, %s114
    %p125 = scmp.eq.s32.totalorder %s15, 0
    %p126 = por %p124, %p125
    %p127 = scmp.ne.s32.totalorder %s113, %s114
    %p128 = scmp.eq.s32.totalorder %s16, 1
    %p129 = por %p127, %p128
    %p131 = scmp.ne.s32.totalorder %s114, %s130
    %p132 = scmp.eq.s32.totalorder %s16, 0
    %p133 = por %p131, %p132
    %s134 = ssub.s32 %s17, %s29
    %s135 = ssub.s32 %s18, %s25
    %s136 = sor.u32 %s134, %s135
    %p137 = scmp.eq.s32.totalorder %s136, 0
    %s139 = sadd.s32 %s138, 1
    %s140 = scalar_select %p137, %s138, %s139
    %p143 = pneg %p137
    %p144 = scmp.eq.s32.totalorder %s10, 1
    %p145 = por %p143, %p144
    %p146 = scmp.ne.s32.totalorder %s138, %s141
    %p147 = scmp.eq.s32.totalorder %s10, 0
    %p148 = por %p146, %p147
    %p149 = scmp.ne.s32.totalorder %s138, %s141
    %p150 = scmp.eq.s32.totalorder %s15, 1
    %p151 = por %p149, %p150
    %p152 = scmp.ne.s32.totalorder %s141, %s142
    %p153 = scmp.eq.s32.totalorder %s15, 0
    %p154 = por %p152, %p153
    %p155 = scmp.ne.s32.totalorder %s141, %s142
    %p156 = scmp.eq.s32.totalorder %s16, 1
    %p157 = por %p155, %p156
    %p159 = scmp.ne.s32.totalorder %s142, %s158
    %p160 = scmp.eq.s32.totalorder %s16, 0
    %p161 = por %p159, %p160
    %p162 = scmp.le.s32.totalorder 1, %s10
    %p163 = scmp.lt.s32.totalorder %s10, 3
    %p164 = pnand %p162, %p163
    %p165 = pneg %p164
    // Predicated region
    $region9: #{bottleneck_v0_forward.5} parent=5 // pred_check
      _
    $region10: #{bottleneck_v0_forward.5} parent=5 // pred_check_branch
      %167 = sbr.rel (%p164) target = $region12
    $region11: #{bottleneck_v0_forward.5} parent=5 // pred_region
      %s168 = ssub.s32 %s10, 1
      // Predicated region
      $region13: #{bottleneck_v0_forward.5} parent=11 // pred_check
        %p169 = pneg %p100
      $region14: #{bottleneck_v0_forward.5} parent=11 // pred_check_branch
        %171 = sbr.rel (%p169) target = $region16
      $region15: #{bottleneck_v0_forward.5} parent=11 // pred_region
        %p172 = scmp.lt.s32.totalorder %s20, 0
        %s173 = scalar_select %p172, %s20, 0
        %s174 = smul.addr %s173, 4
        %s175 = scalar_lea.vmem %s2, %s174
      $region16: #{bottleneck_v0_forward.5} parent=11 // pred_fallthru
        _
      // Predicated region
      $region17: #{bottleneck_v0_forward.5} parent=11 // pred_check
        %p176 = pneg %p126
      $region18: #{bottleneck_v0_forward.5} parent=11 // pred_check_branch
        %178 = sbr.rel (%p176) target = $region20
      $region19: #{bottleneck_v0_forward.5} parent=11 // pred_region
        %p179 = scmp.lt.s32.totalorder %s20, 0
        %s180 = scalar_select %p179, %s20, 0
        %s181 = smul.addr %s180, 4
        %s182 = scalar_lea.vmem %s3, %s181
      $region20: #{bottleneck_v0_forward.5} parent=11 // pred_fallthru
        _
    $region12: #{bottleneck_v0_forward.5} parent=5 // pred_fallthru
      _
    %p183 = scmp.lt.s32.totalorder %s10, 2
    // Predicated region
    $region21: #{bottleneck_v0_forward.5} parent=5 // pred_check
      %p184 = pneg %p183
    $region22: #{bottleneck_v0_forward.5} parent=5 // pred_check_branch
      %186 = sbr.rel (%p184) target = $region24
    $region23: #{bottleneck_v0_forward.5} parent=5 // pred_region
      // Predicated region
      $region25: #{bottleneck_v0_forward.5} parent=23 // pred_check
        %p187 = pneg %p42
      $region26: #{bottleneck_v0_forward.5} parent=23 // pred_check_branch
        %189 = sbr.rel (%p187) target = $region28
      $region27: #{bottleneck_v0_forward.5} parent=23 // pred_region
        %p190 = scmp.lt.s32.totalorder %s17, 1
        %s191 = scalar_select %p190, %s17, 1
        %s192 = smul.addr %s191, 32
        %s193 = smul.addr %s192, 4
        %s194 = scalar_lea.vmem %s0, %s193
      $region28: #{bottleneck_v0_forward.5} parent=23 // pred_fallthru
        _
      // Predicated region
      $region29: #{bottleneck_v0_forward.5} parent=23 // pred_check
        %p195 = pneg %p68
      $region30: #{bottleneck_v0_forward.5} parent=23 // pred_check_branch
        %197 = sbr.rel (%p195) target = $region32
      $region31: #{bottleneck_v0_forward.5} parent=23 // pred_region
        %p198 = scmp.lt.s32.totalorder %s17, 1
        %s199 = scalar_select %p198, %s17, 1
        %s200 = smul.addr %s199, 32
        %s201 = smul.addr %s200, 4
        %s202 = scalar_lea.vmem %s1, %s201
      $region32: #{bottleneck_v0_forward.5} parent=23 // pred_fallthru
        _
    $region24: #{bottleneck_v0_forward.5} parent=5 // pred_fallthru
      _
    %p203 = scmp.le.s32.totalorder 1, %s10
    %p204 = scmp.lt.s32.totalorder %s10, 3
    %p205 = pnand %p203, %p204
    %p206 = pneg %p205
    // Predicated region
    $region33: #{bottleneck_v0_forward.5} parent=5 // pred_check
      _
    $region34: #{bottleneck_v0_forward.5} parent=5 // pred_check_branch
      %208 = sbr.rel (%p205) target = $region36
    $region35: #{bottleneck_v0_forward.5} parent=5 // pred_region
      %s209 = ssub.s32 %s10, 1
      %p210 = scmp.lt.s32.totalorder %s19, 1
      %s211 = scalar_select %p210, %s19, 1
      %s212 = smul.addr %s211, 32
      %s213 = smul.addr %s212, 4
      %s214 = scalar_lea.vmem %s0, %s213
      %p215 = pneg %p48
      %p216 = pneg %p45
      %p217 = scmp.lt.s32.totalorder %s19, 1
      %s218 = scalar_select %p217, %s19, 1
      %s219 = smul.addr %s218, 32
      %s220 = smul.addr %s219, 4
      %s221 = scalar_lea.vmem %s1, %s220
      %p222 = pneg %p74
      %p223 = pneg %p71
      %p224 = scmp.lt.s32.totalorder %s20, 0
      %s225 = scalar_select %p224, %s20, 0
      %s226 = smul.addr %s225, 4
      %s227 = scalar_lea.vmem %s2, %s226
      %p228 = pneg %p100
      %p229 = pneg %p97
      %p230 = scmp.lt.s32.totalorder %s20, 0
      %s231 = scalar_select %p230, %s20, 0
      %s232 = smul.addr %s231, 4
      %s233 = scalar_lea.vmem %s3, %s232
      %p234 = pneg %p126
      %p235 = pneg %p123
      %p236 = pneg %p154
      %p237 = pneg %p151
      %p238 = scmp.lt.s32.totalorder %s19, 1
      %s239 = scalar_select %p238, %s19, 1
      %p240 = scmp.lt.s32.totalorder %s20, 0
      %s241 = scalar_select %p240, %s20, 0
      %s242 = smul.addr %s239, 32
      %s243 = sadd.s32 %s241, %s242
      %s244 = smul.addr %s243, 8
      %s245 = scalar_lea.vmem %s4, %s244
      %p246 = scmp.lt.s32.totalorder %s19, 1
      %s247 = scalar_select %p246, %s19, 1
      %s248 = smul.addr %s247, 32
      %s249 = smul.addr %s248, 4
      %s250 = scalar_lea.vmem %s0, %s249
      %p251 = scmp.lt.s32.totalorder %s19, 1
      %s252 = scalar_select %p251, %s19, 1
      %s253 = smul.addr %s252, 32
      %s254 = smul.addr %s253, 4
      %s255 = scalar_lea.vmem %s1, %s254
      %p256 = scmp.lt.s32.totalorder %s20, 0
      %s257 = scalar_select %p256, %s20, 0
      %s258 = smul.addr %s257, 4
      %s259 = scalar_lea.vmem %s2, %s258
      %p260 = scmp.lt.s32.totalorder %s20, 0
      %s261 = scalar_select %p260, %s20, 0
      %s262 = smul.addr %s261, 4
      %s263 = scalar_lea.vmem %s3, %s262
      %p264 = scmp.lt.s32.totalorder %s19, 1
      %s265 = scalar_select %p264, %s19, 1
      %p266 = scmp.lt.s32.totalorder %s20, 0
      %s267 = scalar_select %p266, %s20, 0
      %s268 = smul.addr %s265, 32
      %s269 = sadd.s32 %s267, %s268
      %s270 = smul.addr %s269, 8
      %s271 = scalar_lea.vmem %s4, %s270
      %v273 = vld [vmem:[%s250] sm:$0xf]
      %v274 = vld [vmem:[%s250 + $0x4] sm:$0xf]
      %v275 = vld [vmem:[%s250 + $0x8] sm:$0xf]
      %v276 = vld [vmem:[%s250 + $0xc] sm:$0xf]
      %v277 = vld [vmem:[%s250 + $0x10] sm:$0xf]
      %v278 = vld [vmem:[%s250 + $0x14] sm:$0xf]
      %v279 = vld [vmem:[%s250 + $0x18] sm:$0xf]
      %v280 = vld [vmem:[%s250 + $0x1c] sm:$0xf]
      %v281 = vld [vmem:[%s250 + $0x20] sm:$0xf]
      %v282 = vld [vmem:[%s250 + $0x24] sm:$0xf]
      %v283 = vld [vmem:[%s250 + $0x28] sm:$0xf]
      %v284 = vld [vmem:[%s250 + $0x2c] sm:$0xf]
      %v285 = vld [vmem:[%s250 + $0x30] sm:$0xf]
      %v286 = vld [vmem:[%s250 + $0x34] sm:$0xf]
      %v287 = vld [vmem:[%s250 + $0x38] sm:$0xf]
      %v288 = vld [vmem:[%s250 + $0x3c] sm:$0xf]
      %v289 = vld [vmem:[%s250 + $0x40] sm:$0xf]
      %v290 = vld [vmem:[%s250 + $0x44] sm:$0xf]
      %v291 = vld [vmem:[%s250 + $0x48] sm:$0xf]
      %v292 = vld [vmem:[%s250 + $0x4c] sm:$0xf]
      %v293 = vld [vmem:[%s250 + $0x50] sm:$0xf]
      %v294 = vld [vmem:[%s250 + $0x54] sm:$0xf]
      %v295 = vld [vmem:[%s250 + $0x58] sm:$0xf]
      %v296 = vld [vmem:[%s250 + $0x5c] sm:$0xf]
      %v297 = vld [vmem:[%s250 + $0x60] sm:$0xf]
      %v298 = vld [vmem:[%s250 + $0x64] sm:$0xf]
      %v299 = vld [vmem:[%s250 + $0x68] sm:$0xf]
      %v300 = vld [vmem:[%s250 + $0x6c] sm:$0xf]
      %v301 = vld [vmem:[%s250 + $0x70] sm:$0xf]
      %v302 = vld [vmem:[%s250 + $0x74] sm:$0xf]
      %v303 = vld [vmem:[%s250 + $0x78] sm:$0xf]
      %v304 = vld [vmem:[%s250 + $0x7c] sm:$0xf]
      %v305 = vld [vmem:[%s259] sm:$0xf]
      %v306 = vld [vmem:[%s259 + $0x4] sm:$0xf]
      %v307 = vld [vmem:[%s259 + $0x8] sm:$0xf]
      %v308 = vld [vmem:[%s259 + $0xc] sm:$0xf]
      %v309 = vld [vmem:[%s259 + $0x10] sm:$0xf]
      %v310 = vld [vmem:[%s259 + $0x14] sm:$0xf]
      %v311 = vld [vmem:[%s259 + $0x18] sm:$0xf]
      %v312 = vld [vmem:[%s259 + $0x1c] sm:$0xf]
      %v313 = vld [vmem:[%s259 + $0x20] sm:$0xf]
      %v314 = vld [vmem:[%s259 + $0x24] sm:$0xf]
      %v315 = vld [vmem:[%s259 + $0x28] sm:$0xf]
      %v316 = vld [vmem:[%s259 + $0x2c] sm:$0xf]
      %v317 = vld [vmem:[%s259 + $0x30] sm:$0xf]
      %v318 = vld [vmem:[%s259 + $0x34] sm:$0xf]
      %v319 = vld [vmem:[%s259 + $0x38] sm:$0xf]
      %v320 = vld [vmem:[%s259 + $0x3c] sm:$0xf]
      %v353 = vunpack.c.l.b16 %v273
      %v354 = vunpack.c.l.b16 %v274
      %v355 = vunpack.c.l.b16 %v275
      %v356 = vunpack.c.l.b16 %v276
      %v357 = vunpack.c.l.b16 %v277
      %v358 = vunpack.c.l.b16 %v278
      %v359 = vunpack.c.l.b16 %v279
      %v360 = vunpack.c.l.b16 %v280
      %v361 = vunpack.c.l.b16 %v281
      %v362 = vunpack.c.l.b16 %v282
      %v363 = vunpack.c.l.b16 %v283
      %v364 = vunpack.c.l.b16 %v284
      %v365 = vunpack.c.l.b16 %v285
      %v366 = vunpack.c.l.b16 %v286
      %v367 = vunpack.c.l.b16 %v287
      %v368 = vunpack.c.l.b16 %v288
      %v369 = vunpack.c.l.b16 %v289
      %v370 = vunpack.c.l.b16 %v290
      %v371 = vunpack.c.l.b16 %v291
      %v372 = vunpack.c.l.b16 %v292
      %v373 = vunpack.c.l.b16 %v293
      %v374 = vunpack.c.l.b16 %v294
      %v375 = vunpack.c.l.b16 %v295
      %v376 = vunpack.c.l.b16 %v296
      %v377 = vunpack.c.l.b16 %v297
      %v378 = vunpack.c.l.b16 %v298
      %v379 = vunpack.c.l.b16 %v299
      %v380 = vunpack.c.l.b16 %v300
      %v381 = vunpack.c.l.b16 %v301
      %v382 = vunpack.c.l.b16 %v302
      %v383 = vunpack.c.l.b16 %v303
      %v384 = vunpack.c.l.b16 %v304
      %v385 = vpack.c.b16 %v354, %v353
      %v386 = vpack.c.b16 %v356, %v355
      %v387 = vpack.c.b16 %v358, %v357
      %v388 = vpack.c.b16 %v360, %v359
      %v389 = vpack.c.b16 %v362, %v361
      %v390 = vpack.c.b16 %v364, %v363
      %v391 = vpack.c.b16 %v366, %v365
      %v392 = vpack.c.b16 %v368, %v367
      %v393 = vpack.c.b16 %v370, %v369
      %v394 = vpack.c.b16 %v372, %v371
      %v395 = vpack.c.b16 %v374, %v373
      %v396 = vpack.c.b16 %v376, %v375
      %v397 = vpack.c.b16 %v378, %v377
      %v398 = vpack.c.b16 %v380, %v379
      %v399 = vpack.c.b16 %v382, %v381
      %v400 = vpack.c.b16 %v384, %v383
      %v433 = vunpack.c.l.b16 %v305
      %v434 = vunpack.c.l.b16 %v306
      %v435 = vunpack.c.l.b16 %v307
      %v436 = vunpack.c.l.b16 %v308
      %v437 = vunpack.c.l.b16 %v309
      %v438 = vunpack.c.l.b16 %v310
      %v439 = vunpack.c.l.b16 %v311
      %v440 = vunpack.c.l.b16 %v312
      %v441 = vunpack.c.l.b16 %v313
      %v442 = vunpack.c.l.b16 %v314
      %v443 = vunpack.c.l.b16 %v315
      %v444 = vunpack.c.l.b16 %v316
      %v445 = vunpack.c.l.b16 %v317
      %v446 = vunpack.c.l.b16 %v318
      %v447 = vunpack.c.l.b16 %v319
      %v448 = vunpack.c.l.b16 %v320
      %v449 = vpack.c.b16 %v434, %v433
      %v450 = vpack.c.b16 %v436, %v435
      %v451 = vpack.c.b16 %v438, %v437
      %v452 = vpack.c.b16 %v440, %v439
      %v453 = vpack.c.b16 %v442, %v441
      %v454 = vpack.c.b16 %v444, %v443
      %v455 = vpack.c.b16 %v446, %v445
      %v456 = vpack.c.b16 %v448, %v447
      %465 = vmatprep.subr.bf16.mxu0 0
      %466 = vmatpush1.bf16.msra.mxu0 %v456
      %467 = vmatprep.subr.bf16.mxu0 0
      %468 = vmatpush1.bf16.msra.mxu0 %v455
      %469 = vmatprep.subr.bf16.mxu0 0
      %470 = vmatpush1.bf16.msra.mxu0 %v454
      %471 = vmatprep.subr.bf16.mxu0 0
      %472 = vmatpush1.bf16.msra.mxu0 %v453
      %473 = vmatprep.subr.bf16.mxu0 0
      %474 = vmatpush1.bf16.msra.mxu0 %v452
      %475 = vmatprep.subr.bf16.mxu0 0
      %476 = vmatpush1.bf16.msra.mxu0 %v451
      %477 = vmatprep.subr.bf16.mxu0 0
      %478 = vmatpush1.bf16.msra.mxu0 %v450
      %479 = vmatprep.subr.bf16.mxu0 0
      %480 = vmatpush1.bf16.msra.mxu0 %v449
      %481 = vmatprep.subr.bf16.mxu0 0
      %482 = vmatpush2.bf16.msra.mxu0 0
      %483 = vmatprep.subr.bf16.mxu0 0
      %484 = vmatpush2.bf16.msra.mxu0 0
      %485 = vmatprep.subr.bf16.mxu0 0
      %486 = vmatpush2.bf16.msra.mxu0 0
      %487 = vmatprep.subr.bf16.mxu0 0
      %488 = vmatpush2.bf16.msra.mxu0 0
      %489 = vmatprep.subr.bf16.mxu0 0
      %490 = vmatpush2.bf16.msra.mxu0 0
      %491 = vmatprep.subr.bf16.mxu0 0
      %492 = vmatpush2.bf16.msra.mxu0 0
      %493 = vmatprep.subr.bf16.mxu0 0
      %494 = vmatpush2.bf16.msra.mxu0 0
      %495 = vmatprep.subr.bf16.mxu0 0
      %496 = vmatpush2.bf16.msra.mxu0 0
      %497 = vmatprep.mubr.bf16.mxu0 0
      %498 = vmatmul.mubr.bf16.gmra.mxu0 %v385
      %v499 = vpop.f32.mrf.mxu0
      %v500 = vadd.f32 0.0, %v499
      %v501 = vpop.f32.mrf.mxu0
      %v502 = vpop.f32.mrf.mxu0
      %v503 = vadd.f32 0.0, %v502
      %v504 = vpop.f32.mrf.mxu0
      %505 = vmatprep.mubr.bf16.mxu0 0
      %506 = vmatmul.mubr.bf16.gmra.mxu0 %v386
      %v507 = vpop.f32.mrf.mxu0
      %v508 = vadd.f32 0.0, %v507
      %v509 = vpop.f32.mrf.mxu0
      %v510 = vpop.f32.mrf.mxu0
      %v511 = vadd.f32 0.0, %v510
      %v512 = vpop.f32.mrf.mxu0
      %513 = vmatprep.mubr.bf16.mxu0 0
      %514 = vmatmul.mubr.bf16.gmra.mxu0 %v387
      %v515 = vpop.f32.mrf.mxu0
      %v516 = vadd.f32 0.0, %v515
      %v517 = vpop.f32.mrf.mxu0
      %v518 = vpop.f32.mrf.mxu0
      %v519 = vadd.f32 0.0, %v518
      %v520 = vpop.f32.mrf.mxu0
      %521 = vmatprep.mubr.bf16.mxu0 0
      %522 = vmatmul.mubr.bf16.gmra.mxu0 %v388
      %v523 = vpop.f32.mrf.mxu0
      %v524 = vadd.f32 0.0, %v523
      %v525 = vpop.f32.mrf.mxu0
      %v526 = vpop.f32.mrf.mxu0
      %v527 = vadd.f32 0.0, %v526
      %v528 = vpop.f32.mrf.mxu0
      %529 = vmatprep.mubr.bf16.mxu0 0
      %530 = vmatmul.mubr.bf16.gmra.mxu0 %v389
      %v531 = vpop.f32.mrf.mxu0
      %v532 = vadd.f32 0.0, %v531
      %v533 = vpop.f32.mrf.mxu0
      %v534 = vpop.f32.mrf.mxu0
      %v535 = vadd.f32 0.0, %v534
      %v536 = vpop.f32.mrf.mxu0
      %537 = vmatprep.mubr.bf16.mxu0 0
      %538 = vmatmul.mubr.bf16.gmra.mxu0 %v390
      %v539 = vpop.f32.mrf.mxu0
      %v540 = vadd.f32 0.0, %v539
      %v541 = vpop.f32.mrf.mxu0
      %v542 = vpop.f32.mrf.mxu0
      %v543 = vadd.f32 0.0, %v542
      %v544 = vpop.f32.mrf.mxu0
      %545 = vmatprep.mubr.bf16.mxu0 0
      %546 = vmatmul.mubr.bf16.gmra.mxu0 %v391
      %v547 = vpop.f32.mrf.mxu0
      %v548 = vadd.f32 0.0, %v547
      %v549 = vpop.f32.mrf.mxu0
      %v550 = vpop.f32.mrf.mxu0
      %v551 = vadd.f32 0.0, %v550
      %v552 = vpop.f32.mrf.mxu0
      %553 = vmatprep.mubr.bf16.mxu0 0
      %554 = vmatmul.mubr.bf16.gmra.mxu0 %v392
      %v555 = vpop.f32.mrf.mxu0
      %v556 = vadd.f32 0.0, %v555
      %v557 = vpop.f32.mrf.mxu0
      %v558 = vpop.f32.mrf.mxu0
      %v559 = vadd.f32 0.0, %v558
      %v560 = vpop.f32.mrf.mxu0
      %561 = vmatprep.mubr.bf16.mxu0 0
      %562 = vmatmul.mubr.bf16.gmra.mxu0 %v393
      %v563 = vpop.f32.mrf.mxu0
      %v564 = vadd.f32 0.0, %v563
      %v565 = vpop.f32.mrf.mxu0
      %v566 = vpop.f32.mrf.mxu0
      %v567 = vadd.f32 0.0, %v566
      %v568 = vpop.f32.mrf.mxu0
      %569 = vmatprep.mubr.bf16.mxu0 0
      %570 = vmatmul.mubr.bf16.gmra.mxu0 %v394
      %v571 = vpop.f32.mrf.mxu0
      %v572 = vadd.f32 0.0, %v571
      %v573 = vpop.f32.mrf.mxu0
      %v574 = vpop.f32.mrf.mxu0
      %v575 = vadd.f32 0.0, %v574
      %v576 = vpop.f32.mrf.mxu0
      %577 = vmatprep.mubr.bf16.mxu0 0
      %578 = vmatmul.mubr.bf16.gmra.mxu0 %v395
      %v579 = vpop.f32.mrf.mxu0
      %v580 = vadd.f32 0.0, %v579
      %v581 = vpop.f32.mrf.mxu0
      %v582 = vpop.f32.mrf.mxu0
      %v583 = vadd.f32 0.0, %v582
      %v584 = vpop.f32.mrf.mxu0
      %585 = vmatprep.mubr.bf16.mxu0 0
      %586 = vmatmul.mubr.bf16.gmra.mxu0 %v396
      %v587 = vpop.f32.mrf.mxu0
      %v588 = vadd.f32 0.0, %v587
      %v589 = vpop.f32.mrf.mxu0
      %v590 = vpop.f32.mrf.mxu0
      %v591 = vadd.f32 0.0, %v590
      %v592 = vpop.f32.mrf.mxu0
      %593 = vmatprep.mubr.bf16.mxu0 0
      %594 = vmatmul.mubr.bf16.gmra.mxu0 %v397
      %v595 = vpop.f32.mrf.mxu0
      %v596 = vadd.f32 0.0, %v595
      %v597 = vpop.f32.mrf.mxu0
      %v598 = vpop.f32.mrf.mxu0
      %v599 = vadd.f32 0.0, %v598
      %v600 = vpop.f32.mrf.mxu0
      %601 = vmatprep.mubr.bf16.mxu0 0
      %602 = vmatmul.mubr.bf16.gmra.mxu0 %v398
      %v603 = vpop.f32.mrf.mxu0
      %v604 = vadd.f32 0.0, %v603
      %v605 = vpop.f32.mrf.mxu0
      %v606 = vpop.f32.mrf.mxu0
      %v607 = vadd.f32 0.0, %v606
      %v608 = vpop.f32.mrf.mxu0
      %609 = vmatprep.mubr.bf16.mxu0 0
      %610 = vmatmul.mubr.bf16.gmra.mxu0 %v399
      %v611 = vpop.f32.mrf.mxu0
      %v612 = vadd.f32 0.0, %v611
      %v613 = vpop.f32.mrf.mxu0
      %v614 = vpop.f32.mrf.mxu0
      %v615 = vadd.f32 0.0, %v614
      %v616 = vpop.f32.mrf.mxu0
      %617 = vmatprep.mubr.bf16.mxu0 0
      %618 = vmatmul.mubr.bf16.gmra.mxu0 %v400
      %v619 = vpop.f32.mrf.mxu0
      %v620 = vadd.f32 0.0, %v619
      %v621 = vpop.f32.mrf.mxu0
      %v622 = vpop.f32.mrf.mxu0
      %v623 = vadd.f32 0.0, %v622
      %v624 = vpop.f32.mrf.mxu0
      %625 = vdwg.mxu0
      %v626 = vld [vmem:[%s255] sm:$0xf]
      %v627 = vld [vmem:[%s255 + $0x4] sm:$0xf]
      %v628 = vld [vmem:[%s255 + $0x8] sm:$0xf]
      %v629 = vld [vmem:[%s255 + $0xc] sm:$0xf]
      %v630 = vld [vmem:[%s255 + $0x10] sm:$0xf]
      %v631 = vld [vmem:[%s255 + $0x14] sm:$0xf]
      %v632 = vld [vmem:[%s255 + $0x18] sm:$0xf]
      %v633 = vld [vmem:[%s255 + $0x1c] sm:$0xf]
      %v634 = vld [vmem:[%s255 + $0x20] sm:$0xf]
      %v635 = vld [vmem:[%s255 + $0x24] sm:$0xf]
      %v636 = vld [vmem:[%s255 + $0x28] sm:$0xf]
      %v637 = vld [vmem:[%s255 + $0x2c] sm:$0xf]
      %v638 = vld [vmem:[%s255 + $0x30] sm:$0xf]
      %v639 = vld [vmem:[%s255 + $0x34] sm:$0xf]
      %v640 = vld [vmem:[%s255 + $0x38] sm:$0xf]
      %v641 = vld [vmem:[%s255 + $0x3c] sm:$0xf]
      %v642 = vld [vmem:[%s255 + $0x40] sm:$0xf]
      %v643 = vld [vmem:[%s255 + $0x44] sm:$0xf]
      %v644 = vld [vmem:[%s255 + $0x48] sm:$0xf]
      %v645 = vld [vmem:[%s255 + $0x4c] sm:$0xf]
      %v646 = vld [vmem:[%s255 + $0x50] sm:$0xf]
      %v647 = vld [vmem:[%s255 + $0x54] sm:$0xf]
      %v648 = vld [vmem:[%s255 + $0x58] sm:$0xf]
      %v649 = vld [vmem:[%s255 + $0x5c] sm:$0xf]
      %v650 = vld [vmem:[%s255 + $0x60] sm:$0xf]
      %v651 = vld [vmem:[%s255 + $0x64] sm:$0xf]
      %v652 = vld [vmem:[%s255 + $0x68] sm:$0xf]
      %v653 = vld [vmem:[%s255 + $0x6c] sm:$0xf]
      %v654 = vld [vmem:[%s255 + $0x70] sm:$0xf]
      %v655 = vld [vmem:[%s255 + $0x74] sm:$0xf]
      %v656 = vld [vmem:[%s255 + $0x78] sm:$0xf]
      %v657 = vld [vmem:[%s255 + $0x7c] sm:$0xf]
      %v658 = vld [vmem:[%s263] sm:$0xf]
      %v659 = vld [vmem:[%s263 + $0x4] sm:$0xf]
      %v660 = vld [vmem:[%s263 + $0x8] sm:$0xf]
      %v661 = vld [vmem:[%s263 + $0xc] sm:$0xf]
      %v662 = vld [vmem:[%s263 + $0x10] sm:$0xf]
      %v663 = vld [vmem:[%s263 + $0x14] sm:$0xf]
      %v664 = vld [vmem:[%s263 + $0x18] sm:$0xf]
      %v665 = vld [vmem:[%s263 + $0x1c] sm:$0xf]
      %v666 = vld [vmem:[%s263 + $0x20] sm:$0xf]
      %v667 = vld [vmem:[%s263 + $0x24] sm:$0xf]
      %v668 = vld [vmem:[%s263 + $0x28] sm:$0xf]
      %v669 = vld [vmem:[%s263 + $0x2c] sm:$0xf]
      %v670 = vld [vmem:[%s263 + $0x30] sm:$0xf]
      %v671 = vld [vmem:[%s263 + $0x34] sm:$0xf]
      %v672 = vld [vmem:[%s263 + $0x38] sm:$0xf]
      %v673 = vld [vmem:[%s263 + $0x3c] sm:$0xf]
      %v706 = vunpack.c.l.b16 %v626
      %v707 = vunpack.c.l.b16 %v627
      %v708 = vunpack.c.l.b16 %v628
      %v709 = vunpack.c.l.b16 %v629
      %v710 = vunpack.c.l.b16 %v630
      %v711 = vunpack.c.l.b16 %v631
      %v712 = vunpack.c.l.b16 %v632
      %v713 = vunpack.c.l.b16 %v633
      %v714 = vunpack.c.l.b16 %v634
      %v715 = vunpack.c.l.b16 %v635
      %v716 = vunpack.c.l.b16 %v636
      %v717 = vunpack.c.l.b16 %v637
      %v718 = vunpack.c.l.b16 %v638
      %v719 = vunpack.c.l.b16 %v639
      %v720 = vunpack.c.l.b16 %v640
      %v721 = vunpack.c.l.b16 %v641
      %v722 = vunpack.c.l.b16 %v642
      %v723 = vunpack.c.l.b16 %v643
      %v724 = vunpack.c.l.b16 %v644
      %v725 = vunpack.c.l.b16 %v645
      %v726 = vunpack.c.l.b16 %v646
      %v727 = vunpack.c.l.b16 %v647
      %v728 = vunpack.c.l.b16 %v648
      %v729 = vunpack.c.l.b16 %v649
      %v730 = vunpack.c.l.b16 %v650
      %v731 = vunpack.c.l.b16 %v651
      %v732 = vunpack.c.l.b16 %v652
      %v733 = vunpack.c.l.b16 %v653
      %v734 = vunpack.c.l.b16 %v654
      %v735 = vunpack.c.l.b16 %v655
      %v736 = vunpack.c.l.b16 %v656
      %v737 = vunpack.c.l.b16 %v657
      %v738 = vpack.c.b16 %v707, %v706
      %v739 = vpack.c.b16 %v709, %v708
      %v740 = vpack.c.b16 %v711, %v710
      %v741 = vpack.c.b16 %v713, %v712
      %v742 = vpack.c.b16 %v715, %v714
      %v743 = vpack.c.b16 %v717, %v716
      %v744 = vpack.c.b16 %v719, %v718
      %v745 = vpack.c.b16 %v721, %v720
      %v746 = vpack.c.b16 %v723, %v722
      %v747 = vpack.c.b16 %v725, %v724
      %v748 = vpack.c.b16 %v727, %v726
      %v749 = vpack.c.b16 %v729, %v728
      %v750 = vpack.c.b16 %v731, %v730
      %v751 = vpack.c.b16 %v733, %v732
      %v752 = vpack.c.b16 %v735, %v734
      %v753 = vpack.c.b16 %v737, %v736
      %v786 = vunpack.c.l.b16 %v658
      %v787 = vunpack.c.l.b16 %v659
      %v788 = vunpack.c.l.b16 %v660
      %v789 = vunpack.c.l.b16 %v661
      %v790 = vunpack.c.l.b16 %v662
      %v791 = vunpack.c.l.b16 %v663
      %v792 = vunpack.c.l.b16 %v664
      %v793 = vunpack.c.l.b16 %v665
      %v794 = vunpack.c.l.b16 %v666
      %v795 = vunpack.c.l.b16 %v667
      %v796 = vunpack.c.l.b16 %v668
      %v797 = vunpack.c.l.b16 %v669
      %v798 = vunpack.c.l.b16 %v670
      %v799 = vunpack.c.l.b16 %v671
      %v800 = vunpack.c.l.b16 %v672
      %v801 = vunpack.c.l.b16 %v673
      %v802 = vpack.c.b16 %v787, %v786
      %v803 = vpack.c.b16 %v789, %v788
      %v804 = vpack.c.b16 %v791, %v790
      %v805 = vpack.c.b16 %v793, %v792
      %v806 = vpack.c.b16 %v795, %v794
      %v807 = vpack.c.b16 %v797, %v796
      %v808 = vpack.c.b16 %v799, %v798
      %v809 = vpack.c.b16 %v801, %v800
      %818 = vmatprep.subr.bf16.mxu0 0
      %819 = vmatpush1.bf16.msra.mxu0 %v809
      %820 = vmatprep.subr.bf16.mxu0 0
      %821 = vmatpush1.bf16.msra.mxu0 %v808
      %822 = vmatprep.subr.bf16.mxu0 0
      %823 = vmatpush1.bf16.msra.mxu0 %v807
      %824 = vmatprep.subr.bf16.mxu0 0
      %825 = vmatpush1.bf16.msra.mxu0 %v806
      %826 = vmatprep.subr.bf16.mxu0 0
      %827 = vmatpush1.bf16.msra.mxu0 %v805
      %828 = vmatprep.subr.bf16.mxu0 0
      %829 = vmatpush1.bf16.msra.mxu0 %v804
      %830 = vmatprep.subr.bf16.mxu0 0
      %831 = vmatpush1.bf16.msra.mxu0 %v803
      %832 = vmatprep.subr.bf16.mxu0 0
      %833 = vmatpush1.bf16.msra.mxu0 %v802
      %834 = vmatprep.subr.bf16.mxu0 0
      %835 = vmatpush2.bf16.msra.mxu0 0
      %836 = vmatprep.subr.bf16.mxu0 0
      %837 = vmatpush2.bf16.msra.mxu0 0
      %838 = vmatprep.subr.bf16.mxu0 0
      %839 = vmatpush2.bf16.msra.mxu0 0
      %840 = vmatprep.subr.bf16.mxu0 0
      %841 = vmatpush2.bf16.msra.mxu0 0
      %842 = vmatprep.subr.bf16.mxu0 0
      %843 = vmatpush2.bf16.msra.mxu0 0
      %844 = vmatprep.subr.bf16.mxu0 0
      %845 = vmatpush2.bf16.msra.mxu0 0
      %846 = vmatprep.subr.bf16.mxu0 0
      %847 = vmatpush2.bf16.msra.mxu0 0
      %848 = vmatprep.subr.bf16.mxu0 0
      %849 = vmatpush2.bf16.msra.mxu0 0
      %850 = vmatprep.mubr.bf16.mxu0 0
      %851 = vmatmul.mubr.bf16.gmra.mxu0 %v738
      %v852 = vpop.f32.mrf.mxu0
      %v853 = vadd.f32 0.0, %v852
      %v854 = vpop.f32.mrf.mxu0
      %v855 = vpop.f32.mrf.mxu0
      %v856 = vadd.f32 0.0, %v855
      %v857 = vpop.f32.mrf.mxu0
      %858 = vmatprep.mubr.bf16.mxu0 0
      %859 = vmatmul.mubr.bf16.gmra.mxu0 %v739
      %v860 = vpop.f32.mrf.mxu0
      %v861 = vadd.f32 0.0, %v860
      %v862 = vpop.f32.mrf.mxu0
      %v863 = vpop.f32.mrf.mxu0
      %v864 = vadd.f32 0.0, %v863
      %v865 = vpop.f32.mrf.mxu0
      %866 = vmatprep.mubr.bf16.mxu0 0
      %867 = vmatmul.mubr.bf16.gmra.mxu0 %v740
      %v868 = vpop.f32.mrf.mxu0
      %v869 = vadd.f32 0.0, %v868
      %v870 = vpop.f32.mrf.mxu0
      %v871 = vpop.f32.mrf.mxu0
      %v872 = vadd.f32 0.0, %v871
      %v873 = vpop.f32.mrf.mxu0
      %874 = vmatprep.mubr.bf16.mxu0 0
      %875 = vmatmul.mubr.bf16.gmra.mxu0 %v741
      %v876 = vpop.f32.mrf.mxu0
      %v877 = vadd.f32 0.0, %v876
      %v878 = vpop.f32.mrf.mxu0
      %v879 = vpop.f32.mrf.mxu0
      %v880 = vadd.f32 0.0, %v879
      %v881 = vpop.f32.mrf.mxu0
      %882 = vmatprep.mubr.bf16.mxu0 0
      %883 = vmatmul.mubr.bf16.gmra.mxu0 %v742
      %v884 = vpop.f32.mrf.mxu0
      %v885 = vadd.f32 0.0, %v884
      %v886 = vpop.f32.mrf.mxu0
      %v887 = vpop.f32.mrf.mxu0
      %v888 = vadd.f32 0.0, %v887
      %v889 = vpop.f32.mrf.mxu0
      %890 = vmatprep.mubr.bf16.mxu0 0
      %891 = vmatmul.mubr.bf16.gmra.mxu0 %v743
      %v892 = vpop.f32.mrf.mxu0
      %v893 = vadd.f32 0.0, %v892
      %v894 = vpop.f32.mrf.mxu0
      %v895 = vpop.f32.mrf.mxu0
      %v896 = vadd.f32 0.0, %v895
      %v897 = vpop.f32.mrf.mxu0
      %898 = vmatprep.mubr.bf16.mxu0 0
      %899 = vmatmul.mubr.bf16.gmra.mxu0 %v744
      %v900 = vpop.f32.mrf.mxu0
      %v901 = vadd.f32 0.0, %v900
      %v902 = vpop.f32.mrf.mxu0
      %v903 = vpop.f32.mrf.mxu0
      %v904 = vadd.f32 0.0, %v903
      %v905 = vpop.f32.mrf.mxu0
      %906 = vmatprep.mubr.bf16.mxu0 0
      %907 = vmatmul.mubr.bf16.gmra.mxu0 %v745
      %v908 = vpop.f32.mrf.mxu0
      %v909 = vadd.f32 0.0, %v908
      %v910 = vpop.f32.mrf.mxu0
      %v911 = vpop.f32.mrf.mxu0
      %v912 = vadd.f32 0.0, %v911
      %v913 = vpop.f32.mrf.mxu0
      %914 = vmatprep.mubr.bf16.mxu0 0
      %915 = vmatmul.mubr.bf16.gmra.mxu0 %v746
      %v916 = vpop.f32.mrf.mxu0
      %v917 = vadd.f32 0.0, %v916
      %v918 = vpop.f32.mrf.mxu0
      %v919 = vpop.f32.mrf.mxu0
      %v920 = vadd.f32 0.0, %v919
      %v921 = vpop.f32.mrf.mxu0
      %922 = vmatprep.mubr.bf16.mxu0 0
      %923 = vmatmul.mubr.bf16.gmra.mxu0 %v747
      %v924 = vpop.f32.mrf.mxu0
      %v925 = vadd.f32 0.0, %v924
      %v926 = vpop.f32.mrf.mxu0
      %v927 = vpop.f32.mrf.mxu0
      %v928 = vadd.f32 0.0, %v927
      %v929 = vpop.f32.mrf.mxu0
      %930 = vmatprep.mubr.bf16.mxu0 0
      %931 = vmatmul.mubr.bf16.gmra.mxu0 %v748
      %v932 = vpop.f32.mrf.mxu0
      %v933 = vadd.f32 0.0, %v932
      %v934 = vpop.f32.mrf.mxu0
      %v935 = vpop.f32.mrf.mxu0
      %v936 = vadd.f32 0.0, %v935
      %v937 = vpop.f32.mrf.mxu0
      %938 = vmatprep.mubr.bf16.mxu0 0
      %939 = vmatmul.mubr.bf16.gmra.mxu0 %v749
      %v940 = vpop.f32.mrf.mxu0
      %v941 = vadd.f32 0.0, %v940
      %v942 = vpop.f32.mrf.mxu0
      %v943 = vpop.f32.mrf.mxu0
      %v944 = vadd.f32 0.0, %v943
      %v945 = vpop.f32.mrf.mxu0
      %946 = vmatprep.mubr.bf16.mxu0 0
      %947 = vmatmul.mubr.bf16.gmra.mxu0 %v750
      %v948 = vpop.f32.mrf.mxu0
      %v949 = vadd.f32 0.0, %v948
      %v950 = vpop.f32.mrf.mxu0
      %v951 = vpop.f32.mrf.mxu0
      %v952 = vadd.f32 0.0, %v951
      %v953 = vpop.f32.mrf.mxu0
      %954 = vmatprep.mubr.bf16.mxu0 0
      %955 = vmatmul.mubr.bf16.gmra.mxu0 %v751
      %v956 = vpop.f32.mrf.mxu0
      %v957 = vadd.f32 0.0, %v956
      %v958 = vpop.f32.mrf.mxu0
      %v959 = vpop.f32.mrf.mxu0
      %v960 = vadd.f32 0.0, %v959
      %v961 = vpop.f32.mrf.mxu0
      %962 = vmatprep.mubr.bf16.mxu0 0
      %963 = vmatmul.mubr.bf16.gmra.mxu0 %v752
      %v964 = vpop.f32.mrf.mxu0
      %v965 = vadd.f32 0.0, %v964
      %v966 = vpop.f32.mrf.mxu0
      %v967 = vpop.f32.mrf.mxu0
      %v968 = vadd.f32 0.0, %v967
      %v969 = vpop.f32.mrf.mxu0
      %970 = vmatprep.mubr.bf16.mxu0 0
      %971 = vmatmul.mubr.bf16.gmra.mxu0 %v753
      %v972 = vpop.f32.mrf.mxu0
      %v973 = vadd.f32 0.0, %v972
      %v974 = vpop.f32.mrf.mxu0
      %v975 = vpop.f32.mrf.mxu0
      %v976 = vadd.f32 0.0, %v975
      %v977 = vpop.f32.mrf.mxu0
      %978 = vdwg.mxu0
      %v979 = vadd.f32 %v500, %v503
      %v980 = vadd.f32 %v979, %v508
      %v981 = vadd.f32 %v980, %v511
      %v982 = vadd.f32 %v981, %v516
      %v983 = vadd.f32 %v982, %v519
      %v984 = vadd.f32 %v983, %v524
      %v985 = vadd.f32 %v984, %v527
      %v986 = vadd.f32 %v985, %v532
      %v987 = vadd.f32 %v986, %v535
      %v988 = vadd.f32 %v987, %v540
      %v989 = vadd.f32 %v988, %v543
      %v990 = vadd.f32 %v989, %v548
      %v991 = vadd.f32 %v990, %v551
      %v992 = vadd.f32 %v991, %v556
      %v993 = vadd.f32 %v992, %v559
      %v994 = vadd.f32 %v993, %v564
      %v995 = vadd.f32 %v994, %v567
      %v996 = vadd.f32 %v995, %v572
      %v997 = vadd.f32 %v996, %v575
      %v998 = vadd.f32 %v997, %v580
      %v999 = vadd.f32 %v998, %v583
      %v1000 = vadd.f32 %v999, %v588
      %v1001 = vadd.f32 %v1000, %v591
      %v1002 = vadd.f32 %v1001, %v596
      %v1003 = vadd.f32 %v1002, %v599
      %v1004 = vadd.f32 %v1003, %v604
      %v1005 = vadd.f32 %v1004, %v607
      %v1006 = vadd.f32 %v1005, %v612
      %v1007 = vadd.f32 %v1006, %v615
      %v1008 = vadd.f32 %v1007, %v620
      %v1009 = vadd.f32 %v1008, %v623
      %v1010 = vrot.slane %v1009, 4
      %v1011 = vadd.f32 %v1009, %v1010
      %v1012 = vrot.slane %v1011, 2
      %v1013 = vadd.f32 %v1011, %v1012
      %v1014 = vrot.slane %v1013, 1
      %v1015 = vadd.f32 %v1013, %v1014
      %v1016 = vrcp.pop 256.0
      %v1017 = vmul.f32 %v1015, %v1016
      %v1018 = vsub.f32 %v500, %v1017
      %v1019 = vsub.f32 %v503, %v1017
      %v1020 = vsub.f32 %v508, %v1017
      %v1021 = vsub.f32 %v511, %v1017
      %v1022 = vsub.f32 %v516, %v1017
      %v1023 = vsub.f32 %v519, %v1017
      %v1024 = vsub.f32 %v524, %v1017
      %v1025 = vsub.f32 %v527, %v1017
      %v1026 = vsub.f32 %v532, %v1017
      %v1027 = vsub.f32 %v535, %v1017
      %v1028 = vsub.f32 %v540, %v1017
      %v1029 = vsub.f32 %v543, %v1017
      %v1030 = vsub.f32 %v548, %v1017
      %v1031 = vsub.f32 %v551, %v1017
      %v1032 = vsub.f32 %v556, %v1017
      %v1033 = vsub.f32 %v559, %v1017
      %v1034 = vsub.f32 %v564, %v1017
      %v1035 = vsub.f32 %v567, %v1017
      %v1036 = vsub.f32 %v572, %v1017
      %v1037 = vsub.f32 %v575, %v1017
      %v1038 = vsub.f32 %v580, %v1017
      %v1039 = vsub.f32 %v583, %v1017
      %v1040 = vsub.f32 %v588, %v1017
      %v1041 = vsub.f32 %v591, %v1017
      %v1042 = vsub.f32 %v596, %v1017
      %v1043 = vsub.f32 %v599, %v1017
      %v1044 = vsub.f32 %v604, %v1017
      %v1045 = vsub.f32 %v607, %v1017
      %v1046 = vsub.f32 %v612, %v1017
      %v1047 = vsub.f32 %v615, %v1017
      %v1048 = vsub.f32 %v620, %v1017
      %v1049 = vsub.f32 %v623, %v1017
      %v1050 = vmul.f32 %v1018, %v1018
      %v1051 = vmul.f32 %v1019, %v1019
      %v1052 = vmul.f32 %v1020, %v1020
      %v1053 = vmul.f32 %v1021, %v1021
      %v1054 = vmul.f32 %v1022, %v1022
      %v1055 = vmul.f32 %v1023, %v1023
      %v1056 = vmul.f32 %v1024, %v1024
      %v1057 = vmul.f32 %v1025, %v1025
      %v1058 = vmul.f32 %v1026, %v1026
      %v1059 = vmul.f32 %v1027, %v1027
      %v1060 = vmul.f32 %v1028, %v1028
      %v1061 = vmul.f32 %v1029, %v1029
      %v1062 = vmul.f32 %v1030, %v1030
      %v1063 = vmul.f32 %v1031, %v1031
      %v1064 = vmul.f32 %v1032, %v1032
      %v1065 = vmul.f32 %v1033, %v1033
      %v1066 = vmul.f32 %v1034, %v1034
      %v1067 = vmul.f32 %v1035, %v1035
      %v1068 = vmul.f32 %v1036, %v1036
      %v1069 = vmul.f32 %v1037, %v1037
      %v1070 = vmul.f32 %v1038, %v1038
      %v1071 = vmul.f32 %v1039, %v1039
      %v1072 = vmul.f32 %v1040, %v1040
      %v1073 = vmul.f32 %v1041, %v1041
      %v1074 = vmul.f32 %v1042, %v1042
      %v1075 = vmul.f32 %v1043, %v1043
      %v1076 = vmul.f32 %v1044, %v1044
      %v1077 = vmul.f32 %v1045, %v1045
      %v1078 = vmul.f32 %v1046, %v1046
      %v1079 = vmul.f32 %v1047, %v1047
      %v1080 = vmul.f32 %v1048, %v1048
      %v1081 = vmul.f32 %v1049, %v1049
      %v1082 = vadd.f32 %v1050, %v1051
      %v1083 = vadd.f32 %v1082, %v1052
      %v1084 = vadd.f32 %v1083, %v1053
      %v1085 = vadd.f32 %v1084, %v1054
      %v1086 = vadd.f32 %v1085, %v1055
      %v1087 = vadd.f32 %v1086, %v1056
      %v1088 = vadd.f32 %v1087, %v1057
      %v1089 = vadd.f32 %v1088, %v1058
      %v1090 = vadd.f32 %v1089, %v1059
      %v1091 = vadd.f32 %v1090, %v1060
      %v1092 = vadd.f32 %v1091, %v1061
      %v1093 = vadd.f32 %v1092, %v1062
      %v1094 = vadd.f32 %v1093, %v1063
      %v1095 = vadd.f32 %v1094, %v1064
      %v1096 = vadd.f32 %v1095, %v1065
      %v1097 = vadd.f32 %v1096, %v1066
      %v1098 = vadd.f32 %v1097, %v1067
      %v1099 = vadd.f32 %v1098, %v1068
      %v1100 = vadd.f32 %v1099, %v1069
      %v1101 = vadd.f32 %v1100, %v1070
      %v1102 = vadd.f32 %v1101, %v1071
      %v1103 = vadd.f32 %v1102, %v1072
      %v1104 = vadd.f32 %v1103, %v1073
      %v1105 = vadd.f32 %v1104, %v1074
      %v1106 = vadd.f32 %v1105, %v1075
      %v1107 = vadd.f32 %v1106, %v1076
      %v1108 = vadd.f32 %v1107, %v1077
      %v1109 = vadd.f32 %v1108, %v1078
      %v1110 = vadd.f32 %v1109, %v1079
      %v1111 = vadd.f32 %v1110, %v1080
      %v1112 = vadd.f32 %v1111, %v1081
      %v1113 = vrot.slane %v1112, 4
      %v1114 = vadd.f32 %v1112, %v1113
      %v1115 = vrot.slane %v1114, 2
      %v1116 = vadd.f32 %v1114, %v1115
      %v1117 = vrot.slane %v1116, 1
      %v1118 = vadd.f32 %v1116, %v1117
      %v1119 = vmul.f32 %v1118, %v1016
      %v1120 = vadd.f32 %v1119, 1e-05
      %v1121 = vrsqrt.pop %v1120
      %v1122 = vmul.f32 %v1018, %v1121
      %v1123 = vmul.f32 %v1019, %v1121
      %v1124 = vmul.f32 %v1020, %v1121
      %v1125 = vmul.f32 %v1021, %v1121
      %v1126 = vmul.f32 %v1022, %v1121
      %v1127 = vmul.f32 %v1023, %v1121
      %v1128 = vmul.f32 %v1024, %v1121
      %v1129 = vmul.f32 %v1025, %v1121
      %v1130 = vmul.f32 %v1026, %v1121
      %v1131 = vmul.f32 %v1027, %v1121
      %v1132 = vmul.f32 %v1028, %v1121
      %v1133 = vmul.f32 %v1029, %v1121
      %v1134 = vmul.f32 %v1030, %v1121
      %v1135 = vmul.f32 %v1031, %v1121
      %v1136 = vmul.f32 %v1032, %v1121
      %v1137 = vmul.f32 %v1033, %v1121
      %v1138 = vmul.f32 %v1034, %v1121
      %v1139 = vmul.f32 %v1035, %v1121
      %v1140 = vmul.f32 %v1036, %v1121
      %v1141 = vmul.f32 %v1037, %v1121
      %v1142 = vmul.f32 %v1038, %v1121
      %v1143 = vmul.f32 %v1039, %v1121
      %v1144 = vmul.f32 %v1040, %v1121
      %v1145 = vmul.f32 %v1041, %v1121
      %v1146 = vmul.f32 %v1042, %v1121
      %v1147 = vmul.f32 %v1043, %v1121
      %v1148 = vmul.f32 %v1044, %v1121
      %v1149 = vmul.f32 %v1045, %v1121
      %v1150 = vmul.f32 %v1046, %v1121
      %v1151 = vmul.f32 %v1047, %v1121
      %v1152 = vmul.f32 %v1048, %v1121
      %v1153 = vmul.f32 %v1049, %v1121
      %v1154 = vadd.f32 %v853, %v856
      %v1155 = vadd.f32 %v1154, %v861
      %v1156 = vadd.f32 %v1155, %v864
      %v1157 = vadd.f32 %v1156, %v869
      %v1158 = vadd.f32 %v1157, %v872
      %v1159 = vadd.f32 %v1158, %v877
      %v1160 = vadd.f32 %v1159, %v880
      %v1161 = vadd.f32 %v1160, %v885
      %v1162 = vadd.f32 %v1161, %v888
      %v1163 = vadd.f32 %v1162, %v893
      %v1164 = vadd.f32 %v1163, %v896
      %v1165 = vadd.f32 %v1164, %v901
      %v1166 = vadd.f32 %v1165, %v904
      %v1167 = vadd.f32 %v1166, %v909
      %v1168 = vadd.f32 %v1167, %v912
      %v1169 = vadd.f32 %v1168, %v917
      %v1170 = vadd.f32 %v1169, %v920
      %v1171 = vadd.f32 %v1170, %v925
      %v1172 = vadd.f32 %v1171, %v928
      %v1173 = vadd.f32 %v1172, %v933
      %v1174 = vadd.f32 %v1173, %v936
      %v1175 = vadd.f32 %v1174, %v941
      %v1176 = vadd.f32 %v1175, %v944
      %v1177 = vadd.f32 %v1176, %v949
      %v1178 = vadd.f32 %v1177, %v952
      %v1179 = vadd.f32 %v1178, %v957
      %v1180 = vadd.f32 %v1179, %v960
      %v1181 = vadd.f32 %v1180, %v965
      %v1182 = vadd.f32 %v1181, %v968
      %v1183 = vadd.f32 %v1182, %v973
      %v1184 = vadd.f32 %v1183, %v976
      %v1185 = vrot.slane %v1184, 4
      %v1186 = vadd.f32 %v1184, %v1185
      %v1187 = vrot.slane %v1186, 2
      %v1188 = vadd.f32 %v1186, %v1187
      %v1189 = vrot.slane %v1188, 1
      %v1190 = vadd.f32 %v1188, %v1189
      %v1191 = vmul.f32 %v1190, %v1016
      %v1192 = vsub.f32 %v853, %v1191
      %v1193 = vsub.f32 %v856, %v1191
      %v1194 = vsub.f32 %v861, %v1191
      %v1195 = vsub.f32 %v864, %v1191
      %v1196 = vsub.f32 %v869, %v1191
      %v1197 = vsub.f32 %v872, %v1191
      %v1198 = vsub.f32 %v877, %v1191
      %v1199 = vsub.f32 %v880, %v1191
      %v1200 = vsub.f32 %v885, %v1191
      %v1201 = vsub.f32 %v888, %v1191
      %v1202 = vsub.f32 %v893, %v1191
      %v1203 = vsub.f32 %v896, %v1191
      %v1204 = vsub.f32 %v901, %v1191
      %v1205 = vsub.f32 %v904, %v1191
      %v1206 = vsub.f32 %v909, %v1191
      %v1207 = vsub.f32 %v912, %v1191
      %v1208 = vsub.f32 %v917, %v1191
      %v1209 = vsub.f32 %v920, %v1191
      %v1210 = vsub.f32 %v925, %v1191
      %v1211 = vsub.f32 %v928, %v1191
      %v1212 = vsub.f32 %v933, %v1191
      %v1213 = vsub.f32 %v936, %v1191
      %v1214 = vsub.f32 %v941, %v1191
      %v1215 = vsub.f32 %v944, %v1191
      %v1216 = vsub.f32 %v949, %v1191
      %v1217 = vsub.f32 %v952, %v1191
      %v1218 = vsub.f32 %v957, %v1191
      %v1219 = vsub.f32 %v960, %v1191
      %v1220 = vsub.f32 %v965, %v1191
      %v1221 = vsub.f32 %v968, %v1191
      %v1222 = vsub.f32 %v973, %v1191
      %v1223 = vsub.f32 %v976, %v1191
      %v1224 = vmul.f32 %v1192, %v1192
      %v1225 = vmul.f32 %v1193, %v1193
      %v1226 = vmul.f32 %v1194, %v1194
      %v1227 = vmul.f32 %v1195, %v1195
      %v1228 = vmul.f32 %v1196, %v1196
      %v1229 = vmul.f32 %v1197, %v1197
      %v1230 = vmul.f32 %v1198, %v1198
      %v1231 = vmul.f32 %v1199, %v1199
      %v1232 = vmul.f32 %v1200, %v1200
      %v1233 = vmul.f32 %v1201, %v1201
      %v1234 = vmul.f32 %v1202, %v1202
      %v1235 = vmul.f32 %v1203, %v1203
      %v1236 = vmul.f32 %v1204, %v1204
      %v1237 = vmul.f32 %v1205, %v1205
      %v1238 = vmul.f32 %v1206, %v1206
      %v1239 = vmul.f32 %v1207, %v1207
      %v1240 = vmul.f32 %v1208, %v1208
      %v1241 = vmul.f32 %v1209, %v1209
      %v1242 = vmul.f32 %v1210, %v1210
      %v1243 = vmul.f32 %v1211, %v1211
      %v1244 = vmul.f32 %v1212, %v1212
      %v1245 = vmul.f32 %v1213, %v1213
      %v1246 = vmul.f32 %v1214, %v1214
      %v1247 = vmul.f32 %v1215, %v1215
      %v1248 = vmul.f32 %v1216, %v1216
      %v1249 = vmul.f32 %v1217, %v1217
      %v1250 = vmul.f32 %v1218, %v1218
      %v1251 = vmul.f32 %v1219, %v1219
      %v1252 = vmul.f32 %v1220, %v1220
      %v1253 = vmul.f32 %v1221, %v1221
      %v1254 = vmul.f32 %v1222, %v1222
      %v1255 = vmul.f32 %v1223, %v1223
      %v1256 = vadd.f32 %v1224, %v1225
      %v1257 = vadd.f32 %v1256, %v1226
      %v1258 = vadd.f32 %v1257, %v1227
      %v1259 = vadd.f32 %v1258, %v1228
      %v1260 = vadd.f32 %v1259, %v1229
      %v1261 = vadd.f32 %v1260, %v1230
      %v1262 = vadd.f32 %v1261, %v1231
      %v1263 = vadd.f32 %v1262, %v1232
      %v1264 = vadd.f32 %v1263, %v1233
      %v1265 = vadd.f32 %v1264, %v1234
      %v1266 = vadd.f32 %v1265, %v1235
      %v1267 = vadd.f32 %v1266, %v1236
      %v1268 = vadd.f32 %v1267, %v1237
      %v1269 = vadd.f32 %v1268, %v1238
      %v1270 = vadd.f32 %v1269, %v1239
      %v1271 = vadd.f32 %v1270, %v1240
      %v1272 = vadd.f32 %v1271, %v1241
      %v1273 = vadd.f32 %v1272, %v1242
      %v1274 = vadd.f32 %v1273, %v1243
      %v1275 = vadd.f32 %v1274, %v1244
      %v1276 = vadd.f32 %v1275, %v1245
      %v1277 = vadd.f32 %v1276, %v1246
      %v1278 = vadd.f32 %v1277, %v1247
      %v1279 = vadd.f32 %v1278, %v1248
      %v1280 = vadd.f32 %v1279, %v1249
      %v1281 = vadd.f32 %v1280, %v1250
      %v1282 = vadd.f32 %v1281, %v1251
      %v1283 = vadd.f32 %v1282, %v1252
      %v1284 = vadd.f32 %v1283, %v1253
      %v1285 = vadd.f32 %v1284, %v1254
      %v1286 = vadd.f32 %v1285, %v1255
      %v1287 = vrot.slane %v1286, 4
      %v1288 = vadd.f32 %v1286, %v1287
      %v1289 = vrot.slane %v1288, 2
      %v1290 = vadd.f32 %v1288, %v1289
      %v1291 = vrot.slane %v1290, 1
      %v1292 = vadd.f32 %v1290, %v1291
      %v1293 = vmul.f32 %v1292, %v1016
      %v1294 = vadd.f32 %v1293, 1e-05
      %v1295 = vrsqrt.pop %v1294
      %v1296 = vmul.f32 %v1192, %v1295
      %v1297 = vmul.f32 %v1193, %v1295
      %v1298 = vmul.f32 %v1194, %v1295
      %v1299 = vmul.f32 %v1195, %v1295
      %v1300 = vmul.f32 %v1196, %v1295
      %v1301 = vmul.f32 %v1197, %v1295
      %v1302 = vmul.f32 %v1198, %v1295
      %v1303 = vmul.f32 %v1199, %v1295
      %v1304 = vmul.f32 %v1200, %v1295
      %v1305 = vmul.f32 %v1201, %v1295
      %v1306 = vmul.f32 %v1202, %v1295
      %v1307 = vmul.f32 %v1203, %v1295
      %v1308 = vmul.f32 %v1204, %v1295
      %v1309 = vmul.f32 %v1205, %v1295
      %v1310 = vmul.f32 %v1206, %v1295
      %v1311 = vmul.f32 %v1207, %v1295
      %v1312 = vmul.f32 %v1208, %v1295
      %v1313 = vmul.f32 %v1209, %v1295
      %v1314 = vmul.f32 %v1210, %v1295
      %v1315 = vmul.f32 %v1211, %v1295
      %v1316 = vmul.f32 %v1212, %v1295
      %v1317 = vmul.f32 %v1213, %v1295
      %v1318 = vmul.f32 %v1214, %v1295
      %v1319 = vmul.f32 %v1215, %v1295
      %v1320 = vmul.f32 %v1216, %v1295
      %v1321 = vmul.f32 %v1217, %v1295
      %v1322 = vmul.f32 %v1218, %v1295
      %v1323 = vmul.f32 %v1219, %v1295
      %v1324 = vmul.f32 %v1220, %v1295
      %v1325 = vmul.f32 %v1221, %v1295
      %v1326 = vmul.f32 %v1222, %v1295
      %v1327 = vmul.f32 %v1223, %v1295
      %v1328 = vadd.f32 %v1122, %v1296
      %v1329 = vadd.f32 %v1123, %v1297
      %v1330 = vadd.f32 %v1124, %v1298
      %v1331 = vadd.f32 %v1125, %v1299
      %v1332 = vadd.f32 %v1126, %v1300
      %v1333 = vadd.f32 %v1127, %v1301
      %v1334 = vadd.f32 %v1128, %v1302
      %v1335 = vadd.f32 %v1129, %v1303
      %v1336 = vadd.f32 %v1130, %v1304
      %v1337 = vadd.f32 %v1131, %v1305
      %v1338 = vadd.f32 %v1132, %v1306
      %v1339 = vadd.f32 %v1133, %v1307
      %v1340 = vadd.f32 %v1134, %v1308
      %v1341 = vadd.f32 %v1135, %v1309
      %v1342 = vadd.f32 %v1136, %v1310
      %v1343 = vadd.f32 %v1137, %v1311
      %v1344 = vadd.f32 %v1138, %v1312
      %v1345 = vadd.f32 %v1139, %v1313
      %v1346 = vadd.f32 %v1140, %v1314
      %v1347 = vadd.f32 %v1141, %v1315
      %v1348 = vadd.f32 %v1142, %v1316
      %v1349 = vadd.f32 %v1143, %v1317
      %v1350 = vadd.f32 %v1144, %v1318
      %v1351 = vadd.f32 %v1145, %v1319
      %v1352 = vadd.f32 %v1146, %v1320
      %v1353 = vadd.f32 %v1147, %v1321
      %v1354 = vadd.f32 %v1148, %v1322
      %v1355 = vadd.f32 %v1149, %v1323
      %v1356 = vadd.f32 %v1150, %v1324
      %v1357 = vadd.f32 %v1151, %v1325
      %v1358 = vadd.f32 %v1152, %v1326
      %v1359 = vadd.f32 %v1153, %v1327
      %v1360 = vmax.f32 %v1328, 0.0
      %v1361 = vmax.f32 %v1329, 0.0
      %v1362 = vmax.f32 %v1330, 0.0
      %v1363 = vmax.f32 %v1331, 0.0
      %v1364 = vmax.f32 %v1332, 0.0
      %v1365 = vmax.f32 %v1333, 0.0
      %v1366 = vmax.f32 %v1334, 0.0
      %v1367 = vmax.f32 %v1335, 0.0
      %v1368 = vmax.f32 %v1336, 0.0
      %v1369 = vmax.f32 %v1337, 0.0
      %v1370 = vmax.f32 %v1338, 0.0
      %v1371 = vmax.f32 %v1339, 0.0
      %v1372 = vmax.f32 %v1340, 0.0
      %v1373 = vmax.f32 %v1341, 0.0
      %v1374 = vmax.f32 %v1342, 0.0
      %v1375 = vmax.f32 %v1343, 0.0
      %v1376 = vmax.f32 %v1344, 0.0
      %v1377 = vmax.f32 %v1345, 0.0
      %v1378 = vmax.f32 %v1346, 0.0
      %v1379 = vmax.f32 %v1347, 0.0
      %v1380 = vmax.f32 %v1348, 0.0
      %v1381 = vmax.f32 %v1349, 0.0
      %v1382 = vmax.f32 %v1350, 0.0
      %v1383 = vmax.f32 %v1351, 0.0
      %v1384 = vmax.f32 %v1352, 0.0
      %v1385 = vmax.f32 %v1353, 0.0
      %v1386 = vmax.f32 %v1354, 0.0
      %v1387 = vmax.f32 %v1355, 0.0
      %v1388 = vmax.f32 %v1356, 0.0
      %v1389 = vmax.f32 %v1357, 0.0
      %v1390 = vmax.f32 %v1358, 0.0
      %v1391 = vmax.f32 %v1359, 0.0
      %1392 = vst [vmem:[%s271] sm:$0xff] %v1360
      %1393 = vst [vmem:[%s271 + $0x8] sm:$0xff] %v1361
      %1394 = vst [vmem:[%s271 + $0x10] sm:$0xff] %v1362
      %1395 = vst [vmem:[%s271 + $0x18] sm:$0xff] %v1363
      %1396 = vst [vmem:[%s271 + $0x20] sm:$0xff] %v1364
      %1397 = vst [vmem:[%s271 + $0x28] sm:$0xff] %v1365
      %1398 = vst [vmem:[%s271 + $0x30] sm:$0xff] %v1366
      %1399 = vst [vmem:[%s271 + $0x38] sm:$0xff] %v1367
      %1400 = vst [vmem:[%s271 + $0x40] sm:$0xff] %v1368
      %1401 = vst [vmem:[%s271 + $0x48] sm:$0xff] %v1369
      %1402 = vst [vmem:[%s271 + $0x50] sm:$0xff] %v1370
      %1403 = vst [vmem:[%s271 + $0x58] sm:$0xff] %v1371
      %1404 = vst [vmem:[%s271 + $0x60] sm:$0xff] %v1372
      %1405 = vst [vmem:[%s271 + $0x68] sm:$0xff] %v1373
      %1406 = vst [vmem:[%s271 + $0x70] sm:$0xff] %v1374
      %1407 = vst [vmem:[%s271 + $0x78] sm:$0xff] %v1375
      %1408 = vst [vmem:[%s271 + $0x80] sm:$0xff] %v1376
      %1409 = vst [vmem:[%s271 + $0x88] sm:$0xff] %v1377
      %1410 = vst [vmem:[%s271 + $0x90] sm:$0xff] %v1378
      %1411 = vst [vmem:[%s271 + $0x98] sm:$0xff] %v1379
      %1412 = vst [vmem:[%s271 + $0xa0] sm:$0xff] %v1380
      %1413 = vst [vmem:[%s271 + $0xa8] sm:$0xff] %v1381
      %1414 = vst [vmem:[%s271 + $0xb0] sm:$0xff] %v1382
      %1415 = vst [vmem:[%s271 + $0xb8] sm:$0xff] %v1383
      %1416 = vst [vmem:[%s271 + $0xc0] sm:$0xff] %v1384
      %1417 = vst [vmem:[%s271 + $0xc8] sm:$0xff] %v1385
      %1418 = vst [vmem:[%s271 + $0xd0] sm:$0xff] %v1386
      %1419 = vst [vmem:[%s271 + $0xd8] sm:$0xff] %v1387
      %1420 = vst [vmem:[%s271 + $0xe0] sm:$0xff] %v1388
      %1421 = vst [vmem:[%s271 + $0xe8] sm:$0xff] %v1389
      %1422 = vst [vmem:[%s271 + $0xf0] sm:$0xff] %v1390
      %1423 = vst [vmem:[%s271 + $0xf8] sm:$0xff] %v1391
      %p1424 = scmp.lt.s32.totalorder %s19, 1
      %s1425 = scalar_select %p1424, %s19, 1
      %p1426 = scmp.lt.s32.totalorder %s20, 0
      %s1427 = scalar_select %p1426, %s20, 0
      %s1428 = smul.addr %s1425, 32
      %s1429 = sadd.s32 %s1427, %s1428
      %s1430 = smul.addr %s1429, 8
      %s1431 = scalar_lea.vmem %s4, %s1430
      // Predicated region
      $region37: #{bottleneck_v0_forward.5} parent=35 // pred_check
        %p1432 = pneg %p151
      $region38: #{bottleneck_v0_forward.5} parent=35 // pred_check_branch
        %1434 = sbr.rel (%p1432) target = $region40
      $region39: #{bottleneck_v0_forward.5} parent=35 // pred_region
        _
      $region40: #{bottleneck_v0_forward.5} parent=35 // pred_fallthru
        _
    $region36: #{bottleneck_v0_forward.5} parent=5 // pred_fallthru
      _
    %p1435 = scmp.le.s32.totalorder 2, %s10
    // Predicated region
    $region41: #{bottleneck_v0_forward.5} parent=5 // pred_check
      %p1436 = pneg %p1435
    $region42: #{bottleneck_v0_forward.5} parent=5 // pred_check_branch
      %1438 = sbr.rel (%p1436) target = $region44
    $region43: #{bottleneck_v0_forward.5} parent=5 // pred_region
      %s1439 = ssub.s32 %s10, 2
      // Predicated region
      $region45: #{bottleneck_v0_forward.5} parent=43 // pred_check
        %p1440 = pneg %p157
      $region46: #{bottleneck_v0_forward.5} parent=43 // pred_check_branch
        %1442 = sbr.rel (%p1440) target = $region48
      $region47: #{bottleneck_v0_forward.5} parent=43 // pred_region
        %p1443 = scmp.lt.s32.totalorder %s21, 1
        %s1444 = scalar_select %p1443, %s21, 1
        %p1445 = scmp.lt.s32.totalorder %s22, 0
        %s1446 = scalar_select %p1445, %s22, 0
        %s1447 = smul.addr %s1444, 32
        %s1448 = sadd.s32 %s1446, %s1447
        %s1449 = smul.addr %s1448, 8
        %s1450 = scalar_lea.vmem %s4, %s1449
      $region48: #{bottleneck_v0_forward.5} parent=43 // pred_fallthru
        _
    $region44: #{bottleneck_v0_forward.5} parent=5 // pred_fallthru
      _
  $region6: #{bottleneck_v0_forward.5} parent=0 // loop_footer
    %s14 = sadd.s32 1, %s10
  $region7: #{bottleneck_v0_forward.5} parent=0 // loop_footer_branch
    %9 = sbr.rel target = $region3
  $region8: #{bottleneck_v0_forward.5} parent=0 // loop_exit
    _

// kernel: bottleneck_v0_forward.4
$region0: #{bottleneck_v0_forward.4}
  #allocation0 [shape = 'u32[]', space=smem, size = 0x4, offset = 0x4, fixed_abs, tag = 'smem constant byte address 0x4 - core index']
  #allocation1 [shape = 'u32[144,128]{1,0:T(1,128)}', space=vmem, size = 0x12000, scoped, tag = 'internal scratch']
  %s0 = inlined_call_operand.vmem [shape: bf16[2,456,128], index: 0, kind: input, shape index: {}]
  %s1 = inlined_call_operand.vmem [shape: bf16[3,3,128,128], index: 1, kind: input, shape index: {}]
  %s2 = inlined_call_operand.vmem [shape: bf16[2,256,128], index: 2, kind: output, shape index: {}]
  %s3 = sld [smem:[#allocation0]]
  $region41: #{bottleneck_v0_forward.4} parent=0
    _
  %s5 = ssub.s32 1, %s3
  %s6 = scalar_select 0, %s5, %s3
  loop: start=0, step=1, limit=4
  $region2: #{bottleneck_v0_forward.4} parent=0 // loop_pre_header
    _
  $region3: #{bottleneck_v0_forward.4} parent=0 // loop_header
    %s8 = sphi 0, %s12
    %p9 = scmp.ge.s32.totalorder %s8, 4
    %s15 = sphi 0, %s27
    %s16 = sphi 0, %s23
    %s17 = sphi 0, %s15
    %s18 = sphi 0, %s16
    %s19 = sphi 0, %s17
    %s20 = sphi 0, %s18
    %s30 = sphi 0, %s32
    %s33 = sphi 0, %s30
    %s34 = sphi 0, %s33
    %s50 = sphi 0, %s34
    %s56 = sphi 0, %s58
    %s59 = sphi 0, %s56
    %s60 = sphi 0, %s59
    %s76 = sphi 0, %s60
    %s84 = sphi 0, %s86
    %s87 = sphi 0, %s84
    %s88 = sphi 0, %s87
    %s104 = sphi 0, %s88
  $region4: #{bottleneck_v0_forward.4} parent=0 // loop_header_branch
    %11 = sbr.rel (%p9) target = $region8
  $region5: #{bottleneck_v0_forward.4} parent=0 // loop_body
    %s13 = ssub.s32 %s8, 1
    %s14 = ssub.s32 %s8, 2
    %s21 = sadd.s32 1, %s16
    %p22 = scmp.ge.s32.totalorder %s21, 1
    %s23 = scalar_select %p22, 0, %s21
    %s24 = sadd.s32 1, %s15
    %s25 = scalar_select %p22, %s24, %s15
    %p26 = scmp.ge.s32.totalorder %s25, 2
    %s27 = scalar_select %p26, 0, %s25
    %s28 = ssub.s32 %s15, %s27
    %p29 = scmp.eq.s32.totalorder %s28, 0
    %s31 = sadd.s32 %s30, 1
    %s32 = scalar_select %p29, %s30, %s31
    %p35 = pneg %p29
    %p36 = scmp.eq.s32.totalorder %s8, 1
    %p37 = por %p35, %p36
    %p38 = scmp.ne.s32.totalorder %s30, %s33
    %p39 = scmp.eq.s32.totalorder %s8, 0
    %p40 = por %p38, %p39
    %p41 = scmp.ne.s32.totalorder %s30, %s33
    %p42 = scmp.eq.s32.totalorder %s13, 1
    %p43 = por %p41, %p42
    %p44 = scmp.ne.s32.totalorder %s33, %s34
    %p45 = scmp.eq.s32.totalorder %s13, 0
    %p46 = por %p44, %p45
    %p47 = scmp.ne.s32.totalorder %s33, %s34
    %p48 = scmp.eq.s32.totalorder %s14, 1
    %p49 = por %p47, %p48
    %p51 = scmp.ne.s32.totalorder %s34, %s50
    %p52 = scmp.eq.s32.totalorder %s14, 0
    %p53 = por %p51, %p52
    %s54 = ssub.s32 %s16, %s23
    %p55 = scmp.eq.s32.totalorder %s54, 0
    %s57 = sadd.s32 %s56, 1
    %s58 = scalar_select %p55, %s56, %s57
    %p61 = pneg %p55
    %p62 = scmp.eq.s32.totalorder %s8, 1
    %p63 = por %p61, %p62
    %p64 = scmp.ne.s32.totalorder %s56, %s59
    %p65 = scmp.eq.s32.totalorder %s8, 0
    %p66 = por %p64, %p65
    %p67 = scmp.ne.s32.totalorder %s56, %s59
    %p68 = scmp.eq.s32.totalorder %s13, 1
    %p69 = por %p67, %p68
    %p70 = scmp.ne.s32.totalorder %s59, %s60
    %p71 = scmp.eq.s32.totalorder %s13, 0
    %p72 = por %p70, %p71
    %p73 = scmp.ne.s32.totalorder %s59, %s60
    %p74 = scmp.eq.s32.totalorder %s14, 1
    %p75 = por %p73, %p74
    %p77 = scmp.ne.s32.totalorder %s60, %s76
    %p78 = scmp.eq.s32.totalorder %s14, 0
    %p79 = por %p77, %p78
    %s80 = ssub.s32 %s15, %s27
    %s81 = ssub.s32 %s16, %s23
    %s82 = sor.u32 %s80, %s81
    %p83 = scmp.eq.s32.totalorder %s82, 0
    %s85 = sadd.s32 %s84, 1
    %s86 = scalar_select %p83, %s84, %s85
    %p89 = pneg %p83
    %p90 = scmp.eq.s32.totalorder %s8, 1
    %p91 = por %p89, %p90
    %p92 = scmp.ne.s32.totalorder %s84, %s87
    %p93 = scmp.eq.s32.totalorder %s8, 0
    %p94 = por %p92, %p93
    %p95 = scmp.ne.s32.totalorder %s84, %s87
    %p96 = scmp.eq.s32.totalorder %s13, 1
    %p97 = por %p95, %p96
    %p98 = scmp.ne.s32.totalorder %s87, %s88
    %p99 = scmp.eq.s32.totalorder %s13, 0
    %p100 = por %p98, %p99
    %p101 = scmp.ne.s32.totalorder %s87, %s88
    %p102 = scmp.eq.s32.totalorder %s14, 1
    %p103 = por %p101, %p102
    %p105 = scmp.ne.s32.totalorder %s88, %s104
    %p106 = scmp.eq.s32.totalorder %s14, 0
    %p107 = por %p105, %p106
    %p108 = scmp.le.s32.totalorder 1, %s8
    %p109 = scmp.lt.s32.totalorder %s8, 3
    %p110 = pnand %p108, %p109
    %p111 = pneg %p110
    // Predicated region
    $region9: #{bottleneck_v0_forward.4} parent=5 // pred_check
      _
    $region10: #{bottleneck_v0_forward.4} parent=5 // pred_check_branch
      %113 = sbr.rel (%p110) target = $region12
    $region11: #{bottleneck_v0_forward.4} parent=5 // pred_region
      %s114 = ssub.s32 %s8, 1
      // Predicated region
      $region13: #{bottleneck_v0_forward.4} parent=11 // pred_check
        %p115 = pneg %p72
      $region14: #{bottleneck_v0_forward.4} parent=11 // pred_check_branch
        %117 = sbr.rel (%p115) target = $region16
      $region15: #{bottleneck_v0_forward.4} parent=11 // pred_region
        %p118 = scmp.lt.s32.totalorder %s18, 0
        %s119 = scalar_select %p118, %s18, 0
        %s120 = smul.addr %s119, 4
        %s121 = scalar_lea.vmem %s1, %s120
      $region16: #{bottleneck_v0_forward.4} parent=11 // pred_fallthru
        _
    $region12: #{bottleneck_v0_forward.4} parent=5 // pred_fallthru
      _
    %p122 = scmp.lt.s32.totalorder %s8, 2
    // Predicated region
    $region17: #{bottleneck_v0_forward.4} parent=5 // pred_check
      %p123 = pneg %p122
    $region18: #{bottleneck_v0_forward.4} parent=5 // pred_check_branch
      %125 = sbr.rel (%p123) target = $region20
    $region19: #{bottleneck_v0_forward.4} parent=5 // pred_region
      // Predicated region
      $region21: #{bottleneck_v0_forward.4} parent=19 // pred_check
        %p126 = pneg %p40
      $region22: #{bottleneck_v0_forward.4} parent=19 // pred_check_branch
        %128 = sbr.rel (%p126) target = $region24
      $region23: #{bottleneck_v0_forward.4} parent=19 // pred_region
        %p129 = scmp.lt.s32.totalorder %s15, 1
        %s130 = scalar_select %p129, %s15, 1
        %s131 = smul.addr %s130, 57
        %s132 = smul.addr %s131, 4
        %s133 = scalar_lea.vmem %s0, %s132
      $region24: #{bottleneck_v0_forward.4} parent=19 // pred_fallthru
        _
    $region20: #{bottleneck_v0_forward.4} parent=5 // pred_fallthru
      _
    %p134 = scmp.le.s32.totalorder 1, %s8
    %p135 = scmp.lt.s32.totalorder %s8, 3
    %p136 = pnand %p134, %p135
    %p137 = pneg %p136
    // Predicated region
    $region25: #{bottleneck_v0_forward.4} parent=5 // pred_check
      _
    $region26: #{bottleneck_v0_forward.4} parent=5 // pred_check_branch
      %139 = sbr.rel (%p136) target = $region28
    $region27: #{bottleneck_v0_forward.4} parent=5 // pred_region
      %s140 = ssub.s32 %s8, 1
      %p141 = scmp.lt.s32.totalorder %s17, 1
      %s142 = scalar_select %p141, %s17, 1
      %s143 = smul.addr %s142, 57
      %s144 = smul.addr %s143, 4
      %s145 = scalar_lea.vmem %s0, %s144
      %p146 = pneg %p46
      %p147 = pneg %p43
      %p148 = scmp.lt.s32.totalorder %s18, 0
      %s149 = scalar_select %p148, %s18, 0
      %s150 = smul.addr %s149, 4
      %s151 = scalar_lea.vmem %s1, %s150
      %p152 = pneg %p72
      %p153 = pneg %p69
      %p154 = pneg %p100
      %p155 = pneg %p97
      %p156 = scmp.lt.s32.totalorder %s17, 1
      %s157 = scalar_select %p156, %s17, 1
      %p158 = scmp.lt.s32.totalorder %s18, 0
      %s159 = scalar_select %p158, %s18, 0
      %s160 = smul.addr %s157, 32
      %s161 = sadd.s32 %s159, %s160
      %s162 = smul.addr %s161, 4
      %s163 = scalar_lea.vmem %s2, %s162
      %p164 = scmp.lt.s32.totalorder %s17, 1
      %s165 = scalar_select %p164, %s17, 1
      %s166 = smul.addr %s165, 57
      %s167 = smul.addr %s166, 4
      %s168 = scalar_lea.vmem %s0, %s167
      %p169 = scmp.lt.s32.totalorder %s18, 0
      %s170 = scalar_select %p169, %s18, 0
      %s171 = smul.addr %s170, 4
      %s172 = scalar_lea.vmem %s1, %s171
      %p173 = scmp.lt.s32.totalorder %s17, 1
      %s174 = scalar_select %p173, %s17, 1
      %p175 = scmp.lt.s32.totalorder %s18, 0
      %s176 = scalar_select %p175, %s18, 0
      %s177 = smul.addr %s174, 32
      %s178 = sadd.s32 %s176, %s177
      %s179 = smul.addr %s178, 4
      %s180 = scalar_lea.vmem %s2, %s179
      %v182 = vld [vmem:[%s168] sm:$0xf]
      %v183 = vld [vmem:[%s168 + $0x4] sm:$0xf]
      %v184 = vld [vmem:[%s168 + $0x8] sm:$0xf]
      %v185 = vld [vmem:[%s168 + $0xc] sm:$0xf]
      %v186 = vld [vmem:[%s168 + $0x10] sm:$0xf]
      %v187 = vld [vmem:[%s168 + $0x14] sm:$0xf]
      %v188 = vld [vmem:[%s168 + $0x18] sm:$0xf]
      %v189 = vld [vmem:[%s168 + $0x1c] sm:$0xf]
      %v190 = vld [vmem:[%s168 + $0x20] sm:$0xf]
      %v191 = vld [vmem:[%s168 + $0x24] sm:$0xf]
      %v192 = vld [vmem:[%s168 + $0x28] sm:$0xf]
      %v193 = vld [vmem:[%s168 + $0x2c] sm:$0xf]
      %v194 = vld [vmem:[%s168 + $0x30] sm:$0xf]
      %v195 = vld [vmem:[%s168 + $0x34] sm:$0xf]
      %v196 = vld [vmem:[%s168 + $0x38] sm:$0xf]
      %v197 = vld [vmem:[%s168 + $0x3c] sm:$0xf]
      %v198 = vld [vmem:[%s168 + $0x40] sm:$0xf]
      %v199 = vld [vmem:[%s168 + $0x44] sm:$0xf]
      %v200 = vld [vmem:[%s168 + $0x48] sm:$0xf]
      %v201 = vld [vmem:[%s168 + $0x4c] sm:$0xf]
      %v202 = vld [vmem:[%s168 + $0x50] sm:$0xf]
      %v203 = vld [vmem:[%s168 + $0x54] sm:$0xf]
      %v204 = vld [vmem:[%s168 + $0x58] sm:$0xf]
      %v205 = vld [vmem:[%s168 + $0x5c] sm:$0xf]
      %v206 = vld [vmem:[%s168 + $0x60] sm:$0xf]
      %v207 = vld [vmem:[%s168 + $0x64] sm:$0xf]
      %v208 = vld [vmem:[%s168 + $0x68] sm:$0xf]
      %v209 = vld [vmem:[%s168 + $0x6c] sm:$0xf]
      %v210 = vld [vmem:[%s168 + $0x70] sm:$0xf]
      %v211 = vld [vmem:[%s168 + $0x74] sm:$0xf]
      %v212 = vld [vmem:[%s168 + $0x78] sm:$0xf]
      %v213 = vld [vmem:[%s168 + $0x7c] sm:$0xf]
      %v214 = vld [vmem:[%s168 + $0x80] sm:$0xf]
      %v215 = vld [vmem:[%s168 + $0x84] sm:$0xf]
      %v216 = vld [vmem:[%s168 + $0x88] sm:$0xf]
      %v217 = vld [vmem:[%s168 + $0x8c] sm:$0xf]
      %v218 = vld [vmem:[%s168 + $0x90] sm:$0xf]
      %v219 = vld [vmem:[%s168 + $0x94] sm:$0xf]
      %v220 = vld [vmem:[%s168 + $0x98] sm:$0xf]
      %v221 = vld [vmem:[%s168 + $0x9c] sm:$0xf]
      %v222 = vld [vmem:[%s168 + $0xa0] sm:$0xf]
      %v223 = vld [vmem:[%s168 + $0xa4] sm:$0xf]
      %v224 = vld [vmem:[%s168 + $0xa8] sm:$0xf]
      %v225 = vld [vmem:[%s168 + $0xac] sm:$0xf]
      %v226 = vld [vmem:[%s168 + $0xb0] sm:$0xf]
      %v227 = vld [vmem:[%s168 + $0xb4] sm:$0xf]
      %v228 = vld [vmem:[%s168 + $0xb8] sm:$0xf]
      %v229 = vld [vmem:[%s168 + $0xbc] sm:$0xf]
      %v230 = vld [vmem:[%s168 + $0xc0] sm:$0xf]
      %v231 = vld [vmem:[%s168 + $0xc4] sm:$0xf]
      %v232 = vld [vmem:[%s168 + $0xc8] sm:$0xf]
      %v233 = vld [vmem:[%s168 + $0xcc] sm:$0xf]
      %v234 = vld [vmem:[%s168 + $0xd0] sm:$0xf]
      %v235 = vld [vmem:[%s168 + $0xd4] sm:$0xf]
      %v236 = vld [vmem:[%s172] sm:$0xf]
      %v237 = vld [vmem:[%s172 + $0x4] sm:$0xf]
      %v238 = vld [vmem:[%s172 + $0x8] sm:$0xf]
      %v239 = vld [vmem:[%s172 + $0xc] sm:$0xf]
      %v240 = vld [vmem:[%s172 + $0x10] sm:$0xf]
      %v241 = vld [vmem:[%s172 + $0x14] sm:$0xf]
      %v242 = vld [vmem:[%s172 + $0x18] sm:$0xf]
      %v243 = vld [vmem:[%s172 + $0x1c] sm:$0xf]
      %v244 = vld [vmem:[%s172 + $0x20] sm:$0xf]
      %v245 = vld [vmem:[%s172 + $0x24] sm:$0xf]
      %v246 = vld [vmem:[%s172 + $0x28] sm:$0xf]
      %v247 = vld [vmem:[%s172 + $0x2c] sm:$0xf]
      %v248 = vld [vmem:[%s172 + $0x30] sm:$0xf]
      %v249 = vld [vmem:[%s172 + $0x34] sm:$0xf]
      %v250 = vld [vmem:[%s172 + $0x38] sm:$0xf]
      %v251 = vld [vmem:[%s172 + $0x3c] sm:$0xf]
      %s252 = scalar_lea.vmem %s172, 192
      %v253 = vld [vmem:[%s252] sm:$0xf]
      %v254 = vld [vmem:[%s252 + $0x4] sm:$0xf]
      %v255 = vld [vmem:[%s252 + $0x8] sm:$0xf]
      %v256 = vld [vmem:[%s252 + $0xc] sm:$0xf]
      %v257 = vld [vmem:[%s252 + $0x10] sm:$0xf]
      %v258 = vld [vmem:[%s252 + $0x14] sm:$0xf]
      %v259 = vld [vmem:[%s252 + $0x18] sm:$0xf]
      %v260 = vld [vmem:[%s252 + $0x1c] sm:$0xf]
      %v261 = vld [vmem:[%s252 + $0x20] sm:$0xf]
      %v262 = vld [vmem:[%s252 + $0x24] sm:$0xf]
      %v263 = vld [vmem:[%s252 + $0x28] sm:$0xf]
      %v264 = vld [vmem:[%s252 + $0x2c] sm:$0xf]
      %v265 = vld [vmem:[%s252 + $0x30] sm:$0xf]
      %v266 = vld [vmem:[%s252 + $0x34] sm:$0xf]
      %v267 = vld [vmem:[%s252 + $0x38] sm:$0xf]
      %v268 = vld [vmem:[%s252 + $0x3c] sm:$0xf]
      %v317 = vunpack.c.l.b16 %v185
      %v318 = vunpack.c.l.b16 %v186
      %v319 = vunpack.c.l.b16 %v187
      %v320 = vunpack.c.l.b16 %v188
      %v321 = vunpack.c.l.b16 %v189
      %v322 = vunpack.c.l.b16 %v190
      %v323 = vunpack.c.l.b16 %v191
      %v324 = vunpack.c.l.b16 %v192
      %v325 = vunpack.c.l.b16 %v193
      %v326 = vunpack.c.l.b16 %v194
      %v327 = vunpack.c.l.b16 %v195
      %v328 = vunpack.c.l.b16 %v196
      %v329 = vunpack.c.l.b16 %v197
      %v330 = vunpack.c.l.b16 %v198
      %v331 = vunpack.c.l.b16 %v199
      %v332 = vunpack.c.l.b16 %v200
      %v333 = vunpack.c.l.b16 %v201
      %v334 = vunpack.c.l.b16 %v202
      %v335 = vunpack.c.l.b16 %v203
      %v336 = vunpack.c.l.b16 %v204
      %v337 = vunpack.c.l.b16 %v205
      %v338 = vunpack.c.l.b16 %v206
      %v339 = vunpack.c.l.b16 %v207
      %v340 = vunpack.c.l.b16 %v208
      %v341 = vunpack.c.l.b16 %v209
      %v342 = vunpack.c.l.b16 %v210
      %v343 = vunpack.c.l.b16 %v211
      %v344 = vunpack.c.l.b16 %v212
      %v345 = vunpack.c.l.b16 %v213
      %v346 = vunpack.c.l.b16 %v214
      %v347 = vunpack.c.l.b16 %v215
      %v348 = vunpack.c.l.b16 %v216
      %v349 = vunpack.c.l.b16 %v217
      %v350 = vunpack.c.l.b16 %v218
      %v351 = vunpack.c.l.b16 %v219
      %v352 = vunpack.c.l.b16 %v220
      %v353 = vunpack.c.l.b16 %v221
      %v354 = vunpack.c.l.b16 %v222
      %v355 = vunpack.c.l.b16 %v223
      %v356 = vunpack.c.l.b16 %v224
      %v357 = vunpack.c.l.b16 %v225
      %v358 = vunpack.c.l.b16 %v226
      %v359 = vunpack.c.l.b16 %v227
      %v360 = vunpack.c.l.b16 %v228
      %v361 = vunpack.c.l.b16 %v229
      %v362 = vunpack.c.l.b16 %v230
      %v363 = vunpack.c.l.b16 %v231
      %v364 = vunpack.c.l.b16 %v232
      %v365 = vpack.c.b16 %v318, %v317
      %v366 = vpack.c.b16 %v320, %v319
      %v367 = vpack.c.b16 %v322, %v321
      %v368 = vpack.c.b16 %v324, %v323
      %v369 = vpack.c.b16 %v326, %v325
      %v370 = vpack.c.b16 %v328, %v327
      %v371 = vpack.c.b16 %v330, %v329
      %v372 = vpack.c.b16 %v332, %v331
      %v373 = vpack.c.b16 %v334, %v333
      %v374 = vpack.c.b16 %v336, %v335
      %v375 = vpack.c.b16 %v338, %v337
      %v376 = vpack.c.b16 %v340, %v339
      %v377 = vpack.c.b16 %v342, %v341
      %v378 = vpack.c.b16 %v344, %v343
      %v379 = vpack.c.b16 %v346, %v345
      %v380 = vpack.c.b16 %v348, %v347
      %v381 = vpack.c.b16 %v350, %v349
      %v382 = vpack.c.b16 %v352, %v351
      %v383 = vpack.c.b16 %v354, %v353
      %v384 = vpack.c.b16 %v356, %v355
      %v385 = vpack.c.b16 %v358, %v357
      %v386 = vpack.c.b16 %v360, %v359
      %v387 = vpack.c.b16 %v362, %v361
      %v388 = vpack.c.b16 %v364, %v363
      %v429 = vunpack.c.l.b16 %v253
      %v430 = vunpack.c.l.b16 %v254
      %v431 = vunpack.c.l.b16 %v255
      %v432 = vunpack.c.l.b16 %v256
      %v433 = vunpack.c.l.b16 %v257
      %v434 = vunpack.c.l.b16 %v258
      %v435 = vunpack.c.l.b16 %v259
      %v436 = vunpack.c.l.b16 %v260
      %v437 = vunpack.c.l.b16 %v261
      %v438 = vunpack.c.l.b16 %v262
      %v439 = vunpack.c.l.b16 %v263
      %v440 = vunpack.c.l.b16 %v264
      %v441 = vunpack.c.l.b16 %v265
      %v442 = vunpack.c.l.b16 %v266
      %v443 = vunpack.c.l.b16 %v267
      %v444 = vunpack.c.l.b16 %v268
      %v445 = vpack.c.b16 %v430, %v429
      %v446 = vpack.c.b16 %v432, %v431
      %v447 = vpack.c.b16 %v434, %v433
      %v448 = vpack.c.b16 %v436, %v435
      %v449 = vpack.c.b16 %v438, %v437
      %v450 = vpack.c.b16 %v440, %v439
      %v451 = vpack.c.b16 %v442, %v441
      %v452 = vpack.c.b16 %v444, %v443
      %461 = vmatprep.subr.bf16.mxu0 0
      %462 = vmatpush1.bf16.msra.mxu0 %v452
      %463 = vmatprep.subr.bf16.mxu0 0
      %464 = vmatpush1.bf16.msra.mxu0 %v451
      %465 = vmatprep.subr.bf16.mxu0 0
      %466 = vmatpush1.bf16.msra.mxu0 %v450
      %467 = vmatprep.subr.bf16.mxu0 0
      %468 = vmatpush1.bf16.msra.mxu0 %v449
      %469 = vmatprep.subr.bf16.mxu0 0
      %470 = vmatpush1.bf16.msra.mxu0 %v448
      %471 = vmatprep.subr.bf16.mxu0 0
      %472 = vmatpush1.bf16.msra.mxu0 %v447
      %473 = vmatprep.subr.bf16.mxu0 0
      %474 = vmatpush1.bf16.msra.mxu0 %v446
      %475 = vmatprep.subr.bf16.mxu0 0
      %476 = vmatpush1.bf16.msra.mxu0 %v445
      %477 = vmatprep.subr.bf16.mxu0 0
      %478 = vmatpush2.bf16.msra.mxu0 0
      %479 = vmatprep.subr.bf16.mxu0 0
      %480 = vmatpush2.bf16.msra.mxu0 0
      %481 = vmatprep.subr.bf16.mxu0 0
      %482 = vmatpush2.bf16.msra.mxu0 0
      %483 = vmatprep.subr.bf16.mxu0 0
      %484 = vmatpush2.bf16.msra.mxu0 0
      %485 = vmatprep.subr.bf16.mxu0 0
      %486 = vmatpush2.bf16.msra.mxu0 0
      %487 = vmatprep.subr.bf16.mxu0 0
      %488 = vmatpush2.bf16.msra.mxu0 0
      %489 = vmatprep.subr.bf16.mxu0 0
      %490 = vmatpush2.bf16.msra.mxu0 0
      %491 = vmatprep.subr.bf16.mxu0 0
      %492 = vmatpush2.bf16.msra.mxu0 0
      %493 = vmatprep.mubr.bf16.mxu0 0
      %494 = vmatmul.mubr.bf16.gmra.mxu0 %v365
      %v495 = vpop.f32.mrf.mxu0
      %v496 = vadd.f32 0.0, %v495
      %v497 = vpop.f32.mrf.mxu0
      %v498 = vpop.f32.mrf.mxu0
      %v499 = vadd.f32 0.0, %v498
      %v500 = vpop.f32.mrf.mxu0
      %501 = vmatprep.mubr.bf16.mxu0 0
      %502 = vmatmul.mubr.bf16.gmra.mxu0 %v366
      %v503 = vpop.f32.mrf.mxu0
      %v504 = vpop.f32.mrf.mxu0
      %v505 = vpop.f32.mrf.mxu0
      %v506 = vadd.f32 0.0, %v505
      %v507 = vpop.f32.mrf.mxu0
      %508 = vmatprep.mubr.bf16.mxu0 0
      %509 = vmatmul.mubr.bf16.gmra.mxu0 %v367
      %v510 = vpop.f32.mrf.mxu0
      %v511 = vadd.f32 0.0, %v510
      %v512 = vpop.f32.mrf.mxu0
      %v513 = vpop.f32.mrf.mxu0
      %v514 = vpop.f32.mrf.mxu0
      %515 = vmatprep.mubr.bf16.mxu0 0
      %516 = vmatmul.mubr.bf16.gmra.mxu0 %v368
      %v517 = vpop.f32.mrf.mxu0
      %v518 = vadd.f32 0.0, %v517
      %v519 = vpop.f32.mrf.mxu0
      %v520 = vpop.f32.mrf.mxu0
      %v521 = vadd.f32 0.0, %v520
      %v522 = vpop.f32.mrf.mxu0
      %523 = vmatprep.mubr.bf16.mxu0 0
      %524 = vmatmul.mubr.bf16.gmra.mxu0 %v369
      %v525 = vpop.f32.mrf.mxu0
      %v526 = vpop.f32.mrf.mxu0
      %v527 = vpop.f32.mrf.mxu0
      %v528 = vadd.f32 0.0, %v527
      %v529 = vpop.f32.mrf.mxu0
      %530 = vmatprep.mubr.bf16.mxu0 0
      %531 = vmatmul.mubr.bf16.gmra.mxu0 %v370
      %v532 = vpop.f32.mrf.mxu0
      %v533 = vadd.f32 0.0, %v532
      %v534 = vpop.f32.mrf.mxu0
      %v535 = vpop.f32.mrf.mxu0
      %v536 = vpop.f32.mrf.mxu0
      %537 = vmatprep.mubr.bf16.mxu0 0
      %538 = vmatmul.mubr.bf16.gmra.mxu0 %v371
      %v539 = vpop.f32.mrf.mxu0
      %v540 = vadd.f32 0.0, %v539
      %v541 = vpop.f32.mrf.mxu0
      %v542 = vpop.f32.mrf.mxu0
      %v543 = vadd.f32 0.0, %v542
      %v544 = vpop.f32.mrf.mxu0
      %545 = vmatprep.mubr.bf16.mxu0 0
      %546 = vmatmul.mubr.bf16.gmra.mxu0 %v372
      %v547 = vpop.f32.mrf.mxu0
      %v548 = vpop.f32.mrf.mxu0
      %v549 = vpop.f32.mrf.mxu0
      %v550 = vadd.f32 0.0, %v549
      %v551 = vpop.f32.mrf.mxu0
      %552 = vmatprep.mubr.bf16.mxu0 0
      %553 = vmatmul.mubr.bf16.gmra.mxu0 %v373
      %v554 = vpop.f32.mrf.mxu0
      %v555 = vadd.f32 0.0, %v554
      %v556 = vpop.f32.mrf.mxu0
      %v557 = vpop.f32.mrf.mxu0
      %v558 = vpop.f32.mrf.mxu0
      %559 = vmatprep.mubr.bf16.mxu0 0
      %560 = vmatmul.mubr.bf16.gmra.mxu0 %v374
      %v561 = vpop.f32.mrf.mxu0
      %v562 = vadd.f32 0.0, %v561
      %v563 = vpop.f32.mrf.mxu0
      %v564 = vpop.f32.mrf.mxu0
      %v565 = vadd.f32 0.0, %v564
      %v566 = vpop.f32.mrf.mxu0
      %567 = vmatprep.mubr.bf16.mxu0 0
      %568 = vmatmul.mubr.bf16.gmra.mxu0 %v375
      %v569 = vpop.f32.mrf.mxu0
      %v570 = vpop.f32.mrf.mxu0
      %v571 = vpop.f32.mrf.mxu0
      %v572 = vadd.f32 0.0, %v571
      %v573 = vpop.f32.mrf.mxu0
      %574 = vmatprep.mubr.bf16.mxu0 0
      %575 = vmatmul.mubr.bf16.gmra.mxu0 %v376
      %v576 = vpop.f32.mrf.mxu0
      %v577 = vadd.f32 0.0, %v576
      %v578 = vpop.f32.mrf.mxu0
      %v579 = vpop.f32.mrf.mxu0
      %v580 = vpop.f32.mrf.mxu0
      %581 = vmatprep.mubr.bf16.mxu0 0
      %582 = vmatmul.mubr.bf16.gmra.mxu0 %v377
      %v583 = vpop.f32.mrf.mxu0
      %v584 = vadd.f32 0.0, %v583
      %v585 = vpop.f32.mrf.mxu0
      %v586 = vpop.f32.mrf.mxu0
      %v587 = vadd.f32 0.0, %v586
      %v588 = vpop.f32.mrf.mxu0
      %589 = vmatprep.mubr.bf16.mxu0 0
      %590 = vmatmul.mubr.bf16.gmra.mxu0 %v378
      %v591 = vpop.f32.mrf.mxu0
      %v592 = vpop.f32.mrf.mxu0
      %v593 = vpop.f32.mrf.mxu0
      %v594 = vadd.f32 0.0, %v593
      %v595 = vpop.f32.mrf.mxu0
      %596 = vmatprep.mubr.bf16.mxu0 0
      %597 = vmatmul.mubr.bf16.gmra.mxu0 %v379
      %v598 = vpop.f32.mrf.mxu0
      %v599 = vadd.f32 0.0, %v598
      %v600 = vpop.f32.mrf.mxu0
      %v601 = vpop.f32.mrf.mxu0
      %v602 = vpop.f32.mrf.mxu0
      %603 = vmatprep.mubr.bf16.mxu0 0
      %604 = vmatmul.mubr.bf16.gmra.mxu0 %v380
      %v605 = vpop.f32.mrf.mxu0
      %v606 = vadd.f32 0.0, %v605
      %v607 = vpop.f32.mrf.mxu0
      %v608 = vpop.f32.mrf.mxu0
      %v609 = vadd.f32 0.0, %v608
      %v610 = vpop.f32.mrf.mxu0
      %611 = vmatprep.mubr.bf16.mxu0 0
      %612 = vmatmul.mubr.bf16.gmra.mxu0 %v381
      %v613 = vpop.f32.mrf.mxu0
      %v614 = vpop.f32.mrf.mxu0
      %v615 = vpop.f32.mrf.mxu0
      %v616 = vadd.f32 0.0, %v615
      %v617 = vpop.f32.mrf.mxu0
      %618 = vmatprep.mubr.bf16.mxu0 0
      %619 = vmatmul.mubr.bf16.gmra.mxu0 %v382
      %v620 = vpop.f32.mrf.mxu0
      %v621 = vadd.f32 0.0, %v620
      %v622 = vpop.f32.mrf.mxu0
      %v623 = vpop.f32.mrf.mxu0
      %v624 = vpop.f32.mrf.mxu0
      %625 = vmatprep.mubr.bf16.mxu0 0
      %626 = vmatmul.mubr.bf16.gmra.mxu0 %v383
      %v627 = vpop.f32.mrf.mxu0
      %v628 = vadd.f32 0.0, %v627
      %v629 = vpop.f32.mrf.mxu0
      %v630 = vpop.f32.mrf.mxu0
      %v631 = vadd.f32 0.0, %v630
      %v632 = vpop.f32.mrf.mxu0
      %633 = vmatprep.mubr.bf16.mxu0 0
      %634 = vmatmul.mubr.bf16.gmra.mxu0 %v384
      %v635 = vpop.f32.mrf.mxu0
      %v636 = vpop.f32.mrf.mxu0
      %v637 = vpop.f32.mrf.mxu0
      %v638 = vadd.f32 0.0, %v637
      %v639 = vpop.f32.mrf.mxu0
      %640 = vmatprep.mubr.bf16.mxu0 0
      %641 = vmatmul.mubr.bf16.gmra.mxu0 %v385
      %v642 = vpop.f32.mrf.mxu0
      %v643 = vadd.f32 0.0, %v642
      %v644 = vpop.f32.mrf.mxu0
      %v645 = vpop.f32.mrf.mxu0
      %v646 = vpop.f32.mrf.mxu0
      %647 = vmatprep.mubr.bf16.mxu0 0
      %648 = vmatmul.mubr.bf16.gmra.mxu0 %v386
      %v649 = vpop.f32.mrf.mxu0
      %v650 = vadd.f32 0.0, %v649
      %v651 = vpop.f32.mrf.mxu0
      %v652 = vpop.f32.mrf.mxu0
      %v653 = vadd.f32 0.0, %v652
      %v654 = vpop.f32.mrf.mxu0
      %655 = vmatprep.mubr.bf16.mxu0 0
      %656 = vmatmul.mubr.bf16.gmra.mxu0 %v387
      %v657 = vpop.f32.mrf.mxu0
      %v658 = vpop.f32.mrf.mxu0
      %v659 = vpop.f32.mrf.mxu0
      %v660 = vadd.f32 0.0, %v659
      %v661 = vpop.f32.mrf.mxu0
      %662 = vmatprep.mubr.bf16.mxu0 0
      %663 = vmatmul.mubr.bf16.gmra.mxu0 %v388
      %v664 = vpop.f32.mrf.mxu0
      %v665 = vadd.f32 0.0, %v664
      %v666 = vpop.f32.mrf.mxu0
      %v667 = vpop.f32.mrf.mxu0
      %v668 = vpop.f32.mrf.mxu0
      %669 = vdwg.mxu0
      %v673 = vunpack.c.l.b16 %v182
      %v674 = vunpack.c.l.b16 %v183
      %v675 = vunpack.c.l.b16 %v184
      %v676 = vpack.c.b16 %v674, %v673
      %v677 = vpack.c.b16 %v317, %v675
      %v678 = vpack.c.b16 %v319, %v318
      %v679 = vpack.c.b16 %v321, %v320
      %v680 = vpack.c.b16 %v323, %v322
      %v681 = vpack.c.b16 %v325, %v324
      %v682 = vpack.c.b16 %v327, %v326
      %v683 = vpack.c.b16 %v329, %v328
      %v684 = vpack.c.b16 %v331, %v330
      %v685 = vpack.c.b16 %v333, %v332
      %v686 = vpack.c.b16 %v335, %v334
      %v687 = vpack.c.b16 %v337, %v336
      %v688 = vpack.c.b16 %v339, %v338
      %v689 = vpack.c.b16 %v341, %v340
      %v690 = vpack.c.b16 %v343, %v342
      %v691 = vpack.c.b16 %v345, %v344
      %v692 = vpack.c.b16 %v347, %v346
      %v693 = vpack.c.b16 %v349, %v348
      %v694 = vpack.c.b16 %v351, %v350
      %v695 = vpack.c.b16 %v353, %v352
      %v696 = vpack.c.b16 %v355, %v354
      %v697 = vpack.c.b16 %v357, %v356
      %v698 = vpack.c.b16 %v359, %v358
      %v699 = vpack.c.b16 %v361, %v360
      %v740 = vunpack.c.l.b16 %v236
      %v741 = vunpack.c.l.b16 %v237
      %v742 = vunpack.c.l.b16 %v238
      %v743 = vunpack.c.l.b16 %v239
      %v744 = vunpack.c.l.b16 %v240
      %v745 = vunpack.c.l.b16 %v241
      %v746 = vunpack.c.l.b16 %v242
      %v747 = vunpack.c.l.b16 %v243
      %v748 = vunpack.c.l.b16 %v244
      %v749 = vunpack.c.l.b16 %v245
      %v750 = vunpack.c.l.b16 %v246
      %v751 = vunpack.c.l.b16 %v247
      %v752 = vunpack.c.l.b16 %v248
      %v753 = vunpack.c.l.b16 %v249
      %v754 = vunpack.c.l.b16 %v250
      %v755 = vunpack.c.l.b16 %v251
      %v756 = vpack.c.b16 %v741, %v740
      %v757 = vpack.c.b16 %v743, %v742
      %v758 = vpack.c.b16 %v745, %v744
      %v759 = vpack.c.b16 %v747, %v746
      %v760 = vpack.c.b16 %v749, %v748
      %v761 = vpack.c.b16 %v751, %v750
      %v762 = vpack.c.b16 %v753, %v752
      %v763 = vpack.c.b16 %v755, %v754
      %772 = vmatprep.subr.bf16.mxu0 0
      %773 = vmatpush1.bf16.msra.mxu0 %v763
      %774 = vmatprep.subr.bf16.mxu0 0
      %775 = vmatpush1.bf16.msra.mxu0 %v762
      %776 = vmatprep.subr.bf16.mxu0 0
      %777 = vmatpush1.bf16.msra.mxu0 %v761
      %778 = vmatprep.subr.bf16.mxu0 0
      %779 = vmatpush1.bf16.msra.mxu0 %v760
      %780 = vmatprep.subr.bf16.mxu0 0
      %781 = vmatpush1.bf16.msra.mxu0 %v759
      %782 = vmatprep.subr.bf16.mxu0 0
      %783 = vmatpush1.bf16.msra.mxu0 %v758
      %784 = vmatprep.subr.bf16.mxu0 0
      %785 = vmatpush1.bf16.msra.mxu0 %v757
      %786 = vmatprep.subr.bf16.mxu0 0
      %787 = vmatpush1.bf16.msra.mxu0 %v756
      %788 = vmatprep.subr.bf16.mxu0 0
      %789 = vmatpush2.bf16.msra.mxu0 0
      %790 = vmatprep.subr.bf16.mxu0 0
      %791 = vmatpush2.bf16.msra.mxu0 0
      %792 = vmatprep.subr.bf16.mxu0 0
      %793 = vmatpush2.bf16.msra.mxu0 0
      %794 = vmatprep.subr.bf16.mxu0 0
      %795 = vmatpush2.bf16.msra.mxu0 0
      %796 = vmatprep.subr.bf16.mxu0 0
      %797 = vmatpush2.bf16.msra.mxu0 0
      %798 = vmatprep.subr.bf16.mxu0 0
      %799 = vmatpush2.bf16.msra.mxu0 0
      %800 = vmatprep.subr.bf16.mxu0 0
      %801 = vmatpush2.bf16.msra.mxu0 0
      %802 = vmatprep.subr.bf16.mxu0 0
      %803 = vmatpush2.bf16.msra.mxu0 0
      %804 = vmatprep.mubr.bf16.mxu0 0
      %805 = vmatmul.mubr.bf16.gmra.mxu0 %v676
      %v806 = vpop.f32.mrf.mxu0
      %v807 = vadd.f32 %v496, %v806
      %v808 = vpop.f32.mrf.mxu0
      %v809 = vpop.f32.mrf.mxu0
      %v810 = vadd.f32 %v499, %v809
      %v811 = vpop.f32.mrf.mxu0
      %812 = vmatprep.mubr.bf16.mxu0 0
      %813 = vmatmul.mubr.bf16.gmra.mxu0 %v677
      %v814 = vpop.f32.mrf.mxu0
      %v815 = vpop.f32.mrf.mxu0
      %v816 = vpop.f32.mrf.mxu0
      %v817 = vadd.f32 %v506, %v816
      %v818 = vpop.f32.mrf.mxu0
      %819 = vmatprep.mubr.bf16.mxu0 0
      %820 = vmatmul.mubr.bf16.gmra.mxu0 %v678
      %v821 = vpop.f32.mrf.mxu0
      %v822 = vadd.f32 %v511, %v821
      %v823 = vpop.f32.mrf.mxu0
      %v824 = vpop.f32.mrf.mxu0
      %v825 = vpop.f32.mrf.mxu0
      %826 = vmatprep.mubr.bf16.mxu0 0
      %827 = vmatmul.mubr.bf16.gmra.mxu0 %v679
      %v828 = vpop.f32.mrf.mxu0
      %v829 = vadd.f32 %v518, %v828
      %v830 = vpop.f32.mrf.mxu0
      %v831 = vpop.f32.mrf.mxu0
      %v832 = vadd.f32 %v521, %v831
      %v833 = vpop.f32.mrf.mxu0
      %834 = vmatprep.mubr.bf16.mxu0 0
      %835 = vmatmul.mubr.bf16.gmra.mxu0 %v680
      %v836 = vpop.f32.mrf.mxu0
      %v837 = vpop.f32.mrf.mxu0
      %v838 = vpop.f32.mrf.mxu0
      %v839 = vadd.f32 %v528, %v838
      %v840 = vpop.f32.mrf.mxu0
      %841 = vmatprep.mubr.bf16.mxu0 0
      %842 = vmatmul.mubr.bf16.gmra.mxu0 %v681
      %v843 = vpop.f32.mrf.mxu0
      %v844 = vadd.f32 %v533, %v843
      %v845 = vpop.f32.mrf.mxu0
      %v846 = vpop.f32.mrf.mxu0
      %v847 = vpop.f32.mrf.mxu0
      %848 = vmatprep.mubr.bf16.mxu0 0
      %849 = vmatmul.mubr.bf16.gmra.mxu0 %v682
      %v850 = vpop.f32.mrf.mxu0
      %v851 = vadd.f32 %v540, %v850
      %v852 = vpop.f32.mrf.mxu0
      %v853 = vpop.f32.mrf.mxu0
      %v854 = vadd.f32 %v543, %v853
      %v855 = vpop.f32.mrf.mxu0
      %856 = vmatprep.mubr.bf16.mxu0 0
      %857 = vmatmul.mubr.bf16.gmra.mxu0 %v683
      %v858 = vpop.f32.mrf.mxu0
      %v859 = vpop.f32.mrf.mxu0
      %v860 = vpop.f32.mrf.mxu0
      %v861 = vadd.f32 %v550, %v860
      %v862 = vpop.f32.mrf.mxu0
      %863 = vmatprep.mubr.bf16.mxu0 0
      %864 = vmatmul.mubr.bf16.gmra.mxu0 %v684
      %v865 = vpop.f32.mrf.mxu0
      %v866 = vadd.f32 %v555, %v865
      %v867 = vpop.f32.mrf.mxu0
      %v868 = vpop.f32.mrf.mxu0
      %v869 = vpop.f32.mrf.mxu0
      %870 = vmatprep.mubr.bf16.mxu0 0
      %871 = vmatmul.mubr.bf16.gmra.mxu0 %v685
      %v872 = vpop.f32.mrf.mxu0
      %v873 = vadd.f32 %v562, %v872
      %v874 = vpop.f32.mrf.mxu0
      %v875 = vpop.f32.mrf.mxu0
      %v876 = vadd.f32 %v565, %v875
      %v877 = vpop.f32.mrf.mxu0
      %878 = vmatprep.mubr.bf16.mxu0 0
      %879 = vmatmul.mubr.bf16.gmra.mxu0 %v686
      %v880 = vpop.f32.mrf.mxu0
      %v881 = vpop.f32.mrf.mxu0
      %v882 = vpop.f32.mrf.mxu0
      %v883 = vadd.f32 %v572, %v882
      %v884 = vpop.f32.mrf.mxu0
      %885 = vmatprep.mubr.bf16.mxu0 0
      %886 = vmatmul.mubr.bf16.gmra.mxu0 %v687
      %v887 = vpop.f32.mrf.mxu0
      %v888 = vadd.f32 %v577, %v887
      %v889 = vpop.f32.mrf.mxu0
      %v890 = vpop.f32.mrf.mxu0
      %v891 = vpop.f32.mrf.mxu0
      %892 = vmatprep.mubr.bf16.mxu0 0
      %893 = vmatmul.mubr.bf16.gmra.mxu0 %v688
      %v894 = vpop.f32.mrf.mxu0
      %v895 = vadd.f32 %v584, %v894
      %v896 = vpop.f32.mrf.mxu0
      %v897 = vpop.f32.mrf.mxu0
      %v898 = vadd.f32 %v587, %v897
      %v899 = vpop.f32.mrf.mxu0
      %900 = vmatprep.mubr.bf16.mxu0 0
      %901 = vmatmul.mubr.bf16.gmra.mxu0 %v689
      %v902 = vpop.f32.mrf.mxu0
      %v903 = vpop.f32.mrf.mxu0
      %v904 = vpop.f32.mrf.mxu0
      %v905 = vadd.f32 %v594, %v904
      %v906 = vpop.f32.mrf.mxu0
      %907 = vmatprep.mubr.bf16.mxu0 0
      %908 = vmatmul.mubr.bf16.gmra.mxu0 %v690
      %v909 = vpop.f32.mrf.mxu0
      %v910 = vadd.f32 %v599, %v909
      %v911 = vpop.f32.mrf.mxu0
      %v912 = vpop.f32.mrf.mxu0
      %v913 = vpop.f32.mrf.mxu0
      %914 = vmatprep.mubr.bf16.mxu0 0
      %915 = vmatmul.mubr.bf16.gmra.mxu0 %v691
      %v916 = vpop.f32.mrf.mxu0
      %v917 = vadd.f32 %v606, %v916
      %v918 = vpop.f32.mrf.mxu0
      %v919 = vpop.f32.mrf.mxu0
      %v920 = vadd.f32 %v609, %v919
      %v921 = vpop.f32.mrf.mxu0
      %922 = vmatprep.mubr.bf16.mxu0 0
      %923 = vmatmul.mubr.bf16.gmra.mxu0 %v692
      %v924 = vpop.f32.mrf.mxu0
      %v925 = vpop.f32.mrf.mxu0
      %v926 = vpop.f32.mrf.mxu0
      %v927 = vadd.f32 %v616, %v926
      %v928 = vpop.f32.mrf.mxu0
      %929 = vmatprep.mubr.bf16.mxu0 0
      %930 = vmatmul.mubr.bf16.gmra.mxu0 %v693
      %v931 = vpop.f32.mrf.mxu0
      %v932 = vadd.f32 %v621, %v931
      %v933 = vpop.f32.mrf.mxu0
      %v934 = vpop.f32.mrf.mxu0
      %v935 = vpop.f32.mrf.mxu0
      %936 = vmatprep.mubr.bf16.mxu0 0
      %937 = vmatmul.mubr.bf16.gmra.mxu0 %v694
      %v938 = vpop.f32.mrf.mxu0
      %v939 = vadd.f32 %v628, %v938
      %v940 = vpop.f32.mrf.mxu0
      %v941 = vpop.f32.mrf.mxu0
      %v942 = vadd.f32 %v631, %v941
      %v943 = vpop.f32.mrf.mxu0
      %944 = vmatprep.mubr.bf16.mxu0 0
      %945 = vmatmul.mubr.bf16.gmra.mxu0 %v695
      %v946 = vpop.f32.mrf.mxu0
      %v947 = vpop.f32.mrf.mxu0
      %v948 = vpop.f32.mrf.mxu0
      %v949 = vadd.f32 %v638, %v948
      %v950 = vpop.f32.mrf.mxu0
      %951 = vmatprep.mubr.bf16.mxu0 0
      %952 = vmatmul.mubr.bf16.gmra.mxu0 %v696
      %v953 = vpop.f32.mrf.mxu0
      %v954 = vadd.f32 %v643, %v953
      %v955 = vpop.f32.mrf.mxu0
      %v956 = vpop.f32.mrf.mxu0
      %v957 = vpop.f32.mrf.mxu0
      %958 = vmatprep.mubr.bf16.mxu0 0
      %959 = vmatmul.mubr.bf16.gmra.mxu0 %v697
      %v960 = vpop.f32.mrf.mxu0
      %v961 = vadd.f32 %v650, %v960
      %v962 = vpop.f32.mrf.mxu0
      %v963 = vpop.f32.mrf.mxu0
      %v964 = vadd.f32 %v653, %v963
      %v965 = vpop.f32.mrf.mxu0
      %966 = vmatprep.mubr.bf16.mxu0 0
      %967 = vmatmul.mubr.bf16.gmra.mxu0 %v698
      %v968 = vpop.f32.mrf.mxu0
      %v969 = vpop.f32.mrf.mxu0
      %v970 = vpop.f32.mrf.mxu0
      %v971 = vadd.f32 %v660, %v970
      %v972 = vpop.f32.mrf.mxu0
      %973 = vmatprep.mubr.bf16.mxu0 0
      %974 = vmatmul.mubr.bf16.gmra.mxu0 %v699
      %v975 = vpop.f32.mrf.mxu0
      %v976 = vadd.f32 %v665, %v975
      %v977 = vpop.f32.mrf.mxu0
      %v978 = vpop.f32.mrf.mxu0
      %v979 = vpop.f32.mrf.mxu0
      %980 = vdwg.mxu0
      %s981 = scalar_lea.vmem %s172, 384
      %v982 = vld [vmem:[%s981] sm:$0xf]
      %v983 = vld [vmem:[%s981 + $0x4] sm:$0xf]
      %v984 = vld [vmem:[%s981 + $0x8] sm:$0xf]
      %v985 = vld [vmem:[%s981 + $0xc] sm:$0xf]
      %v986 = vld [vmem:[%s981 + $0x10] sm:$0xf]
      %v987 = vld [vmem:[%s981 + $0x14] sm:$0xf]
      %v988 = vld [vmem:[%s981 + $0x18] sm:$0xf]
      %v989 = vld [vmem:[%s981 + $0x1c] sm:$0xf]
      %v990 = vld [vmem:[%s981 + $0x20] sm:$0xf]
      %v991 = vld [vmem:[%s981 + $0x24] sm:$0xf]
      %v992 = vld [vmem:[%s981 + $0x28] sm:$0xf]
      %v993 = vld [vmem:[%s981 + $0x2c] sm:$0xf]
      %v994 = vld [vmem:[%s981 + $0x30] sm:$0xf]
      %v995 = vld [vmem:[%s981 + $0x34] sm:$0xf]
      %v996 = vld [vmem:[%s981 + $0x38] sm:$0xf]
      %v997 = vld [vmem:[%s981 + $0x3c] sm:$0xf]
      %v1001 = vunpack.c.l.b16 %v233
      %v1002 = vunpack.c.l.b16 %v234
      %v1003 = vunpack.c.l.b16 %v235
      %v1004 = vpack.c.b16 %v363, %v362
      %v1005 = vpack.c.b16 %v1001, %v364
      %v1006 = vpack.c.b16 %v1003, %v1002
      %v1026 = vunpack.c.l.b16 %v982
      %v1027 = vunpack.c.l.b16 %v983
      %v1028 = vunpack.c.l.b16 %v984
      %v1029 = vunpack.c.l.b16 %v985
      %v1030 = vunpack.c.l.b16 %v986
      %v1031 = vunpack.c.l.b16 %v987
      %v1032 = vunpack.c.l.b16 %v988
      %v1033 = vunpack.c.l.b16 %v989
      %v1034 = vunpack.c.l.b16 %v990
      %v1035 = vunpack.c.l.b16 %v991
      %v1036 = vunpack.c.l.b16 %v992
      %v1037 = vunpack.c.l.b16 %v993
      %v1038 = vunpack.c.l.b16 %v994
      %v1039 = vunpack.c.l.b16 %v995
      %v1040 = vunpack.c.l.b16 %v996
      %v1041 = vunpack.c.l.b16 %v997
      %v1042 = vpack.c.b16 %v1027, %v1026
      %v1043 = vpack.c.b16 %v1029, %v1028
      %v1044 = vpack.c.b16 %v1031, %v1030
      %v1045 = vpack.c.b16 %v1033, %v1032
      %v1046 = vpack.c.b16 %v1035, %v1034
      %v1047 = vpack.c.b16 %v1037, %v1036
      %v1048 = vpack.c.b16 %v1039, %v1038
      %v1049 = vpack.c.b16 %v1041, %v1040
      %1058 = vmatprep.subr.bf16.mxu0 0
      %1059 = vmatpush1.bf16.msra.mxu0 %v1049
      %1060 = vmatprep.subr.bf16.mxu0 0
      %1061 = vmatpush1.bf16.msra.mxu0 %v1048
      %1062 = vmatprep.subr.bf16.mxu0 0
      %1063 = vmatpush1.bf16.msra.mxu0 %v1047
      %1064 = vmatprep.subr.bf16.mxu0 0
      %1065 = vmatpush1.bf16.msra.mxu0 %v1046
      %1066 = vmatprep.subr.bf16.mxu0 0
      %1067 = vmatpush1.bf16.msra.mxu0 %v1045
      %1068 = vmatprep.subr.bf16.mxu0 0
      %1069 = vmatpush1.bf16.msra.mxu0 %v1044
      %1070 = vmatprep.subr.bf16.mxu0 0
      %1071 = vmatpush1.bf16.msra.mxu0 %v1043
      %1072 = vmatprep.subr.bf16.mxu0 0
      %1073 = vmatpush1.bf16.msra.mxu0 %v1042
      %1074 = vmatprep.subr.bf16.mxu0 0
      %1075 = vmatpush2.bf16.msra.mxu0 0
      %1076 = vmatprep.subr.bf16.mxu0 0
      %1077 = vmatpush2.bf16.msra.mxu0 0
      %1078 = vmatprep.subr.bf16.mxu0 0
      %1079 = vmatpush2.bf16.msra.mxu0 0
      %1080 = vmatprep.subr.bf16.mxu0 0
      %1081 = vmatpush2.bf16.msra.mxu0 0
      %1082 = vmatprep.subr.bf16.mxu0 0
      %1083 = vmatpush2.bf16.msra.mxu0 0
      %1084 = vmatprep.subr.bf16.mxu0 0
      %1085 = vmatpush2.bf16.msra.mxu0 0
      %1086 = vmatprep.subr.bf16.mxu0 0
      %1087 = vmatpush2.bf16.msra.mxu0 0
      %1088 = vmatprep.subr.bf16.mxu0 0
      %1089 = vmatpush2.bf16.msra.mxu0 0
      %1090 = vmatprep.mubr.bf16.mxu0 0
      %1091 = vmatmul.mubr.bf16.gmra.mxu0 %v679
      %v1092 = vpop.f32.mrf.mxu0
      %v1093 = vadd.f32 0.0, %v1092
      %v1094 = vpop.f32.mrf.mxu0
      %v1095 = vpop.f32.mrf.mxu0
      %v1096 = vadd.f32 0.0, %v1095
      %v1097 = vpop.f32.mrf.mxu0
      %1098 = vmatprep.mubr.bf16.mxu0 0
      %1099 = vmatmul.mubr.bf16.gmra.mxu0 %v680
      %v1100 = vpop.f32.mrf.mxu0
      %v1101 = vpop.f32.mrf.mxu0
      %v1102 = vpop.f32.mrf.mxu0
      %v1103 = vadd.f32 0.0, %v1102
      %v1104 = vpop.f32.mrf.mxu0
      %1105 = vmatprep.mubr.bf16.mxu0 0
      %1106 = vmatmul.mubr.bf16.gmra.mxu0 %v681
      %v1107 = vpop.f32.mrf.mxu0
      %v1108 = vadd.f32 0.0, %v1107
      %v1109 = vpop.f32.mrf.mxu0
      %v1110 = vpop.f32.mrf.mxu0
      %v1111 = vpop.f32.mrf.mxu0
      %1112 = vmatprep.mubr.bf16.mxu0 0
      %1113 = vmatmul.mubr.bf16.gmra.mxu0 %v682
      %v1114 = vpop.f32.mrf.mxu0
      %v1115 = vadd.f32 0.0, %v1114
      %v1116 = vpop.f32.mrf.mxu0
      %v1117 = vpop.f32.mrf.mxu0
      %v1118 = vadd.f32 0.0, %v1117
      %v1119 = vpop.f32.mrf.mxu0
      %1120 = vmatprep.mubr.bf16.mxu0 0
      %1121 = vmatmul.mubr.bf16.gmra.mxu0 %v683
      %v1122 = vpop.f32.mrf.mxu0
      %v1123 = vpop.f32.mrf.mxu0
      %v1124 = vpop.f32.mrf.mxu0
      %v1125 = vadd.f32 0.0, %v1124
      %v1126 = vpop.f32.mrf.mxu0
      %1127 = vmatprep.mubr.bf16.mxu0 0
      %1128 = vmatmul.mubr.bf16.gmra.mxu0 %v684
      %v1129 = vpop.f32.mrf.mxu0
      %v1130 = vadd.f32 0.0, %v1129
      %v1131 = vpop.f32.mrf.mxu0
      %v1132 = vpop.f32.mrf.mxu0
      %v1133 = vpop.f32.mrf.mxu0
      %1134 = vmatprep.mubr.bf16.mxu0 0
      %1135 = vmatmul.mubr.bf16.gmra.mxu0 %v685
      %v1136 = vpop.f32.mrf.mxu0
      %v1137 = vadd.f32 0.0, %v1136
      %v1138 = vpop.f32.mrf.mxu0
      %v1139 = vpop.f32.mrf.mxu0
      %v1140 = vadd.f32 0.0, %v1139
      %v1141 = vpop.f32.mrf.mxu0
      %1142 = vmatprep.mubr.bf16.mxu0 0
      %1143 = vmatmul.mubr.bf16.gmra.mxu0 %v686
      %v1144 = vpop.f32.mrf.mxu0
      %v1145 = vpop.f32.mrf.mxu0
      %v1146 = vpop.f32.mrf.mxu0
      %v1147 = vadd.f32 0.0, %v1146
      %v1148 = vpop.f32.mrf.mxu0
      %1149 = vmatprep.mubr.bf16.mxu0 0
      %1150 = vmatmul.mubr.bf16.gmra.mxu0 %v687
      %v1151 = vpop.f32.mrf.mxu0
      %v1152 = vadd.f32 0.0, %v1151
      %v1153 = vpop.f32.mrf.mxu0
      %v1154 = vpop.f32.mrf.mxu0
      %v1155 = vpop.f32.mrf.mxu0
      %1156 = vmatprep.mubr.bf16.mxu0 0
      %1157 = vmatmul.mubr.bf16.gmra.mxu0 %v688
      %v1158 = vpop.f32.mrf.mxu0
      %v1159 = vadd.f32 0.0, %v1158
      %v1160 = vpop.f32.mrf.mxu0
      %v1161 = vpop.f32.mrf.mxu0
      %v1162 = vadd.f32 0.0, %v1161
      %v1163 = vpop.f32.mrf.mxu0
      %1164 = vmatprep.mubr.bf16.mxu0 0
      %1165 = vmatmul.mubr.bf16.gmra.mxu0 %v689
      %v1166 = vpop.f32.mrf.mxu0
      %v1167 = vpop.f32.mrf.mxu0
      %v1168 = vpop.f32.mrf.mxu0
      %v1169 = vadd.f32 0.0, %v1168
      %v1170 = vpop.f32.mrf.mxu0
      %1171 = vmatprep.mubr.bf16.mxu0 0
      %1172 = vmatmul.mubr.bf16.gmra.mxu0 %v690
      %v1173 = vpop.f32.mrf.mxu0
      %v1174 = vadd.f32 0.0, %v1173
      %v1175 = vpop.f32.mrf.mxu0
      %v1176 = vpop.f32.mrf.mxu0
      %v1177 = vpop.f32.mrf.mxu0
      %1178 = vmatprep.mubr.bf16.mxu0 0
      %1179 = vmatmul.mubr.bf16.gmra.mxu0 %v691
      %v1180 = vpop.f32.mrf.mxu0
      %v1181 = vadd.f32 0.0, %v1180
      %v1182 = vpop.f32.mrf.mxu0
      %v1183 = vpop.f32.mrf.mxu0
      %v1184 = vadd.f32 0.0, %v1183
      %v1185 = vpop.f32.mrf.mxu0
      %1186 = vmatprep.mubr.bf16.mxu0 0
      %1187 = vmatmul.mubr.bf16.gmra.mxu0 %v692
      %v1188 = vpop.f32.mrf.mxu0
      %v1189 = vpop.f32.mrf.mxu0
      %v1190 = vpop.f32.mrf.mxu0
      %v1191 = vadd.f32 0.0, %v1190
      %v1192 = vpop.f32.mrf.mxu0
      %1193 = vmatprep.mubr.bf16.mxu0 0
      %1194 = vmatmul.mubr.bf16.gmra.mxu0 %v693
      %v1195 = vpop.f32.mrf.mxu0
      %v1196 = vadd.f32 0.0, %v1195
      %v1197 = vpop.f32.mrf.mxu0
      %v1198 = vpop.f32.mrf.mxu0
      %v1199 = vpop.f32.mrf.mxu0
      %1200 = vmatprep.mubr.bf16.mxu0 0
      %1201 = vmatmul.mubr.bf16.gmra.mxu0 %v694
      %v1202 = vpop.f32.mrf.mxu0
      %v1203 = vadd.f32 0.0, %v1202
      %v1204 = vpop.f32.mrf.mxu0
      %v1205 = vpop.f32.mrf.mxu0
      %v1206 = vadd.f32 0.0, %v1205
      %v1207 = vpop.f32.mrf.mxu0
      %1208 = vmatprep.mubr.bf16.mxu0 0
      %1209 = vmatmul.mubr.bf16.gmra.mxu0 %v695
      %v1210 = vpop.f32.mrf.mxu0
      %v1211 = vpop.f32.mrf.mxu0
      %v1212 = vpop.f32.mrf.mxu0
      %v1213 = vadd.f32 0.0, %v1212
      %v1214 = vpop.f32.mrf.mxu0
      %1215 = vmatprep.mubr.bf16.mxu0 0
      %1216 = vmatmul.mubr.bf16.gmra.mxu0 %v696
      %v1217 = vpop.f32.mrf.mxu0
      %v1218 = vadd.f32 0.0, %v1217
      %v1219 = vpop.f32.mrf.mxu0
      %v1220 = vpop.f32.mrf.mxu0
      %v1221 = vpop.f32.mrf.mxu0
      %1222 = vmatprep.mubr.bf16.mxu0 0
      %1223 = vmatmul.mubr.bf16.gmra.mxu0 %v697
      %v1224 = vpop.f32.mrf.mxu0
      %v1225 = vadd.f32 0.0, %v1224
      %v1226 = vpop.f32.mrf.mxu0
      %v1227 = vpop.f32.mrf.mxu0
      %v1228 = vadd.f32 0.0, %v1227
      %v1229 = vpop.f32.mrf.mxu0
      %1230 = vmatprep.mubr.bf16.mxu0 0
      %1231 = vmatmul.mubr.bf16.gmra.mxu0 %v698
      %v1232 = vpop.f32.mrf.mxu0
      %v1233 = vpop.f32.mrf.mxu0
      %v1234 = vpop.f32.mrf.mxu0
      %v1235 = vadd.f32 0.0, %v1234
      %v1236 = vpop.f32.mrf.mxu0
      %1237 = vmatprep.mubr.bf16.mxu0 0
      %1238 = vmatmul.mubr.bf16.gmra.mxu0 %v699
      %v1239 = vpop.f32.mrf.mxu0
      %v1240 = vadd.f32 0.0, %v1239
      %v1241 = vpop.f32.mrf.mxu0
      %v1242 = vpop.f32.mrf.mxu0
      %v1243 = vpop.f32.mrf.mxu0
      %1244 = vmatprep.mubr.bf16.mxu0 0
      %1245 = vmatmul.mubr.bf16.gmra.mxu0 %v1004
      %v1246 = vpop.f32.mrf.mxu0
      %v1247 = vadd.f32 0.0, %v1246
      %v1248 = vpop.f32.mrf.mxu0
      %v1249 = vpop.f32.mrf.mxu0
      %v1250 = vadd.f32 0.0, %v1249
      %v1251 = vpop.f32.mrf.mxu0
      %1252 = vmatprep.mubr.bf16.mxu0 0
      %1253 = vmatmul.mubr.bf16.gmra.mxu0 %v1005
      %v1254 = vpop.f32.mrf.mxu0
      %v1255 = vpop.f32.mrf.mxu0
      %v1256 = vpop.f32.mrf.mxu0
      %v1257 = vadd.f32 0.0, %v1256
      %v1258 = vpop.f32.mrf.mxu0
      %1259 = vmatprep.mubr.bf16.mxu0 0
      %1260 = vmatmul.mubr.bf16.gmra.mxu0 %v1006
      %v1261 = vpop.f32.mrf.mxu0
      %v1262 = vadd.f32 0.0, %v1261
      %v1263 = vpop.f32.mrf.mxu0
      %v1264 = vpop.f32.mrf.mxu0
      %v1265 = vpop.f32.mrf.mxu0
      %1266 = vdwg.mxu0
      %v1267 = vadd.f32 %v807, %v1093
      %v1268 = vadd.f32 %v810, %v1096
      %v1269 = vadd.f32 %v817, %v1103
      %v1270 = vadd.f32 %v822, %v1108
      %v1271 = vadd.f32 %v829, %v1115
      %v1272 = vadd.f32 %v832, %v1118
      %v1273 = vadd.f32 %v839, %v1125
      %v1274 = vadd.f32 %v844, %v1130
      %v1275 = vadd.f32 %v851, %v1137
      %v1276 = vadd.f32 %v854, %v1140
      %v1277 = vadd.f32 %v861, %v1147
      %v1278 = vadd.f32 %v866, %v1152
      %v1279 = vadd.f32 %v873, %v1159
      %v1280 = vadd.f32 %v876, %v1162
      %v1281 = vadd.f32 %v883, %v1169
      %v1282 = vadd.f32 %v888, %v1174
      %v1283 = vadd.f32 %v895, %v1181
      %v1284 = vadd.f32 %v898, %v1184
      %v1285 = vadd.f32 %v905, %v1191
      %v1286 = vadd.f32 %v910, %v1196
      %v1287 = vadd.f32 %v917, %v1203
      %v1288 = vadd.f32 %v920, %v1206
      %v1289 = vadd.f32 %v927, %v1213
      %v1290 = vadd.f32 %v932, %v1218
      %v1291 = vadd.f32 %v939, %v1225
      %v1292 = vadd.f32 %v942, %v1228
      %v1293 = vadd.f32 %v949, %v1235
      %v1294 = vadd.f32 %v954, %v1240
      %v1295 = vadd.f32 %v961, %v1247
      %v1296 = vadd.f32 %v964, %v1250
      %v1297 = vadd.f32 %v971, %v1257
      %v1298 = vadd.f32 %v976, %v1262
      %v1299 = vld [vmem:[%s168] sm:$0xf]
      %v1300 = vld [vmem:[%s168 + $0x4] sm:$0xf]
      %v1301 = vld [vmem:[%s168 + $0x8] sm:$0xf]
      %v1302 = vld [vmem:[%s168 + $0xc] sm:$0xf]
      %v1303 = vld [vmem:[%s168 + $0x10] sm:$0xf]
      %v1304 = vld [vmem:[%s168 + $0x14] sm:$0xf]
      %v1305 = vld [vmem:[%s168 + $0x18] sm:$0xf]
      %v1306 = vld [vmem:[%s168 + $0x1c] sm:$0xf]
      %v1307 = vld [vmem:[%s168 + $0x20] sm:$0xf]
      %v1308 = vld [vmem:[%s168 + $0x24] sm:$0xf]
      %v1309 = vld [vmem:[%s168 + $0x28] sm:$0xf]
      %v1310 = vld [vmem:[%s168 + $0x2c] sm:$0xf]
      %v1311 = vld [vmem:[%s168 + $0x30] sm:$0xf]
      %v1312 = vld [vmem:[%s168 + $0x34] sm:$0xf]
      %v1313 = vld [vmem:[%s168 + $0x38] sm:$0xf]
      %v1314 = vld [vmem:[%s168 + $0x3c] sm:$0xf]
      %v1315 = vld [vmem:[%s168 + $0x40] sm:$0xf]
      %v1316 = vld [vmem:[%s168 + $0x44] sm:$0xf]
      %v1317 = vld [vmem:[%s168 + $0x48] sm:$0xf]
      %v1318 = vld [vmem:[%s168 + $0x4c] sm:$0xf]
      %v1319 = vld [vmem:[%s168 + $0x50] sm:$0xf]
      %v1320 = vld [vmem:[%s168 + $0x54] sm:$0xf]
      %v1321 = vld [vmem:[%s168 + $0x58] sm:$0xf]
      %v1322 = vld [vmem:[%s168 + $0x5c] sm:$0xf]
      %v1323 = vld [vmem:[%s168 + $0x60] sm:$0xf]
      %v1324 = vld [vmem:[%s168 + $0x64] sm:$0xf]
      %v1325 = vld [vmem:[%s168 + $0x68] sm:$0xf]
      %v1326 = vld [vmem:[%s168 + $0x6c] sm:$0xf]
      %v1327 = vld [vmem:[%s168 + $0x70] sm:$0xf]
      %v1328 = vld [vmem:[%s168 + $0x74] sm:$0xf]
      %v1329 = vld [vmem:[%s168 + $0x78] sm:$0xf]
      %v1330 = vld [vmem:[%s168 + $0x7c] sm:$0xf]
      %v1331 = vld [vmem:[%s168 + $0x80] sm:$0xf]
      %v1332 = vld [vmem:[%s168 + $0x84] sm:$0xf]
      %v1333 = vld [vmem:[%s168 + $0x88] sm:$0xf]
      %v1334 = vld [vmem:[%s168 + $0x8c] sm:$0xf]
      %v1335 = vld [vmem:[%s168 + $0x90] sm:$0xf]
      %v1336 = vld [vmem:[%s168 + $0x94] sm:$0xf]
      %v1337 = vld [vmem:[%s168 + $0x98] sm:$0xf]
      %v1338 = vld [vmem:[%s168 + $0x9c] sm:$0xf]
      %v1339 = vld [vmem:[%s168 + $0xa0] sm:$0xf]
      %v1340 = vld [vmem:[%s168 + $0xa4] sm:$0xf]
      %v1341 = vld [vmem:[%s168 + $0xa8] sm:$0xf]
      %v1342 = vld [vmem:[%s168 + $0xac] sm:$0xf]
      %v1343 = vld [vmem:[%s168 + $0xb0] sm:$0xf]
      %v1344 = vld [vmem:[%s168 + $0xb4] sm:$0xf]
      %v1345 = vld [vmem:[%s168 + $0xb8] sm:$0xf]
      %v1346 = vld [vmem:[%s168 + $0xbc] sm:$0xf]
      %v1347 = vld [vmem:[%s168 + $0xc0] sm:$0xf]
      %v1348 = vld [vmem:[%s168 + $0xc4] sm:$0xf]
      %v1349 = vld [vmem:[%s168 + $0xc8] sm:$0xf]
      %v1350 = vld [vmem:[%s168 + $0xcc] sm:$0xf]
      %v1351 = vld [vmem:[%s168 + $0xd0] sm:$0xf]
      %v1352 = vld [vmem:[%s168 + $0xd4] sm:$0xf]
      %v1353 = vld [vmem:[%s168 + $0xd8] sm:$0x1]
      %s1354 = scalar_lea.vmem %s172, 64
      %v1355 = vld [vmem:[%s1354] sm:$0xf]
      %v1356 = vld [vmem:[%s1354 + $0x4] sm:$0xf]
      %v1357 = vld [vmem:[%s1354 + $0x8] sm:$0xf]
      %v1358 = vld [vmem:[%s1354 + $0xc] sm:$0xf]
      %v1359 = vld [vmem:[%s1354 + $0x10] sm:$0xf]
      %v1360 = vld [vmem:[%s1354 + $0x14] sm:$0xf]
      %v1361 = vld [vmem:[%s1354 + $0x18] sm:$0xf]
      %v1362 = vld [vmem:[%s1354 + $0x1c] sm:$0xf]
      %v1363 = vld [vmem:[%s1354 + $0x20] sm:$0xf]
      %v1364 = vld [vmem:[%s1354 + $0x24] sm:$0xf]
      %v1365 = vld [vmem:[%s1354 + $0x28] sm:$0xf]
      %v1366 = vld [vmem:[%s1354 + $0x2c] sm:$0xf]
      %v1367 = vld [vmem:[%s1354 + $0x30] sm:$0xf]
      %v1368 = vld [vmem:[%s1354 + $0x34] sm:$0xf]
      %v1369 = vld [vmem:[%s1354 + $0x38] sm:$0xf]
      %v1370 = vld [vmem:[%s1354 + $0x3c] sm:$0xf]
      %v1420 = vunpack.c.l.b16 %v1299
      %v1421 = vunpack.c.l.b16 %v1300
      %v1422 = vunpack.c.l.b16 %v1301
      %v1423 = vunpack.c.l.b16 %v1302
      %v1424 = vunpack.c.l.b16 %v1303
      %v1425 = vunpack.c.l.b16 %v1304
      %v1426 = vunpack.c.l.b16 %v1305
      %v1427 = vunpack.c.l.b16 %v1306
      %v1428 = vunpack.c.l.b16 %v1307
      %v1429 = vunpack.c.l.b16 %v1308
      %v1430 = vunpack.c.l.b16 %v1309
      %v1431 = vunpack.c.l.b16 %v1310
      %v1432 = vunpack.c.l.b16 %v1311
      %v1433 = vunpack.c.l.b16 %v1312
      %v1434 = vunpack.c.l.b16 %v1313
      %v1435 = vunpack.c.l.b16 %v1314
      %v1436 = vunpack.c.l.b16 %v1315
      %v1437 = vunpack.c.l.b16 %v1316
      %v1438 = vunpack.c.l.b16 %v1317
      %v1439 = vunpack.c.l.b16 %v1318
      %v1440 = vunpack.c.l.b16 %v1319
      %v1441 = vunpack.c.l.b16 %v1320
      %v1442 = vunpack.c.l.b16 %v1321
      %v1443 = vunpack.c.l.b16 %v1322
      %v1444 = vunpack.c.l.b16 %v1323
      %v1445 = vunpack.c.l.b16 %v1324
      %v1446 = vunpack.c.l.b16 %v1325
      %v1447 = vunpack.c.l.b16 %v1326
      %v1448 = vunpack.c.l.b16 %v1327
      %v1449 = vunpack.c.l.b16 %v1328
      %v1450 = vunpack.c.l.b16 %v1329
      %v1451 = vunpack.c.l.b16 %v1330
      %v1452 = vunpack.c.l.b16 %v1331
      %v1453 = vunpack.c.l.b16 %v1332
      %v1454 = vunpack.c.l.b16 %v1333
      %v1455 = vunpack.c.l.b16 %v1334
      %v1456 = vunpack.c.l.b16 %v1335
      %v1457 = vunpack.c.l.b16 %v1336
      %v1458 = vunpack.c.l.b16 %v1337
      %v1459 = vunpack.c.l.b16 %v1338
      %v1460 = vunpack.c.l.b16 %v1339
      %v1461 = vunpack.c.l.b16 %v1340
      %v1462 = vunpack.c.l.b16 %v1341
      %v1463 = vunpack.c.l.b16 %v1342
      %v1464 = vunpack.c.l.b16 %v1343
      %v1465 = vunpack.c.l.b16 %v1344
      %v1466 = vunpack.c.l.b16 %v1345
      %v1467 = vunpack.c.l.b16 %v1346
      %v1468 = vunpack.c.l.b16 %v1347
      %v1469 = vpack.c.b16 %v1421, %v1420
      %v1470 = vpack.c.b16 %v1423, %v1422
      %v1471 = vpack.c.b16 %v1425, %v1424
      %v1472 = vpack.c.b16 %v1427, %v1426
      %v1473 = vpack.c.b16 %v1429, %v1428
      %v1474 = vpack.c.b16 %v1431, %v1430
      %v1475 = vpack.c.b16 %v1433, %v1432
      %v1476 = vpack.c.b16 %v1435, %v1434
      %v1477 = vpack.c.b16 %v1437, %v1436
      %v1478 = vpack.c.b16 %v1439, %v1438
      %v1479 = vpack.c.b16 %v1441, %v1440
      %v1480 = vpack.c.b16 %v1443, %v1442
      %v1481 = vpack.c.b16 %v1445, %v1444
      %v1482 = vpack.c.b16 %v1447, %v1446
      %v1483 = vpack.c.b16 %v1449, %v1448
      %v1484 = vpack.c.b16 %v1451, %v1450
      %v1485 = vpack.c.b16 %v1453, %v1452
      %v1486 = vpack.c.b16 %v1455, %v1454
      %v1487 = vpack.c.b16 %v1457, %v1456
      %v1488 = vpack.c.b16 %v1459, %v1458
      %v1489 = vpack.c.b16 %v1461, %v1460
      %v1490 = vpack.c.b16 %v1463, %v1462
      %v1491 = vpack.c.b16 %v1465, %v1464
      %v1492 = vpack.c.b16 %v1467, %v1466
      %v1493 = vpack.c.b16 %v1468, %v1468
      %vm1494 = vsmask.f32 7424
      %v1496 = vshrl.u32 %v1469, 16
      %v1498 = vshll.u32 %v1469, 16
      %v1500 = vrot.slane %v1498, 1
      %v1501 = vor.u32 %v1496, %v1500
      %v1503 = vshll.u32 %v1470, 16
      %v1505 = vrot.slane %v1503, 1
      %v1506 = vsel %vm1494, %v1501, %v1505
      %v1507 = vshrl.u32 %v1470, 16
      %v1509 = vor.u32 %v1507, %v1505
      %v1511 = vshll.u32 %v1471, 16
      %v1513 = vrot.slane %v1511, 1
      %v1514 = vsel %vm1494, %v1509, %v1513
      %v1515 = vshrl.u32 %v1471, 16
      %v1517 = vor.u32 %v1515, %v1513
      %v1519 = vshll.u32 %v1472, 16
      %v1521 = vrot.slane %v1519, 1
      %v1522 = vsel %vm1494, %v1517, %v1521
      %v1523 = vshrl.u32 %v1472, 16
      %v1525 = vor.u32 %v1523, %v1521
      %v1527 = vshll.u32 %v1473, 16
      %v1529 = vrot.slane %v1527, 1
      %v1530 = vsel %vm1494, %v1525, %v1529
      %v1531 = vshrl.u32 %v1473, 16
      %v1533 = vor.u32 %v1531, %v1529
      %v1535 = vshll.u32 %v1474, 16
      %v1537 = vrot.slane %v1535, 1
      %v1538 = vsel %vm1494, %v1533, %v1537
      %v1539 = vshrl.u32 %v1474, 16
      %v1541 = vor.u32 %v1539, %v1537
      %v1543 = vshll.u32 %v1475, 16
      %v1545 = vrot.slane %v1543, 1
      %v1546 = vsel %vm1494, %v1541, %v1545
      %v1547 = vshrl.u32 %v1475, 16
      %v1549 = vor.u32 %v1547, %v1545
      %v1551 = vshll.u32 %v1476, 16
      %v1553 = vrot.slane %v1551, 1
      %v1554 = vsel %vm1494, %v1549, %v1553
      %v1555 = vshrl.u32 %v1476, 16
      %v1557 = vor.u32 %v1555, %v1553
      %v1559 = vshll.u32 %v1477, 16
      %v1561 = vrot.slane %v1559, 1
      %v1562 = vsel %vm1494, %v1557, %v1561
      %v1563 = vshrl.u32 %v1477, 16
      %v1565 = vor.u32 %v1563, %v1561
      %v1567 = vshll.u32 %v1478, 16
      %v1569 = vrot.slane %v1567, 1
      %v1570 = vsel %vm1494, %v1565, %v1569
      %v1571 = vshrl.u32 %v1478, 16
      %v1573 = vor.u32 %v1571, %v1569
      %v1575 = vshll.u32 %v1479, 16
      %v1577 = vrot.slane %v1575, 1
      %v1578 = vsel %vm1494, %v1573, %v1577
      %v1579 = vshrl.u32 %v1479, 16
      %v1581 = vor.u32 %v1579, %v1577
      %v1583 = vshll.u32 %v1480, 16
      %v1585 = vrot.slane %v1583, 1
      %v1586 = vsel %vm1494, %v1581, %v1585
      %v1587 = vshrl.u32 %v1480, 16
      %v1589 = vor.u32 %v1587, %v1585
      %v1591 = vshll.u32 %v1481, 16
      %v1593 = vrot.slane %v1591, 1
      %v1594 = vsel %vm1494, %v1589, %v1593
      %v1595 = vshrl.u32 %v1481, 16
      %v1597 = vor.u32 %v1595, %v1593
      %v1599 = vshll.u32 %v1482, 16
      %v1601 = vrot.slane %v1599, 1
      %v1602 = vsel %vm1494, %v1597, %v1601
      %v1603 = vshrl.u32 %v1482, 16
      %v1605 = vor.u32 %v1603, %v1601
      %v1607 = vshll.u32 %v1483, 16
      %v1609 = vrot.slane %v1607, 1
      %v1610 = vsel %vm1494, %v1605, %v1609
      %v1611 = vshrl.u32 %v1483, 16
      %v1613 = vor.u32 %v1611, %v1609
      %v1615 = vshll.u32 %v1484, 16
      %v1617 = vrot.slane %v1615, 1
      %v1618 = vsel %vm1494, %v1613, %v1617
      %v1619 = vshrl.u32 %v1484, 16
      %v1621 = vor.u32 %v1619, %v1617
      %v1623 = vshll.u32 %v1485, 16
      %v1625 = vrot.slane %v1623, 1
      %v1626 = vsel %vm1494, %v1621, %v1625
      %v1627 = vshrl.u32 %v1485, 16
      %v1629 = vor.u32 %v1627, %v1625
      %v1631 = vshll.u32 %v1486, 16
      %v1633 = vrot.slane %v1631, 1
      %v1634 = vsel %vm1494, %v1629, %v1633
      %v1635 = vshrl.u32 %v1486, 16
      %v1637 = vor.u32 %v1635, %v1633
      %v1639 = vshll.u32 %v1487, 16
      %v1641 = vrot.slane %v1639, 1
      %v1642 = vsel %vm1494, %v1637, %v1641
      %v1643 = vshrl.u32 %v1487, 16
      %v1645 = vor.u32 %v1643, %v1641
      %v1647 = vshll.u32 %v1488, 16
      %v1649 = vrot.slane %v1647, 1
      %v1650 = vsel %vm1494, %v1645, %v1649
      %v1651 = vshrl.u32 %v1488, 16
      %v1653 = vor.u32 %v1651, %v1649
      %v1655 = vshll.u32 %v1489, 16
      %v1657 = vrot.slane %v1655, 1
      %v1658 = vsel %vm1494, %v1653, %v1657
      %v1659 = vshrl.u32 %v1489, 16
      %v1661 = vor.u32 %v1659, %v1657
      %v1663 = vshll.u32 %v1490, 16
      %v1665 = vrot.slane %v1663, 1
      %v1666 = vsel %vm1494, %v1661, %v1665
      %v1667 = vshrl.u32 %v1490, 16
      %v1669 = vor.u32 %v1667, %v1665
      %v1671 = vshll.u32 %v1491, 16
      %v1673 = vrot.slane %v1671, 1
      %v1674 = vsel %vm1494, %v1669, %v1673
      %v1675 = vshrl.u32 %v1491, 16
      %v1677 = vor.u32 %v1675, %v1673
      %v1679 = vshll.u32 %v1492, 16
      %v1681 = vrot.slane %v1679, 1
      %v1682 = vsel %vm1494, %v1677, %v1681
      %v1683 = vshrl.u32 %v1492, 16
      %v1685 = vor.u32 %v1683, %v1681
      %v1687 = vshll.u32 %v1493, 16
      %v1689 = vrot.slane %v1687, 1
      %v1690 = vsel %vm1494, %v1685, %v1689
      %v1731 = vunpack.c.l.b16 %v1355
      %v1732 = vunpack.c.l.b16 %v1356
      %v1733 = vunpack.c.l.b16 %v1357
      %v1734 = vunpack.c.l.b16 %v1358
      %v1735 = vunpack.c.l.b16 %v1359
      %v1736 = vunpack.c.l.b16 %v1360
      %v1737 = vunpack.c.l.b16 %v1361
      %v1738 = vunpack.c.l.b16 %v1362
      %v1739 = vunpack.c.l.b16 %v1363
      %v1740 = vunpack.c.l.b16 %v1364
      %v1741 = vunpack.c.l.b16 %v1365
      %v1742 = vunpack.c.l.b16 %v1366
      %v1743 = vunpack.c.l.b16 %v1367
      %v1744 = vunpack.c.l.b16 %v1368
      %v1745 = vunpack.c.l.b16 %v1369
      %v1746 = vunpack.c.l.b16 %v1370
      %v1747 = vpack.c.b16 %v1732, %v1731
      %v1748 = vpack.c.b16 %v1734, %v1733
      %v1749 = vpack.c.b16 %v1736, %v1735
      %v1750 = vpack.c.b16 %v1738, %v1737
      %v1751 = vpack.c.b16 %v1740, %v1739
      %v1752 = vpack.c.b16 %v1742, %v1741
      %v1753 = vpack.c.b16 %v1744, %v1743
      %v1754 = vpack.c.b16 %v1746, %v1745
      %1763 = vmatprep.subr.bf16.mxu0 0
      %1764 = vmatpush1.bf16.msra.mxu0 %v1754
      %1765 = vmatprep.subr.bf16.mxu0 0
      %1766 = vmatpush1.bf16.msra.mxu0 %v1753
      %1767 = vmatprep.subr.bf16.mxu0 0
      %1768 = vmatpush1.bf16.msra.mxu0 %v1752
      %1769 = vmatprep.subr.bf16.mxu0 0
      %1770 = vmatpush1.bf16.msra.mxu0 %v1751
      %1771 = vmatprep.subr.bf16.mxu0 0
      %1772 = vmatpush1.bf16.msra.mxu0 %v1750
      %1773 = vmatprep.subr.bf16.mxu0 0
      %1774 = vmatpush1.bf16.msra.mxu0 %v1749
      %1775 = vmatprep.subr.bf16.mxu0 0
      %1776 = vmatpush1.bf16.msra.mxu0 %v1748
      %1777 = vmatprep.subr.bf16.mxu0 0
      %1778 = vmatpush1.bf16.msra.mxu0 %v1747
      %1779 = vmatprep.subr.bf16.mxu0 0
      %1780 = vmatpush2.bf16.msra.mxu0 0
      %1781 = vmatprep.subr.bf16.mxu0 0
      %1782 = vmatpush2.bf16.msra.mxu0 0
      %1783 = vmatprep.subr.bf16.mxu0 0
      %1784 = vmatpush2.bf16.msra.mxu0 0
      %1785 = vmatprep.subr.bf16.mxu0 0
      %1786 = vmatpush2.bf16.msra.mxu0 0
      %1787 = vmatprep.subr.bf16.mxu0 0
      %1788 = vmatpush2.bf16.msra.mxu0 0
      %1789 = vmatprep.subr.bf16.mxu0 0
      %1790 = vmatpush2.bf16.msra.mxu0 0
      %1791 = vmatprep.subr.bf16.mxu0 0
      %1792 = vmatpush2.bf16.msra.mxu0 0
      %1793 = vmatprep.subr.bf16.mxu0 0
      %1794 = vmatpush2.bf16.msra.mxu0 0
      %1795 = vmatprep.mubr.bf16.mxu0 0
      %1796 = vmatmul.mubr.bf16.gmra.mxu0 %v1506
      %v1797 = vpop.f32.mrf.mxu0
      %v1798 = vadd.f32 0.0, %v1797
      %v1799 = vpop.f32.mrf.mxu0
      %v1800 = vpop.f32.mrf.mxu0
      %v1801 = vadd.f32 0.0, %v1800
      %v1802 = vpop.f32.mrf.mxu0
      %1803 = vmatprep.mubr.bf16.mxu0 0
      %1804 = vmatmul.mubr.bf16.gmra.mxu0 %v1514
      %v1805 = vpop.f32.mrf.mxu0
      %v1806 = vpop.f32.mrf.mxu0
      %v1807 = vpop.f32.mrf.mxu0
      %v1808 = vadd.f32 0.0, %v1807
      %v1809 = vpop.f32.mrf.mxu0
      %1810 = vmatprep.mubr.bf16.mxu0 0
      %1811 = vmatmul.mubr.bf16.gmra.mxu0 %v1522
      %v1812 = vpop.f32.mrf.mxu0
      %v1813 = vadd.f32 0.0, %v1812
      %v1814 = vpop.f32.mrf.mxu0
      %v1815 = vpop.f32.mrf.mxu0
      %v1816 = vpop.f32.mrf.mxu0
      %1817 = vmatprep.mubr.bf16.mxu0 0
      %1818 = vmatmul.mubr.bf16.gmra.mxu0 %v1530
      %v1819 = vpop.f32.mrf.mxu0
      %v1820 = vadd.f32 0.0, %v1819
      %v1821 = vpop.f32.mrf.mxu0
      %v1822 = vpop.f32.mrf.mxu0
      %v1823 = vadd.f32 0.0, %v1822
      %v1824 = vpop.f32.mrf.mxu0
      %1825 = vmatprep.mubr.bf16.mxu0 0
      %1826 = vmatmul.mubr.bf16.gmra.mxu0 %v1538
      %v1827 = vpop.f32.mrf.mxu0
      %v1828 = vpop.f32.mrf.mxu0
      %v1829 = vpop.f32.mrf.mxu0
      %v1830 = vadd.f32 0.0, %v1829
      %v1831 = vpop.f32.mrf.mxu0
      %1832 = vmatprep.mubr.bf16.mxu0 0
      %1833 = vmatmul.mubr.bf16.gmra.mxu0 %v1546
      %v1834 = vpop.f32.mrf.mxu0
      %v1835 = vadd.f32 0.0, %v1834
      %v1836 = vpop.f32.mrf.mxu0
      %v1837 = vpop.f32.mrf.mxu0
      %v1838 = vpop.f32.mrf.mxu0
      %1839 = vmatprep.mubr.bf16.mxu0 0
      %1840 = vmatmul.mubr.bf16.gmra.mxu0 %v1554
      %v1841 = vpop.f32.mrf.mxu0
      %v1842 = vadd.f32 0.0, %v1841
      %v1843 = vpop.f32.mrf.mxu0
      %v1844 = vpop.f32.mrf.mxu0
      %v1845 = vadd.f32 0.0, %v1844
      %v1846 = vpop.f32.mrf.mxu0
      %1847 = vmatprep.mubr.bf16.mxu0 0
      %1848 = vmatmul.mubr.bf16.gmra.mxu0 %v1562
      %v1849 = vpop.f32.mrf.mxu0
      %v1850 = vpop.f32.mrf.mxu0
      %v1851 = vpop.f32.mrf.mxu0
      %v1852 = vadd.f32 0.0, %v1851
      %v1853 = vpop.f32.mrf.mxu0
      %1854 = vmatprep.mubr.bf16.mxu0 0
      %1855 = vmatmul.mubr.bf16.gmra.mxu0 %v1570
      %v1856 = vpop.f32.mrf.mxu0
      %v1857 = vadd.f32 0.0, %v1856
      %v1858 = vpop.f32.mrf.mxu0
      %v1859 = vpop.f32.mrf.mxu0
      %v1860 = vpop.f32.mrf.mxu0
      %1861 = vmatprep.mubr.bf16.mxu0 0
      %1862 = vmatmul.mubr.bf16.gmra.mxu0 %v1578
      %v1863 = vpop.f32.mrf.mxu0
      %v1864 = vadd.f32 0.0, %v1863
      %v1865 = vpop.f32.mrf.mxu0
      %v1866 = vpop.f32.mrf.mxu0
      %v1867 = vadd.f32 0.0, %v1866
      %v1868 = vpop.f32.mrf.mxu0
      %1869 = vmatprep.mubr.bf16.mxu0 0
      %1870 = vmatmul.mubr.bf16.gmra.mxu0 %v1586
      %v1871 = vpop.f32.mrf.mxu0
      %v1872 = vpop.f32.mrf.mxu0
      %v1873 = vpop.f32.mrf.mxu0
      %v1874 = vadd.f32 0.0, %v1873
      %v1875 = vpop.f32.mrf.mxu0
      %1876 = vmatprep.mubr.bf16.mxu0 0
      %1877 = vmatmul.mubr.bf16.gmra.mxu0 %v1594
      %v1878 = vpop.f32.mrf.mxu0
      %v1879 = vadd.f32 0.0, %v1878
      %v1880 = vpop.f32.mrf.mxu0
      %v1881 = vpop.f32.mrf.mxu0
      %v1882 = vpop.f32.mrf.mxu0
      %1883 = vmatprep.mubr.bf16.mxu0 0
      %1884 = vmatmul.mubr.bf16.gmra.mxu0 %v1602
      %v1885 = vpop.f32.mrf.mxu0
      %v1886 = vadd.f32 0.0, %v1885
      %v1887 = vpop.f32.mrf.mxu0
      %v1888 = vpop.f32.mrf.mxu0
      %v1889 = vadd.f32 0.0, %v1888
      %v1890 = vpop.f32.mrf.mxu0
      %1891 = vmatprep.mubr.bf16.mxu0 0
      %1892 = vmatmul.mubr.bf16.gmra.mxu0 %v1610
      %v1893 = vpop.f32.mrf.mxu0
      %v1894 = vpop.f32.mrf.mxu0
      %v1895 = vpop.f32.mrf.mxu0
      %v1896 = vadd.f32 0.0, %v1895
      %v1897 = vpop.f32.mrf.mxu0
      %1898 = vmatprep.mubr.bf16.mxu0 0
      %1899 = vmatmul.mubr.bf16.gmra.mxu0 %v1618
      %v1900 = vpop.f32.mrf.mxu0
      %v1901 = vadd.f32 0.0, %v1900
      %v1902 = vpop.f32.mrf.mxu0
      %v1903 = vpop.f32.mrf.mxu0
      %v1904 = vpop.f32.mrf.mxu0
      %1905 = vmatprep.mubr.bf16.mxu0 0
      %1906 = vmatmul.mubr.bf16.gmra.mxu0 %v1626
      %v1907 = vpop.f32.mrf.mxu0
      %v1908 = vadd.f32 0.0, %v1907
      %v1909 = vpop.f32.mrf.mxu0
      %v1910 = vpop.f32.mrf.mxu0
      %v1911 = vadd.f32 0.0, %v1910
      %v1912 = vpop.f32.mrf.mxu0
      %1913 = vmatprep.mubr.bf16.mxu0 0
      %1914 = vmatmul.mubr.bf16.gmra.mxu0 %v1634
      %v1915 = vpop.f32.mrf.mxu0
      %v1916 = vpop.f32.mrf.mxu0
      %v1917 = vpop.f32.mrf.mxu0
      %v1918 = vadd.f32 0.0, %v1917
      %v1919 = vpop.f32.mrf.mxu0
      %1920 = vmatprep.mubr.bf16.mxu0 0
      %1921 = vmatmul.mubr.bf16.gmra.mxu0 %v1642
      %v1922 = vpop.f32.mrf.mxu0
      %v1923 = vadd.f32 0.0, %v1922
      %v1924 = vpop.f32.mrf.mxu0
      %v1925 = vpop.f32.mrf.mxu0
      %v1926 = vpop.f32.mrf.mxu0
      %1927 = vmatprep.mubr.bf16.mxu0 0
      %1928 = vmatmul.mubr.bf16.gmra.mxu0 %v1650
      %v1929 = vpop.f32.mrf.mxu0
      %v1930 = vadd.f32 0.0, %v1929
      %v1931 = vpop.f32.mrf.mxu0
      %v1932 = vpop.f32.mrf.mxu0
      %v1933 = vadd.f32 0.0, %v1932
      %v1934 = vpop.f32.mrf.mxu0
      %1935 = vmatprep.mubr.bf16.mxu0 0
      %1936 = vmatmul.mubr.bf16.gmra.mxu0 %v1658
      %v1937 = vpop.f32.mrf.mxu0
      %v1938 = vpop.f32.mrf.mxu0
      %v1939 = vpop.f32.mrf.mxu0
      %v1940 = vadd.f32 0.0, %v1939
      %v1941 = vpop.f32.mrf.mxu0
      %1942 = vmatprep.mubr.bf16.mxu0 0
      %1943 = vmatmul.mubr.bf16.gmra.mxu0 %v1666
      %v1944 = vpop.f32.mrf.mxu0
      %v1945 = vadd.f32 0.0, %v1944
      %v1946 = vpop.f32.mrf.mxu0
      %v1947 = vpop.f32.mrf.mxu0
      %v1948 = vpop.f32.mrf.mxu0
      %1949 = vmatprep.mubr.bf16.mxu0 0
      %1950 = vmatmul.mubr.bf16.gmra.mxu0 %v1674
      %v1951 = vpop.f32.mrf.mxu0
      %v1952 = vadd.f32 0.0, %v1951
      %v1953 = vpop.f32.mrf.mxu0
      %v1954 = vpop.f32.mrf.mxu0
      %v1955 = vadd.f32 0.0, %v1954
      %v1956 = vpop.f32.mrf.mxu0
      %1957 = vmatprep.mubr.bf16.mxu0 0
      %1958 = vmatmul.mubr.bf16.gmra.mxu0 %v1682
      %v1959 = vpop.f32.mrf.mxu0
      %v1960 = vpop.f32.mrf.mxu0
      %v1961 = vpop.f32.mrf.mxu0
      %v1962 = vadd.f32 0.0, %v1961
      %v1963 = vpop.f32.mrf.mxu0
      %1964 = vmatprep.mubr.bf16.mxu0 0
      %1965 = vmatmul.mubr.bf16.gmra.mxu0 %v1690
      %v1966 = vpop.f32.mrf.mxu0
      %v1967 = vadd.f32 0.0, %v1966
      %v1968 = vpop.f32.mrf.mxu0
      %v1969 = vpop.f32.mrf.mxu0
      %v1970 = vpop.f32.mrf.mxu0
      %1971 = vdwg.mxu0
      %v1972 = vadd.f32 %v1267, %v1798
      %v1973 = vadd.f32 %v1268, %v1801
      %v1974 = vadd.f32 %v1269, %v1808
      %v1975 = vadd.f32 %v1270, %v1813
      %v1976 = vadd.f32 %v1271, %v1820
      %v1977 = vadd.f32 %v1272, %v1823
      %v1978 = vadd.f32 %v1273, %v1830
      %v1979 = vadd.f32 %v1274, %v1835
      %v1980 = vadd.f32 %v1275, %v1842
      %v1981 = vadd.f32 %v1276, %v1845
      %v1982 = vadd.f32 %v1277, %v1852
      %v1983 = vadd.f32 %v1278, %v1857
      %v1984 = vadd.f32 %v1279, %v1864
      %v1985 = vadd.f32 %v1280, %v1867
      %v1986 = vadd.f32 %v1281, %v1874
      %v1987 = vadd.f32 %v1282, %v1879
      %v1988 = vadd.f32 %v1283, %v1886
      %v1989 = vadd.f32 %v1284, %v1889
      %v1990 = vadd.f32 %v1285, %v1896
      %v1991 = vadd.f32 %v1286, %v1901
      %v1992 = vadd.f32 %v1287, %v1908
      %v1993 = vadd.f32 %v1288, %v1911
      %v1994 = vadd.f32 %v1289, %v1918
      %v1995 = vadd.f32 %v1290, %v1923
      %v1996 = vadd.f32 %v1291, %v1930
      %v1997 = vadd.f32 %v1292, %v1933
      %v1998 = vadd.f32 %v1293, %v1940
      %v1999 = vadd.f32 %v1294, %v1945
      %v2000 = vadd.f32 %v1295, %v1952
      %v2001 = vadd.f32 %v1296, %v1955
      %v2002 = vadd.f32 %v1297, %v1962
      %v2003 = vadd.f32 %v1298, %v1967
      %s2004 = scalar_lea.vmem %s172, 256
      %v2005 = vld [vmem:[%s2004] sm:$0xf]
      %v2006 = vld [vmem:[%s2004 + $0x4] sm:$0xf]
      %v2007 = vld [vmem:[%s2004 + $0x8] sm:$0xf]
      %v2008 = vld [vmem:[%s2004 + $0xc] sm:$0xf]
      %v2009 = vld [vmem:[%s2004 + $0x10] sm:$0xf]
      %v2010 = vld [vmem:[%s2004 + $0x14] sm:$0xf]
      %v2011 = vld [vmem:[%s2004 + $0x18] sm:$0xf]
      %v2012 = vld [vmem:[%s2004 + $0x1c] sm:$0xf]
      %v2013 = vld [vmem:[%s2004 + $0x20] sm:$0xf]
      %v2014 = vld [vmem:[%s2004 + $0x24] sm:$0xf]
      %v2015 = vld [vmem:[%s2004 + $0x28] sm:$0xf]
      %v2016 = vld [vmem:[%s2004 + $0x2c] sm:$0xf]
      %v2017 = vld [vmem:[%s2004 + $0x30] sm:$0xf]
      %v2018 = vld [vmem:[%s2004 + $0x34] sm:$0xf]
      %v2019 = vld [vmem:[%s2004 + $0x38] sm:$0xf]
      %v2020 = vld [vmem:[%s2004 + $0x3c] sm:$0xf]
      %v2024 = vunpack.c.l.b16 %v1348
      %v2025 = vunpack.c.l.b16 %v1349
      %v2026 = vunpack.c.l.b16 %v1350
      %v2027 = vpack.c.b16 %v1424, %v1423
      %v2028 = vpack.c.b16 %v1426, %v1425
      %v2029 = vpack.c.b16 %v1428, %v1427
      %v2030 = vpack.c.b16 %v1430, %v1429
      %v2031 = vpack.c.b16 %v1432, %v1431
      %v2032 = vpack.c.b16 %v1434, %v1433
      %v2033 = vpack.c.b16 %v1436, %v1435
      %v2034 = vpack.c.b16 %v1438, %v1437
      %v2035 = vpack.c.b16 %v1440, %v1439
      %v2036 = vpack.c.b16 %v1442, %v1441
      %v2037 = vpack.c.b16 %v1444, %v1443
      %v2038 = vpack.c.b16 %v1446, %v1445
      %v2039 = vpack.c.b16 %v1448, %v1447
      %v2040 = vpack.c.b16 %v1450, %v1449
      %v2041 = vpack.c.b16 %v1452, %v1451
      %v2042 = vpack.c.b16 %v1454, %v1453
      %v2043 = vpack.c.b16 %v1456, %v1455
      %v2044 = vpack.c.b16 %v1458, %v1457
      %v2045 = vpack.c.b16 %v1460, %v1459
      %v2046 = vpack.c.b16 %v1462, %v1461
      %v2047 = vpack.c.b16 %v1464, %v1463
      %v2048 = vpack.c.b16 %v1466, %v1465
      %v2049 = vpack.c.b16 %v1468, %v1467
      %v2050 = vpack.c.b16 %v2025, %v2024
      %v2051 = vpack.c.b16 %v2026, %v2026
      %v2053 = vshrl.u32 %v2027, 16
      %v2055 = vshll.u32 %v2027, 16
      %v2057 = vrot.slane %v2055, 1
      %v2058 = vor.u32 %v2053, %v2057
      %v2060 = vshll.u32 %v2028, 16
      %v2062 = vrot.slane %v2060, 1
      %v2063 = vsel %vm1494, %v2058, %v2062
      %v2064 = vshrl.u32 %v2028, 16
      %v2066 = vor.u32 %v2064, %v2062
      %v2068 = vshll.u32 %v2029, 16
      %v2070 = vrot.slane %v2068, 1
      %v2071 = vsel %vm1494, %v2066, %v2070
      %v2072 = vshrl.u32 %v2029, 16
      %v2074 = vor.u32 %v2072, %v2070
      %v2076 = vshll.u32 %v2030, 16
      %v2078 = vrot.slane %v2076, 1
      %v2079 = vsel %vm1494, %v2074, %v2078
      %v2080 = vshrl.u32 %v2030, 16
      %v2082 = vor.u32 %v2080, %v2078
      %v2084 = vshll.u32 %v2031, 16
      %v2086 = vrot.slane %v2084, 1
      %v2087 = vsel %vm1494, %v2082, %v2086
      %v2088 = vshrl.u32 %v2031, 16
      %v2090 = vor.u32 %v2088, %v2086
      %v2092 = vshll.u32 %v2032, 16
      %v2094 = vrot.slane %v2092, 1
      %v2095 = vsel %vm1494, %v2090, %v2094
      %v2096 = vshrl.u32 %v2032, 16
      %v2098 = vor.u32 %v2096, %v2094
      %v2100 = vshll.u32 %v2033, 16
      %v2102 = vrot.slane %v2100, 1
      %v2103 = vsel %vm1494, %v2098, %v2102
      %v2104 = vshrl.u32 %v2033, 16
      %v2106 = vor.u32 %v2104, %v2102
      %v2108 = vshll.u32 %v2034, 16
      %v2110 = vrot.slane %v2108, 1
      %v2111 = vsel %vm1494, %v2106, %v2110
      %v2112 = vshrl.u32 %v2034, 16
      %v2114 = vor.u32 %v2112, %v2110
      %v2116 = vshll.u32 %v2035, 16
      %v2118 = vrot.slane %v2116, 1
      %v2119 = vsel %vm1494, %v2114, %v2118
      %v2120 = vshrl.u32 %v2035, 16
      %v2122 = vor.u32 %v2120, %v2118
      %v2124 = vshll.u32 %v2036, 16
      %v2126 = vrot.slane %v2124, 1
      %v2127 = vsel %vm1494, %v2122, %v2126
      %v2128 = vshrl.u32 %v2036, 16
      %v2130 = vor.u32 %v2128, %v2126
      %v2132 = vshll.u32 %v2037, 16
      %v2134 = vrot.slane %v2132, 1
      %v2135 = vsel %vm1494, %v2130, %v2134
      %v2136 = vshrl.u32 %v2037, 16
      %v2138 = vor.u32 %v2136, %v2134
      %v2140 = vshll.u32 %v2038, 16
      %v2142 = vrot.slane %v2140, 1
      %v2143 = vsel %vm1494, %v2138, %v2142
      %v2144 = vshrl.u32 %v2038, 16
      %v2146 = vor.u32 %v2144, %v2142
      %v2148 = vshll.u32 %v2039, 16
      %v2150 = vrot.slane %v2148, 1
      %v2151 = vsel %vm1494, %v2146, %v2150
      %v2152 = vshrl.u32 %v2039, 16
      %v2154 = vor.u32 %v2152, %v2150
      %v2156 = vshll.u32 %v2040, 16
      %v2158 = vrot.slane %v2156, 1
      %v2159 = vsel %vm1494, %v2154, %v2158
      %v2160 = vshrl.u32 %v2040, 16
      %v2162 = vor.u32 %v2160, %v2158
      %v2164 = vshll.u32 %v2041, 16
      %v2166 = vrot.slane %v2164, 1
      %v2167 = vsel %vm1494, %v2162, %v2166
      %v2168 = vshrl.u32 %v2041, 16
      %v2170 = vor.u32 %v2168, %v2166
      %v2172 = vshll.u32 %v2042, 16
      %v2174 = vrot.slane %v2172, 1
      %v2175 = vsel %vm1494, %v2170, %v2174
      %v2176 = vshrl.u32 %v2042, 16
      %v2178 = vor.u32 %v2176, %v2174
      %v2180 = vshll.u32 %v2043, 16
      %v2182 = vrot.slane %v2180, 1
      %v2183 = vsel %vm1494, %v2178, %v2182
      %v2184 = vshrl.u32 %v2043, 16
      %v2186 = vor.u32 %v2184, %v2182
      %v2188 = vshll.u32 %v2044, 16
      %v2190 = vrot.slane %v2188, 1
      %v2191 = vsel %vm1494, %v2186, %v2190
      %v2192 = vshrl.u32 %v2044, 16
      %v2194 = vor.u32 %v2192, %v2190
      %v2196 = vshll.u32 %v2045, 16
      %v2198 = vrot.slane %v2196, 1
      %v2199 = vsel %vm1494, %v2194, %v2198
      %v2200 = vshrl.u32 %v2045, 16
      %v2202 = vor.u32 %v2200, %v2198
      %v2204 = vshll.u32 %v2046, 16
      %v2206 = vrot.slane %v2204, 1
      %v2207 = vsel %vm1494, %v2202, %v2206
      %v2208 = vshrl.u32 %v2046, 16
      %v2210 = vor.u32 %v2208, %v2206
      %v2212 = vshll.u32 %v2047, 16
      %v2214 = vrot.slane %v2212, 1
      %v2215 = vsel %vm1494, %v2210, %v2214
      %v2216 = vshrl.u32 %v2047, 16
      %v2218 = vor.u32 %v2216, %v2214
      %v2220 = vshll.u32 %v2048, 16
      %v2222 = vrot.slane %v2220, 1
      %v2223 = vsel %vm1494, %v2218, %v2222
      %v2224 = vshrl.u32 %v2048, 16
      %v2226 = vor.u32 %v2224, %v2222
      %v2228 = vshll.u32 %v2049, 16
      %v2230 = vrot.slane %v2228, 1
      %v2231 = vsel %vm1494, %v2226, %v2230
      %v2232 = vshrl.u32 %v2049, 16
      %v2234 = vor.u32 %v2232, %v2230
      %v2236 = vshll.u32 %v2050, 16
      %v2238 = vrot.slane %v2236, 1
      %v2239 = vsel %vm1494, %v2234, %v2238
      %v2240 = vshrl.u32 %v2050, 16
      %v2242 = vor.u32 %v2240, %v2238
      %v2244 = vshll.u32 %v2051, 16
      %v2246 = vrot.slane %v2244, 1
      %v2247 = vsel %vm1494, %v2242, %v2246
      %v2288 = vunpack.c.l.b16 %v2005
      %v2289 = vunpack.c.l.b16 %v2006
      %v2290 = vunpack.c.l.b16 %v2007
      %v2291 = vunpack.c.l.b16 %v2008
      %v2292 = vunpack.c.l.b16 %v2009
      %v2293 = vunpack.c.l.b16 %v2010
      %v2294 = vunpack.c.l.b16 %v2011
      %v2295 = vunpack.c.l.b16 %v2012
      %v2296 = vunpack.c.l.b16 %v2013
      %v2297 = vunpack.c.l.b16 %v2014
      %v2298 = vunpack.c.l.b16 %v2015
      %v2299 = vunpack.c.l.b16 %v2016
      %v2300 = vunpack.c.l.b16 %v2017
      %v2301 = vunpack.c.l.b16 %v2018
      %v2302 = vunpack.c.l.b16 %v2019
      %v2303 = vunpack.c.l.b16 %v2020
      %v2304 = vpack.c.b16 %v2289, %v2288
      %v2305 = vpack.c.b16 %v2291, %v2290
      %v2306 = vpack.c.b16 %v2293, %v2292
      %v2307 = vpack.c.b16 %v2295, %v2294
      %v2308 = vpack.c.b16 %v2297, %v2296
      %v2309 = vpack.c.b16 %v2299, %v2298
      %v2310 = vpack.c.b16 %v2301, %v2300
      %v2311 = vpack.c.b16 %v2303, %v2302
      %2320 = vmatprep.subr.bf16.mxu0 0
      %2321 = vmatpush1.bf16.msra.mxu0 %v2311
      %2322 = vmatprep.subr.bf16.mxu0 0
      %2323 = vmatpush1.bf16.msra.mxu0 %v2310
      %2324 = vmatprep.subr.bf16.mxu0 0
      %2325 = vmatpush1.bf16.msra.mxu0 %v2309
      %2326 = vmatprep.subr.bf16.mxu0 0
      %2327 = vmatpush1.bf16.msra.mxu0 %v2308
      %2328 = vmatprep.subr.bf16.mxu0 0
      %2329 = vmatpush1.bf16.msra.mxu0 %v2307
      %2330 = vmatprep.subr.bf16.mxu0 0
      %2331 = vmatpush1.bf16.msra.mxu0 %v2306
      %2332 = vmatprep.subr.bf16.mxu0 0
      %2333 = vmatpush1.bf16.msra.mxu0 %v2305
      %2334 = vmatprep.subr.bf16.mxu0 0
      %2335 = vmatpush1.bf16.msra.mxu0 %v2304
      %2336 = vmatprep.subr.bf16.mxu0 0
      %2337 = vmatpush2.bf16.msra.mxu0 0
      %2338 = vmatprep.subr.bf16.mxu0 0
      %2339 = vmatpush2.bf16.msra.mxu0 0
      %2340 = vmatprep.subr.bf16.mxu0 0
      %2341 = vmatpush2.bf16.msra.mxu0 0
      %2342 = vmatprep.subr.bf16.mxu0 0
      %2343 = vmatpush2.bf16.msra.mxu0 0
      %2344 = vmatprep.subr.bf16.mxu0 0
      %2345 = vmatpush2.bf16.msra.mxu0 0
      %2346 = vmatprep.subr.bf16.mxu0 0
      %2347 = vmatpush2.bf16.msra.mxu0 0
      %2348 = vmatprep.subr.bf16.mxu0 0
      %2349 = vmatpush2.bf16.msra.mxu0 0
      %2350 = vmatprep.subr.bf16.mxu0 0
      %2351 = vmatpush2.bf16.msra.mxu0 0
      %2352 = vmatprep.mubr.bf16.mxu0 0
      %2353 = vmatmul.mubr.bf16.gmra.mxu0 %v2063
      %v2354 = vpop.f32.mrf.mxu0
      %v2355 = vadd.f32 0.0, %v2354
      %v2356 = vpop.f32.mrf.mxu0
      %v2357 = vpop.f32.mrf.mxu0
      %v2358 = vadd.f32 0.0, %v2357
      %v2359 = vpop.f32.mrf.mxu0
      %2360 = vmatprep.mubr.bf16.mxu0 0
      %2361 = vmatmul.mubr.bf16.gmra.mxu0 %v2071
      %v2362 = vpop.f32.mrf.mxu0
      %v2363 = vpop.f32.mrf.mxu0
      %v2364 = vpop.f32.mrf.mxu0
      %v2365 = vadd.f32 0.0, %v2364
      %v2366 = vpop.f32.mrf.mxu0
      %2367 = vmatprep.mubr.bf16.mxu0 0
      %2368 = vmatmul.mubr.bf16.gmra.mxu0 %v2079
      %v2369 = vpop.f32.mrf.mxu0
      %v2370 = vadd.f32 0.0, %v2369
      %v2371 = vpop.f32.mrf.mxu0
      %v2372 = vpop.f32.mrf.mxu0
      %v2373 = vpop.f32.mrf.mxu0
      %2374 = vmatprep.mubr.bf16.mxu0 0
      %2375 = vmatmul.mubr.bf16.gmra.mxu0 %v2087
      %v2376 = vpop.f32.mrf.mxu0
      %v2377 = vadd.f32 0.0, %v2376
      %v2378 = vpop.f32.mrf.mxu0
      %v2379 = vpop.f32.mrf.mxu0
      %v2380 = vadd.f32 0.0, %v2379
      %v2381 = vpop.f32.mrf.mxu0
      %2382 = vmatprep.mubr.bf16.mxu0 0
      %2383 = vmatmul.mubr.bf16.gmra.mxu0 %v2095
      %v2384 = vpop.f32.mrf.mxu0
      %v2385 = vpop.f32.mrf.mxu0
      %v2386 = vpop.f32.mrf.mxu0
      %v2387 = vadd.f32 0.0, %v2386
      %v2388 = vpop.f32.mrf.mxu0
      %2389 = vmatprep.mubr.bf16.mxu0 0
      %2390 = vmatmul.mubr.bf16.gmra.mxu0 %v2103
      %v2391 = vpop.f32.mrf.mxu0
      %v2392 = vadd.f32 0.0, %v2391
      %v2393 = vpop.f32.mrf.mxu0
      %v2394 = vpop.f32.mrf.mxu0
      %v2395 = vpop.f32.mrf.mxu0
      %2396 = vmatprep.mubr.bf16.mxu0 0
      %2397 = vmatmul.mubr.bf16.gmra.mxu0 %v2111
      %v2398 = vpop.f32.mrf.mxu0
      %v2399 = vadd.f32 0.0, %v2398
      %v2400 = vpop.f32.mrf.mxu0
      %v2401 = vpop.f32.mrf.mxu0
      %v2402 = vadd.f32 0.0, %v2401
      %v2403 = vpop.f32.mrf.mxu0
      %2404 = vmatprep.mubr.bf16.mxu0 0
      %2405 = vmatmul.mubr.bf16.gmra.mxu0 %v2119
      %v2406 = vpop.f32.mrf.mxu0
      %v2407 = vpop.f32.mrf.mxu0
      %v2408 = vpop.f32.mrf.mxu0
      %v2409 = vadd.f32 0.0, %v2408
      %v2410 = vpop.f32.mrf.mxu0
      %2411 = vmatprep.mubr.bf16.mxu0 0
      %2412 = vmatmul.mubr.bf16.gmra.mxu0 %v2127
      %v2413 = vpop.f32.mrf.mxu0
      %v2414 = vadd.f32 0.0, %v2413
      %v2415 = vpop.f32.mrf.mxu0
      %v2416 = vpop.f32.mrf.mxu0
      %v2417 = vpop.f32.mrf.mxu0
      %2418 = vmatprep.mubr.bf16.mxu0 0
      %2419 = vmatmul.mubr.bf16.gmra.mxu0 %v2135
      %v2420 = vpop.f32.mrf.mxu0
      %v2421 = vadd.f32 0.0, %v2420
      %v2422 = vpop.f32.mrf.mxu0
      %v2423 = vpop.f32.mrf.mxu0
      %v2424 = vadd.f32 0.0, %v2423
      %v2425 = vpop.f32.mrf.mxu0
      %2426 = vmatprep.mubr.bf16.mxu0 0
      %2427 = vmatmul.mubr.bf16.gmra.mxu0 %v2143
      %v2428 = vpop.f32.mrf.mxu0
      %v2429 = vpop.f32.mrf.mxu0
      %v2430 = vpop.f32.mrf.mxu0
      %v2431 = vadd.f32 0.0, %v2430
      %v2432 = vpop.f32.mrf.mxu0
      %2433 = vmatprep.mubr.bf16.mxu0 0
      %2434 = vmatmul.mubr.bf16.gmra.mxu0 %v2151
      %v2435 = vpop.f32.mrf.mxu0
      %v2436 = vadd.f32 0.0, %v2435
      %v2437 = vpop.f32.mrf.mxu0
      %v2438 = vpop.f32.mrf.mxu0
      %v2439 = vpop.f32.mrf.mxu0
      %2440 = vmatprep.mubr.bf16.mxu0 0
      %2441 = vmatmul.mubr.bf16.gmra.mxu0 %v2159
      %v2442 = vpop.f32.mrf.mxu0
      %v2443 = vadd.f32 0.0, %v2442
      %v2444 = vpop.f32.mrf.mxu0
      %v2445 = vpop.f32.mrf.mxu0
      %v2446 = vadd.f32 0.0, %v2445
      %v2447 = vpop.f32.mrf.mxu0
      %2448 = vmatprep.mubr.bf16.mxu0 0
      %2449 = vmatmul.mubr.bf16.gmra.mxu0 %v2167
      %v2450 = vpop.f32.mrf.mxu0
      %v2451 = vpop.f32.mrf.mxu0
      %v2452 = vpop.f32.mrf.mxu0
      %v2453 = vadd.f32 0.0, %v2452
      %v2454 = vpop.f32.mrf.mxu0
      %2455 = vmatprep.mubr.bf16.mxu0 0
      %2456 = vmatmul.mubr.bf16.gmra.mxu0 %v2175
      %v2457 = vpop.f32.mrf.mxu0
      %v2458 = vadd.f32 0.0, %v2457
      %v2459 = vpop.f32.mrf.mxu0
      %v2460 = vpop.f32.mrf.mxu0
      %v2461 = vpop.f32.mrf.mxu0
      %2462 = vmatprep.mubr.bf16.mxu0 0
      %2463 = vmatmul.mubr.bf16.gmra.mxu0 %v2183
      %v2464 = vpop.f32.mrf.mxu0
      %v2465 = vadd.f32 0.0, %v2464
      %v2466 = vpop.f32.mrf.mxu0
      %v2467 = vpop.f32.mrf.mxu0
      %v2468 = vadd.f32 0.0, %v2467
      %v2469 = vpop.f32.mrf.mxu0
      %2470 = vmatprep.mubr.bf16.mxu0 0
      %2471 = vmatmul.mubr.bf16.gmra.mxu0 %v2191
      %v2472 = vpop.f32.mrf.mxu0
      %v2473 = vpop.f32.mrf.mxu0
      %v2474 = vpop.f32.mrf.mxu0
      %v2475 = vadd.f32 0.0, %v2474
      %v2476 = vpop.f32.mrf.mxu0
      %2477 = vmatprep.mubr.bf16.mxu0 0
      %2478 = vmatmul.mubr.bf16.gmra.mxu0 %v2199
      %v2479 = vpop.f32.mrf.mxu0
      %v2480 = vadd.f32 0.0, %v2479
      %v2481 = vpop.f32.mrf.mxu0
      %v2482 = vpop.f32.mrf.mxu0
      %v2483 = vpop.f32.mrf.mxu0
      %2484 = vmatprep.mubr.bf16.mxu0 0
      %2485 = vmatmul.mubr.bf16.gmra.mxu0 %v2207
      %v2486 = vpop.f32.mrf.mxu0
      %v2487 = vadd.f32 0.0, %v2486
      %v2488 = vpop.f32.mrf.mxu0
      %v2489 = vpop.f32.mrf.mxu0
      %v2490 = vadd.f32 0.0, %v2489
      %v2491 = vpop.f32.mrf.mxu0
      %2492 = vmatprep.mubr.bf16.mxu0 0
      %2493 = vmatmul.mubr.bf16.gmra.mxu0 %v2215
      %v2494 = vpop.f32.mrf.mxu0
      %v2495 = vpop.f32.mrf.mxu0
      %v2496 = vpop.f32.mrf.mxu0
      %v2497 = vadd.f32 0.0, %v2496
      %v2498 = vpop.f32.mrf.mxu0
      %2499 = vmatprep.mubr.bf16.mxu0 0
      %2500 = vmatmul.mubr.bf16.gmra.mxu0 %v2223
      %v2501 = vpop.f32.mrf.mxu0
      %v2502 = vadd.f32 0.0, %v2501
      %v2503 = vpop.f32.mrf.mxu0
      %v2504 = vpop.f32.mrf.mxu0
      %v2505 = vpop.f32.mrf.mxu0
      %2506 = vmatprep.mubr.bf16.mxu0 0
      %2507 = vmatmul.mubr.bf16.gmra.mxu0 %v2231
      %v2508 = vpop.f32.mrf.mxu0
      %v2509 = vadd.f32 0.0, %v2508
      %v2510 = vpop.f32.mrf.mxu0
      %v2511 = vpop.f32.mrf.mxu0
      %v2512 = vadd.f32 0.0, %v2511
      %v2513 = vpop.f32.mrf.mxu0
      %2514 = vmatprep.mubr.bf16.mxu0 0
      %2515 = vmatmul.mubr.bf16.gmra.mxu0 %v2239
      %v2516 = vpop.f32.mrf.mxu0
      %v2517 = vpop.f32.mrf.mxu0
      %v2518 = vpop.f32.mrf.mxu0
      %v2519 = vadd.f32 0.0, %v2518
      %v2520 = vpop.f32.mrf.mxu0
      %2521 = vmatprep.mubr.bf16.mxu0 0
      %2522 = vmatmul.mubr.bf16.gmra.mxu0 %v2247
      %v2523 = vpop.f32.mrf.mxu0
      %v2524 = vadd.f32 0.0, %v2523
      %v2525 = vpop.f32.mrf.mxu0
      %v2526 = vpop.f32.mrf.mxu0
      %v2527 = vpop.f32.mrf.mxu0
      %2528 = vdwg.mxu0
      %v2529 = vadd.f32 %v1972, %v2355
      %v2530 = vadd.f32 %v1973, %v2358
      %v2531 = vadd.f32 %v1974, %v2365
      %v2532 = vadd.f32 %v1975, %v2370
      %v2533 = vadd.f32 %v1976, %v2377
      %v2534 = vadd.f32 %v1977, %v2380
      %v2535 = vadd.f32 %v1978, %v2387
      %v2536 = vadd.f32 %v1979, %v2392
      %v2537 = vadd.f32 %v1980, %v2399
      %v2538 = vadd.f32 %v1981, %v2402
      %v2539 = vadd.f32 %v1982, %v2409
      %v2540 = vadd.f32 %v1983, %v2414
      %v2541 = vadd.f32 %v1984, %v2421
      %v2542 = vadd.f32 %v1985, %v2424
      %v2543 = vadd.f32 %v1986, %v2431
      %v2544 = vadd.f32 %v1987, %v2436
      %v2545 = vadd.f32 %v1988, %v2443
      %v2546 = vadd.f32 %v1989, %v2446
      %v2547 = vadd.f32 %v1990, %v2453
      %v2548 = vadd.f32 %v1991, %v2458
      %v2549 = vadd.f32 %v1992, %v2465
      %v2550 = vadd.f32 %v1993, %v2468
      %v2551 = vadd.f32 %v1994, %v2475
      %v2552 = vadd.f32 %v1995, %v2480
      %v2553 = vadd.f32 %v1996, %v2487
      %v2554 = vadd.f32 %v1997, %v2490
      %v2555 = vadd.f32 %v1998, %v2497
      %v2556 = vadd.f32 %v1999, %v2502
      %v2557 = vadd.f32 %v2000, %v2509
      %v2558 = vadd.f32 %v2001, %v2512
      %v2559 = vadd.f32 %v2002, %v2519
      %v2560 = vadd.f32 %v2003, %v2524
      %s2561 = scalar_lea.vmem %s172, 448
      %v2562 = vld [vmem:[%s2561] sm:$0xf]
      %v2563 = vld [vmem:[%s2561 + $0x4] sm:$0xf]
      %v2564 = vld [vmem:[%s2561 + $0x8] sm:$0xf]
      %v2565 = vld [vmem:[%s2561 + $0xc] sm:$0xf]
      %v2566 = vld [vmem:[%s2561 + $0x10] sm:$0xf]
      %v2567 = vld [vmem:[%s2561 + $0x14] sm:$0xf]
      %v2568 = vld [vmem:[%s2561 + $0x18] sm:$0xf]
      %v2569 = vld [vmem:[%s2561 + $0x1c] sm:$0xf]
      %v2570 = vld [vmem:[%s2561 + $0x20] sm:$0xf]
      %v2571 = vld [vmem:[%s2561 + $0x24] sm:$0xf]
      %v2572 = vld [vmem:[%s2561 + $0x28] sm:$0xf]
      %v2573 = vld [vmem:[%s2561 + $0x2c] sm:$0xf]
      %v2574 = vld [vmem:[%s2561 + $0x30] sm:$0xf]
      %v2575 = vld [vmem:[%s2561 + $0x34] sm:$0xf]
      %v2576 = vld [vmem:[%s2561 + $0x38] sm:$0xf]
      %v2577 = vld [vmem:[%s2561 + $0x3c] sm:$0xf]
      %v2581 = vunpack.c.l.b16 %v1351
      %v2582 = vunpack.c.l.b16 %v1352
      %v2583 = vunpack.c.l.b16 %v1353
      %v2584 = vpack.c.b16 %v2024, %v1468
      %v2585 = vpack.c.b16 %v2026, %v2025
      %v2586 = vpack.c.b16 %v2582, %v2581
      %v2587 = vpack.c.b16 %v2583, %v2583
      %v2589 = vshll.u32 %v2584, 16
      %v2591 = vrot.slane %v2589, 1
      %v2592 = vsel %vm1494, %v1685, %v2591
      %v2593 = vshrl.u32 %v2584, 16
      %v2595 = vor.u32 %v2593, %v2591
      %v2597 = vshll.u32 %v2585, 16
      %v2599 = vrot.slane %v2597, 1
      %v2600 = vsel %vm1494, %v2595, %v2599
      %v2601 = vshrl.u32 %v2585, 16
      %v2603 = vor.u32 %v2601, %v2599
      %v2605 = vshll.u32 %v2586, 16
      %v2607 = vrot.slane %v2605, 1
      %v2608 = vsel %vm1494, %v2603, %v2607
      %v2609 = vshrl.u32 %v2586, 16
      %v2611 = vor.u32 %v2609, %v2607
      %v2613 = vshll.u32 %v2587, 16
      %v2615 = vrot.slane %v2613, 1
      %v2616 = vsel %vm1494, %v2611, %v2615
      %v2637 = vunpack.c.l.b16 %v2562
      %v2638 = vunpack.c.l.b16 %v2563
      %v2639 = vunpack.c.l.b16 %v2564
      %v2640 = vunpack.c.l.b16 %v2565
      %v2641 = vunpack.c.l.b16 %v2566
      %v2642 = vunpack.c.l.b16 %v2567
      %v2643 = vunpack.c.l.b16 %v2568
      %v2644 = vunpack.c.l.b16 %v2569
      %v2645 = vunpack.c.l.b16 %v2570
      %v2646 = vunpack.c.l.b16 %v2571
      %v2647 = vunpack.c.l.b16 %v2572
      %v2648 = vunpack.c.l.b16 %v2573
      %v2649 = vunpack.c.l.b16 %v2574
      %v2650 = vunpack.c.l.b16 %v2575
      %v2651 = vunpack.c.l.b16 %v2576
      %v2652 = vunpack.c.l.b16 %v2577
      %v2653 = vpack.c.b16 %v2638, %v2637
      %v2654 = vpack.c.b16 %v2640, %v2639
      %v2655 = vpack.c.b16 %v2642, %v2641
      %v2656 = vpack.c.b16 %v2644, %v2643
      %v2657 = vpack.c.b16 %v2646, %v2645
      %v2658 = vpack.c.b16 %v2648, %v2647
      %v2659 = vpack.c.b16 %v2650, %v2649
      %v2660 = vpack.c.b16 %v2652, %v2651
      %2669 = vmatprep.subr.bf16.mxu0 0
      %2670 = vmatpush1.bf16.msra.mxu0 %v2660
      %2671 = vmatprep.subr.bf16.mxu0 0
      %2672 = vmatpush1.bf16.msra.mxu0 %v2659
      %2673 = vmatprep.subr.bf16.mxu0 0
      %2674 = vmatpush1.bf16.msra.mxu0 %v2658
      %2675 = vmatprep.subr.bf16.mxu0 0
      %2676 = vmatpush1.bf16.msra.mxu0 %v2657
      %2677 = vmatprep.subr.bf16.mxu0 0
      %2678 = vmatpush1.bf16.msra.mxu0 %v2656
      %2679 = vmatprep.subr.bf16.mxu0 0
      %2680 = vmatpush1.bf16.msra.mxu0 %v2655
      %2681 = vmatprep.subr.bf16.mxu0 0
      %2682 = vmatpush1.bf16.msra.mxu0 %v2654
      %2683 = vmatprep.subr.bf16.mxu0 0
      %2684 = vmatpush1.bf16.msra.mxu0 %v2653
      %2685 = vmatprep.subr.bf16.mxu0 0
      %2686 = vmatpush2.bf16.msra.mxu0 0
      %2687 = vmatprep.subr.bf16.mxu0 0
      %2688 = vmatpush2.bf16.msra.mxu0 0
      %2689 = vmatprep.subr.bf16.mxu0 0
      %2690 = vmatpush2.bf16.msra.mxu0 0
      %2691 = vmatprep.subr.bf16.mxu0 0
      %2692 = vmatpush2.bf16.msra.mxu0 0
      %2693 = vmatprep.subr.bf16.mxu0 0
      %2694 = vmatpush2.bf16.msra.mxu0 0
      %2695 = vmatprep.subr.bf16.mxu0 0
      %2696 = vmatpush2.bf16.msra.mxu0 0
      %2697 = vmatprep.subr.bf16.mxu0 0
      %2698 = vmatpush2.bf16.msra.mxu0 0
      %2699 = vmatprep.subr.bf16.mxu0 0
      %2700 = vmatpush2.bf16.msra.mxu0 0
      %2701 = vmatprep.mubr.bf16.mxu0 0
      %2702 = vmatmul.mubr.bf16.gmra.mxu0 %v1530
      %v2703 = vpop.f32.mrf.mxu0
      %v2704 = vadd.f32 0.0, %v2703
      %v2705 = vpop.f32.mrf.mxu0
      %v2706 = vpop.f32.mrf.mxu0
      %v2707 = vadd.f32 0.0, %v2706
      %v2708 = vpop.f32.mrf.mxu0
      %2709 = vmatprep.mubr.bf16.mxu0 0
      %2710 = vmatmul.mubr.bf16.gmra.mxu0 %v1538
      %v2711 = vpop.f32.mrf.mxu0
      %v2712 = vpop.f32.mrf.mxu0
      %v2713 = vpop.f32.mrf.mxu0
      %v2714 = vadd.f32 0.0, %v2713
      %v2715 = vpop.f32.mrf.mxu0
      %2716 = vmatprep.mubr.bf16.mxu0 0
      %2717 = vmatmul.mubr.bf16.gmra.mxu0 %v1546
      %v2718 = vpop.f32.mrf.mxu0
      %v2719 = vadd.f32 0.0, %v2718
      %v2720 = vpop.f32.mrf.mxu0
      %v2721 = vpop.f32.mrf.mxu0
      %v2722 = vpop.f32.mrf.mxu0
      %2723 = vmatprep.mubr.bf16.mxu0 0
      %2724 = vmatmul.mubr.bf16.gmra.mxu0 %v1554
      %v2725 = vpop.f32.mrf.mxu0
      %v2726 = vadd.f32 0.0, %v2725
      %v2727 = vpop.f32.mrf.mxu0
      %v2728 = vpop.f32.mrf.mxu0
      %v2729 = vadd.f32 0.0, %v2728
      %v2730 = vpop.f32.mrf.mxu0
      %2731 = vmatprep.mubr.bf16.mxu0 0
      %2732 = vmatmul.mubr.bf16.gmra.mxu0 %v1562
      %v2733 = vpop.f32.mrf.mxu0
      %v2734 = vpop.f32.mrf.mxu0
      %v2735 = vpop.f32.mrf.mxu0
      %v2736 = vadd.f32 0.0, %v2735
      %v2737 = vpop.f32.mrf.mxu0
      %2738 = vmatprep.mubr.bf16.mxu0 0
      %2739 = vmatmul.mubr.bf16.gmra.mxu0 %v1570
      %v2740 = vpop.f32.mrf.mxu0
      %v2741 = vadd.f32 0.0, %v2740
      %v2742 = vpop.f32.mrf.mxu0
      %v2743 = vpop.f32.mrf.mxu0
      %v2744 = vpop.f32.mrf.mxu0
      %2745 = vmatprep.mubr.bf16.mxu0 0
      %2746 = vmatmul.mubr.bf16.gmra.mxu0 %v1578
      %v2747 = vpop.f32.mrf.mxu0
      %v2748 = vadd.f32 0.0, %v2747
      %v2749 = vpop.f32.mrf.mxu0
      %v2750 = vpop.f32.mrf.mxu0
      %v2751 = vadd.f32 0.0, %v2750
      %v2752 = vpop.f32.mrf.mxu0
      %2753 = vmatprep.mubr.bf16.mxu0 0
      %2754 = vmatmul.mubr.bf16.gmra.mxu0 %v1586
      %v2755 = vpop.f32.mrf.mxu0
      %v2756 = vpop.f32.mrf.mxu0
      %v2757 = vpop.f32.mrf.mxu0
      %v2758 = vadd.f32 0.0, %v2757
      %v2759 = vpop.f32.mrf.mxu0
      %2760 = vmatprep.mubr.bf16.mxu0 0
      %2761 = vmatmul.mubr.bf16.gmra.mxu0 %v1594
      %v2762 = vpop.f32.mrf.mxu0
      %v2763 = vadd.f32 0.0, %v2762
      %v2764 = vpop.f32.mrf.mxu0
      %v2765 = vpop.f32.mrf.mxu0
      %v2766 = vpop.f32.mrf.mxu0
      %2767 = vmatprep.mubr.bf16.mxu0 0
      %2768 = vmatmul.mubr.bf16.gmra.mxu0 %v1602
      %v2769 = vpop.f32.mrf.mxu0
      %v2770 = vadd.f32 0.0, %v2769
      %v2771 = vpop.f32.mrf.mxu0
      %v2772 = vpop.f32.mrf.mxu0
      %v2773 = vadd.f32 0.0, %v2772
      %v2774 = vpop.f32.mrf.mxu0
      %2775 = vmatprep.mubr.bf16.mxu0 0
      %2776 = vmatmul.mubr.bf16.gmra.mxu0 %v1610
      %v2777 = vpop.f32.mrf.mxu0
      %v2778 = vpop.f32.mrf.mxu0
      %v2779 = vpop.f32.mrf.mxu0
      %v2780 = vadd.f32 0.0, %v2779
      %v2781 = vpop.f32.mrf.mxu0
      %2782 = vmatprep.mubr.bf16.mxu0 0
      %2783 = vmatmul.mubr.bf16.gmra.mxu0 %v1618
      %v2784 = vpop.f32.mrf.mxu0
      %v2785 = vadd.f32 0.0, %v2784
      %v2786 = vpop.f32.mrf.mxu0
      %v2787 = vpop.f32.mrf.mxu0
      %v2788 = vpop.f32.mrf.mxu0
      %2789 = vmatprep.mubr.bf16.mxu0 0
      %2790 = vmatmul.mubr.bf16.gmra.mxu0 %v1626
      %v2791 = vpop.f32.mrf.mxu0
      %v2792 = vadd.f32 0.0, %v2791
      %v2793 = vpop.f32.mrf.mxu0
      %v2794 = vpop.f32.mrf.mxu0
      %v2795 = vadd.f32 0.0, %v2794
      %v2796 = vpop.f32.mrf.mxu0
      %2797 = vmatprep.mubr.bf16.mxu0 0
      %2798 = vmatmul.mubr.bf16.gmra.mxu0 %v1634
      %v2799 = vpop.f32.mrf.mxu0
      %v2800 = vpop.f32.mrf.mxu0
      %v2801 = vpop.f32.mrf.mxu0
      %v2802 = vadd.f32 0.0, %v2801
      %v2803 = vpop.f32.mrf.mxu0
      %2804 = vmatprep.mubr.bf16.mxu0 0
      %2805 = vmatmul.mubr.bf16.gmra.mxu0 %v1642
      %v2806 = vpop.f32.mrf.mxu0
      %v2807 = vadd.f32 0.0, %v2806
      %v2808 = vpop.f32.mrf.mxu0
      %v2809 = vpop.f32.mrf.mxu0
      %v2810 = vpop.f32.mrf.mxu0
      %2811 = vmatprep.mubr.bf16.mxu0 0
      %2812 = vmatmul.mubr.bf16.gmra.mxu0 %v1650
      %v2813 = vpop.f32.mrf.mxu0
      %v2814 = vadd.f32 0.0, %v2813
      %v2815 = vpop.f32.mrf.mxu0
      %v2816 = vpop.f32.mrf.mxu0
      %v2817 = vadd.f32 0.0, %v2816
      %v2818 = vpop.f32.mrf.mxu0
      %2819 = vmatprep.mubr.bf16.mxu0 0
      %2820 = vmatmul.mubr.bf16.gmra.mxu0 %v1658
      %v2821 = vpop.f32.mrf.mxu0
      %v2822 = vpop.f32.mrf.mxu0
      %v2823 = vpop.f32.mrf.mxu0
      %v2824 = vadd.f32 0.0, %v2823
      %v2825 = vpop.f32.mrf.mxu0
      %2826 = vmatprep.mubr.bf16.mxu0 0
      %2827 = vmatmul.mubr.bf16.gmra.mxu0 %v1666
      %v2828 = vpop.f32.mrf.mxu0
      %v2829 = vadd.f32 0.0, %v2828
      %v2830 = vpop.f32.mrf.mxu0
      %v2831 = vpop.f32.mrf.mxu0
      %v2832 = vpop.f32.mrf.mxu0
      %2833 = vmatprep.mubr.bf16.mxu0 0
      %2834 = vmatmul.mubr.bf16.gmra.mxu0 %v1674
      %v2835 = vpop.f32.mrf.mxu0
      %v2836 = vadd.f32 0.0, %v2835
      %v2837 = vpop.f32.mrf.mxu0
      %v2838 = vpop.f32.mrf.mxu0
      %v2839 = vadd.f32 0.0, %v2838
      %v2840 = vpop.f32.mrf.mxu0
      %2841 = vmatprep.mubr.bf16.mxu0 0
      %2842 = vmatmul.mubr.bf16.gmra.mxu0 %v1682
      %v2843 = vpop.f32.mrf.mxu0
      %v2844 = vpop.f32.mrf.mxu0
      %v2845 = vpop.f32.mrf.mxu0
      %v2846 = vadd.f32 0.0, %v2845
      %v2847 = vpop.f32.mrf.mxu0
      %2848 = vmatprep.mubr.bf16.mxu0 0
      %2849 = vmatmul.mubr.bf16.gmra.mxu0 %v2592
      %v2850 = vpop.f32.mrf.mxu0
      %v2851 = vadd.f32 0.0, %v2850
      %v2852 = vpop.f32.mrf.mxu0
      %v2853 = vpop.f32.mrf.mxu0
      %v2854 = vpop.f32.mrf.mxu0
      %2855 = vmatprep.mubr.bf16.mxu0 0
      %2856 = vmatmul.mubr.bf16.gmra.mxu0 %v2600
      %v2857 = vpop.f32.mrf.mxu0
      %v2858 = vadd.f32 0.0, %v2857
      %v2859 = vpop.f32.mrf.mxu0
      %v2860 = vpop.f32.mrf.mxu0
      %v2861 = vadd.f32 0.0, %v2860
      %v2862 = vpop.f32.mrf.mxu0
      %2863 = vmatprep.mubr.bf16.mxu0 0
      %2864 = vmatmul.mubr.bf16.gmra.mxu0 %v2608
      %v2865 = vpop.f32.mrf.mxu0
      %v2866 = vpop.f32.mrf.mxu0
      %v2867 = vpop.f32.mrf.mxu0
      %v2868 = vadd.f32 0.0, %v2867
      %v2869 = vpop.f32.mrf.mxu0
      %2870 = vmatprep.mubr.bf16.mxu0 0
      %2871 = vmatmul.mubr.bf16.gmra.mxu0 %v2616
      %v2872 = vpop.f32.mrf.mxu0
      %v2873 = vadd.f32 0.0, %v2872
      %v2874 = vpop.f32.mrf.mxu0
      %v2875 = vpop.f32.mrf.mxu0
      %v2876 = vpop.f32.mrf.mxu0
      %2877 = vdwg.mxu0
      %v2878 = vadd.f32 %v2529, %v2704
      %v2879 = vadd.f32 %v2530, %v2707
      %v2880 = vadd.f32 %v2531, %v2714
      %v2881 = vadd.f32 %v2532, %v2719
      %v2882 = vadd.f32 %v2533, %v2726
      %v2883 = vadd.f32 %v2534, %v2729
      %v2884 = vadd.f32 %v2535, %v2736
      %v2885 = vadd.f32 %v2536, %v2741
      %v2886 = vadd.f32 %v2537, %v2748
      %v2887 = vadd.f32 %v2538, %v2751
      %v2888 = vadd.f32 %v2539, %v2758
      %v2889 = vadd.f32 %v2540, %v2763
      %v2890 = vadd.f32 %v2541, %v2770
      %v2891 = vadd.f32 %v2542, %v2773
      %v2892 = vadd.f32 %v2543, %v2780
      %v2893 = vadd.f32 %v2544, %v2785
      %v2894 = vadd.f32 %v2545, %v2792
      %v2895 = vadd.f32 %v2546, %v2795
      %v2896 = vadd.f32 %v2547, %v2802
      %v2897 = vadd.f32 %v2548, %v2807
      %v2898 = vadd.f32 %v2549, %v2814
      %v2899 = vadd.f32 %v2550, %v2817
      %v2900 = vadd.f32 %v2551, %v2824
      %v2901 = vadd.f32 %v2552, %v2829
      %v2902 = vadd.f32 %v2553, %v2836
      %v2903 = vadd.f32 %v2554, %v2839
      %v2904 = vadd.f32 %v2555, %v2846
      %v2905 = vadd.f32 %v2556, %v2851
      %v2906 = vadd.f32 %v2557, %v2858
      %v2907 = vadd.f32 %v2558, %v2861
      %v2908 = vadd.f32 %v2559, %v2868
      %v2909 = vadd.f32 %v2560, %v2873
      %v2910 = vld [vmem:[%s168] sm:$0xe]
      %s2911 = scalar_lea.vmem %s172, 128
      %v2912 = vld [vmem:[%s2911] sm:$0xf]
      %v2913 = vld [vmem:[%s2911 + $0x4] sm:$0xf]
      %v2914 = vld [vmem:[%s2911 + $0x8] sm:$0xf]
      %v2915 = vld [vmem:[%s2911 + $0xc] sm:$0xf]
      %v2916 = vld [vmem:[%s2911 + $0x10] sm:$0xf]
      %v2917 = vld [vmem:[%s2911 + $0x14] sm:$0xf]
      %v2918 = vld [vmem:[%s2911 + $0x18] sm:$0xf]
      %v2919 = vld [vmem:[%s2911 + $0x1c] sm:$0xf]
      %v2920 = vld [vmem:[%s2911 + $0x20] sm:$0xf]
      %v2921 = vld [vmem:[%s2911 + $0x24] sm:$0xf]
      %v2922 = vld [vmem:[%s2911 + $0x28] sm:$0xf]
      %v2923 = vld [vmem:[%s2911 + $0x2c] sm:$0xf]
      %v2924 = vld [vmem:[%s2911 + $0x30] sm:$0xf]
      %v2925 = vld [vmem:[%s2911 + $0x34] sm:$0xf]
      %v2926 = vld [vmem:[%s2911 + $0x38] sm:$0xf]
      %v2927 = vld [vmem:[%s2911 + $0x3c] sm:$0xf]
      %v2929 = vunpack.c.l.b16 %v2910
      %v2930 = vpack.c.b16 %v1421, %v2929
      %vm2931 = vcmask 1046528
      %v2932 = vrot.slane %v2930, 1
      %v2933 = vrot.slane %v1470, 1
      %v2934 = vsel %vm2931, %v2932, %v2933
      %v2935 = vrot.slane %v1471, 1
      %v2936 = vsel %vm2931, %v2933, %v2935
      %v2937 = vrot.slane %v1472, 1
      %v2938 = vsel %vm2931, %v2935, %v2937
      %v2939 = vrot.slane %v1473, 1
      %v2940 = vsel %vm2931, %v2937, %v2939
      %v2941 = vrot.slane %v1474, 1
      %v2942 = vsel %vm2931, %v2939, %v2941
      %v2943 = vrot.slane %v1475, 1
      %v2944 = vsel %vm2931, %v2941, %v2943
      %v2945 = vrot.slane %v1476, 1
      %v2946 = vsel %vm2931, %v2943, %v2945
      %v2947 = vrot.slane %v1477, 1
      %v2948 = vsel %vm2931, %v2945, %v2947
      %v2949 = vrot.slane %v1478, 1
      %v2950 = vsel %vm2931, %v2947, %v2949
      %v2951 = vrot.slane %v1479, 1
      %v2952 = vsel %vm2931, %v2949, %v2951
      %v2953 = vrot.slane %v1480, 1
      %v2954 = vsel %vm2931, %v2951, %v2953
      %v2955 = vrot.slane %v1481, 1
      %v2956 = vsel %vm2931, %v2953, %v2955
      %v2957 = vrot.slane %v1482, 1
      %v2958 = vsel %vm2931, %v2955, %v2957
      %v2959 = vrot.slane %v1483, 1
      %v2960 = vsel %vm2931, %v2957, %v2959
      %v2961 = vrot.slane %v1484, 1
      %v2962 = vsel %vm2931, %v2959, %v2961
      %v2963 = vrot.slane %v1485, 1
      %v2964 = vsel %vm2931, %v2961, %v2963
      %v2965 = vrot.slane %v1486, 1
      %v2966 = vsel %vm2931, %v2963, %v2965
      %v2967 = vrot.slane %v1487, 1
      %v2968 = vsel %vm2931, %v2965, %v2967
      %v2969 = vrot.slane %v1488, 1
      %v2970 = vsel %vm2931, %v2967, %v2969
      %v2971 = vrot.slane %v1489, 1
      %v2972 = vsel %vm2931, %v2969, %v2971
      %v2973 = vrot.slane %v1490, 1
      %v2974 = vsel %vm2931, %v2971, %v2973
      %v2975 = vrot.slane %v1491, 1
      %v2976 = vsel %vm2931, %v2973, %v2975
      %v2977 = vrot.slane %v1492, 1
      %v2978 = vsel %vm2931, %v2975, %v2977
      %v2979 = vrot.slane %v1493, 1
      %v2980 = vsel %vm2931, %v2977, %v2979
      %v3021 = vunpack.c.l.b16 %v2912
      %v3022 = vunpack.c.l.b16 %v2913
      %v3023 = vunpack.c.l.b16 %v2914
      %v3024 = vunpack.c.l.b16 %v2915
      %v3025 = vunpack.c.l.b16 %v2916
      %v3026 = vunpack.c.l.b16 %v2917
      %v3027 = vunpack.c.l.b16 %v2918
      %v3028 = vunpack.c.l.b16 %v2919
      %v3029 = vunpack.c.l.b16 %v2920
      %v3030 = vunpack.c.l.b16 %v2921
      %v3031 = vunpack.c.l.b16 %v2922
      %v3032 = vunpack.c.l.b16 %v2923
      %v3033 = vunpack.c.l.b16 %v2924
      %v3034 = vunpack.c.l.b16 %v2925
      %v3035 = vunpack.c.l.b16 %v2926
      %v3036 = vunpack.c.l.b16 %v2927
      %v3037 = vpack.c.b16 %v3022, %v3021
      %v3038 = vpack.c.b16 %v3024, %v3023
      %v3039 = vpack.c.b16 %v3026, %v3025
      %v3040 = vpack.c.b16 %v3028, %v3027
      %v3041 = vpack.c.b16 %v3030, %v3029
      %v3042 = vpack.c.b16 %v3032, %v3031
      %v3043 = vpack.c.b16 %v3034, %v3033
      %v3044 = vpack.c.b16 %v3036, %v3035
      %3053 = vmatprep.subr.bf16.mxu0 0
      %3054 = vmatpush1.bf16.msra.mxu0 %v3044
      %3055 = vmatprep.subr.bf16.mxu0 0
      %3056 = vmatpush1.bf16.msra.mxu0 %v3043
      %3057 = vmatprep.subr.bf16.mxu0 0
      %3058 = vmatpush1.bf16.msra.mxu0 %v3042
      %3059 = vmatprep.subr.bf16.mxu0 0
      %3060 = vmatpush1.bf16.msra.mxu0 %v3041
      %3061 = vmatprep.subr.bf16.mxu0 0
      %3062 = vmatpush1.bf16.msra.mxu0 %v3040
      %3063 = vmatprep.subr.bf16.mxu0 0
      %3064 = vmatpush1.bf16.msra.mxu0 %v3039
      %3065 = vmatprep.subr.bf16.mxu0 0
      %3066 = vmatpush1.bf16.msra.mxu0 %v3038
      %3067 = vmatprep.subr.bf16.mxu0 0
      %3068 = vmatpush1.bf16.msra.mxu0 %v3037
      %3069 = vmatprep.subr.bf16.mxu0 0
      %3070 = vmatpush2.bf16.msra.mxu0 0
      %3071 = vmatprep.subr.bf16.mxu0 0
      %3072 = vmatpush2.bf16.msra.mxu0 0
      %3073 = vmatprep.subr.bf16.mxu0 0
      %3074 = vmatpush2.bf16.msra.mxu0 0
      %3075 = vmatprep.subr.bf16.mxu0 0
      %3076 = vmatpush2.bf16.msra.mxu0 0
      %3077 = vmatprep.subr.bf16.mxu0 0
      %3078 = vmatpush2.bf16.msra.mxu0 0
      %3079 = vmatprep.subr.bf16.mxu0 0
      %3080 = vmatpush2.bf16.msra.mxu0 0
      %3081 = vmatprep.subr.bf16.mxu0 0
      %3082 = vmatpush2.bf16.msra.mxu0 0
      %3083 = vmatprep.subr.bf16.mxu0 0
      %3084 = vmatpush2.bf16.msra.mxu0 0
      %3085 = vmatprep.mubr.bf16.mxu0 0
      %3086 = vmatmul.mubr.bf16.gmra.mxu0 %v2934
      %v3087 = vpop.f32.mrf.mxu0
      %v3088 = vadd.f32 0.0, %v3087
      %v3089 = vpop.f32.mrf.mxu0
      %v3090 = vpop.f32.mrf.mxu0
      %v3091 = vadd.f32 0.0, %v3090
      %v3092 = vpop.f32.mrf.mxu0
      %3093 = vmatprep.mubr.bf16.mxu0 0
      %3094 = vmatmul.mubr.bf16.gmra.mxu0 %v2936
      %v3095 = vpop.f32.mrf.mxu0
      %v3096 = vpop.f32.mrf.mxu0
      %v3097 = vpop.f32.mrf.mxu0
      %v3098 = vadd.f32 0.0, %v3097
      %v3099 = vpop.f32.mrf.mxu0
      %3100 = vmatprep.mubr.bf16.mxu0 0
      %3101 = vmatmul.mubr.bf16.gmra.mxu0 %v2938
      %v3102 = vpop.f32.mrf.mxu0
      %v3103 = vadd.f32 0.0, %v3102
      %v3104 = vpop.f32.mrf.mxu0
      %v3105 = vpop.f32.mrf.mxu0
      %v3106 = vpop.f32.mrf.mxu0
      %3107 = vmatprep.mubr.bf16.mxu0 0
      %3108 = vmatmul.mubr.bf16.gmra.mxu0 %v2940
      %v3109 = vpop.f32.mrf.mxu0
      %v3110 = vadd.f32 0.0, %v3109
      %v3111 = vpop.f32.mrf.mxu0
      %v3112 = vpop.f32.mrf.mxu0
      %v3113 = vadd.f32 0.0, %v3112
      %v3114 = vpop.f32.mrf.mxu0
      %3115 = vmatprep.mubr.bf16.mxu0 0
      %3116 = vmatmul.mubr.bf16.gmra.mxu0 %v2942
      %v3117 = vpop.f32.mrf.mxu0
      %v3118 = vpop.f32.mrf.mxu0
      %v3119 = vpop.f32.mrf.mxu0
      %v3120 = vadd.f32 0.0, %v3119
      %v3121 = vpop.f32.mrf.mxu0
      %3122 = vmatprep.mubr.bf16.mxu0 0
      %3123 = vmatmul.mubr.bf16.gmra.mxu0 %v2944
      %v3124 = vpop.f32.mrf.mxu0
      %v3125 = vadd.f32 0.0, %v3124
      %v3126 = vpop.f32.mrf.mxu0
      %v3127 = vpop.f32.mrf.mxu0
      %v3128 = vpop.f32.mrf.mxu0
      %3129 = vmatprep.mubr.bf16.mxu0 0
      %3130 = vmatmul.mubr.bf16.gmra.mxu0 %v2946
      %v3131 = vpop.f32.mrf.mxu0
      %v3132 = vadd.f32 0.0, %v3131
      %v3133 = vpop.f32.mrf.mxu0
      %v3134 = vpop.f32.mrf.mxu0
      %v3135 = vadd.f32 0.0, %v3134
      %v3136 = vpop.f32.mrf.mxu0
      %3137 = vmatprep.mubr.bf16.mxu0 0
      %3138 = vmatmul.mubr.bf16.gmra.mxu0 %v2948
      %v3139 = vpop.f32.mrf.mxu0
      %v3140 = vpop.f32.mrf.mxu0
      %v3141 = vpop.f32.mrf.mxu0
      %v3142 = vadd.f32 0.0, %v3141
      %v3143 = vpop.f32.mrf.mxu0
      %3144 = vmatprep.mubr.bf16.mxu0 0
      %3145 = vmatmul.mubr.bf16.gmra.mxu0 %v2950
      %v3146 = vpop.f32.mrf.mxu0
      %v3147 = vadd.f32 0.0, %v3146
      %v3148 = vpop.f32.mrf.mxu0
      %v3149 = vpop.f32.mrf.mxu0
      %v3150 = vpop.f32.mrf.mxu0
      %3151 = vmatprep.mubr.bf16.mxu0 0
      %3152 = vmatmul.mubr.bf16.gmra.mxu0 %v2952
      %v3153 = vpop.f32.mrf.mxu0
      %v3154 = vadd.f32 0.0, %v3153
      %v3155 = vpop.f32.mrf.mxu0
      %v3156 = vpop.f32.mrf.mxu0
      %v3157 = vadd.f32 0.0, %v3156
      %v3158 = vpop.f32.mrf.mxu0
      %3159 = vmatprep.mubr.bf16.mxu0 0
      %3160 = vmatmul.mubr.bf16.gmra.mxu0 %v2954
      %v3161 = vpop.f32.mrf.mxu0
      %v3162 = vpop.f32.mrf.mxu0
      %v3163 = vpop.f32.mrf.mxu0
      %v3164 = vadd.f32 0.0, %v3163
      %v3165 = vpop.f32.mrf.mxu0
      %3166 = vmatprep.mubr.bf16.mxu0 0
      %3167 = vmatmul.mubr.bf16.gmra.mxu0 %v2956
      %v3168 = vpop.f32.mrf.mxu0
      %v3169 = vadd.f32 0.0, %v3168
      %v3170 = vpop.f32.mrf.mxu0
      %v3171 = vpop.f32.mrf.mxu0
      %v3172 = vpop.f32.mrf.mxu0
      %3173 = vmatprep.mubr.bf16.mxu0 0
      %3174 = vmatmul.mubr.bf16.gmra.mxu0 %v2958
      %v3175 = vpop.f32.mrf.mxu0
      %v3176 = vadd.f32 0.0, %v3175
      %v3177 = vpop.f32.mrf.mxu0
      %v3178 = vpop.f32.mrf.mxu0
      %v3179 = vadd.f32 0.0, %v3178
      %v3180 = vpop.f32.mrf.mxu0
      %3181 = vmatprep.mubr.bf16.mxu0 0
      %3182 = vmatmul.mubr.bf16.gmra.mxu0 %v2960
      %v3183 = vpop.f32.mrf.mxu0
      %v3184 = vpop.f32.mrf.mxu0
      %v3185 = vpop.f32.mrf.mxu0
      %v3186 = vadd.f32 0.0, %v3185
      %v3187 = vpop.f32.mrf.mxu0
      %3188 = vmatprep.mubr.bf16.mxu0 0
      %3189 = vmatmul.mubr.bf16.gmra.mxu0 %v2962
      %v3190 = vpop.f32.mrf.mxu0
      %v3191 = vadd.f32 0.0, %v3190
      %v3192 = vpop.f32.mrf.mxu0
      %v3193 = vpop.f32.mrf.mxu0
      %v3194 = vpop.f32.mrf.mxu0
      %3195 = vmatprep.mubr.bf16.mxu0 0
      %3196 = vmatmul.mubr.bf16.gmra.mxu0 %v2964
      %v3197 = vpop.f32.mrf.mxu0
      %v3198 = vadd.f32 0.0, %v3197
      %v3199 = vpop.f32.mrf.mxu0
      %v3200 = vpop.f32.mrf.mxu0
      %v3201 = vadd.f32 0.0, %v3200
      %v3202 = vpop.f32.mrf.mxu0
      %3203 = vmatprep.mubr.bf16.mxu0 0
      %3204 = vmatmul.mubr.bf16.gmra.mxu0 %v2966
      %v3205 = vpop.f32.mrf.mxu0
      %v3206 = vpop.f32.mrf.mxu0
      %v3207 = vpop.f32.mrf.mxu0
      %v3208 = vadd.f32 0.0, %v3207
      %v3209 = vpop.f32.mrf.mxu0
      %3210 = vmatprep.mubr.bf16.mxu0 0
      %3211 = vmatmul.mubr.bf16.gmra.mxu0 %v2968
      %v3212 = vpop.f32.mrf.mxu0
      %v3213 = vadd.f32 0.0, %v3212
      %v3214 = vpop.f32.mrf.mxu0
      %v3215 = vpop.f32.mrf.mxu0
      %v3216 = vpop.f32.mrf.mxu0
      %3217 = vmatprep.mubr.bf16.mxu0 0
      %3218 = vmatmul.mubr.bf16.gmra.mxu0 %v2970
      %v3219 = vpop.f32.mrf.mxu0
      %v3220 = vadd.f32 0.0, %v3219
      %v3221 = vpop.f32.mrf.mxu0
      %v3222 = vpop.f32.mrf.mxu0
      %v3223 = vadd.f32 0.0, %v3222
      %v3224 = vpop.f32.mrf.mxu0
      %3225 = vmatprep.mubr.bf16.mxu0 0
      %3226 = vmatmul.mubr.bf16.gmra.mxu0 %v2972
      %v3227 = vpop.f32.mrf.mxu0
      %v3228 = vpop.f32.mrf.mxu0
      %v3229 = vpop.f32.mrf.mxu0
      %v3230 = vadd.f32 0.0, %v3229
      %v3231 = vpop.f32.mrf.mxu0
      %3232 = vmatprep.mubr.bf16.mxu0 0
      %3233 = vmatmul.mubr.bf16.gmra.mxu0 %v2974
      %v3234 = vpop.f32.mrf.mxu0
      %v3235 = vadd.f32 0.0, %v3234
      %v3236 = vpop.f32.mrf.mxu0
      %v3237 = vpop.f32.mrf.mxu0
      %v3238 = vpop.f32.mrf.mxu0
      %3239 = vmatprep.mubr.bf16.mxu0 0
      %3240 = vmatmul.mubr.bf16.gmra.mxu0 %v2976
      %v3241 = vpop.f32.mrf.mxu0
      %v3242 = vadd.f32 0.0, %v3241
      %v3243 = vpop.f32.mrf.mxu0
      %v3244 = vpop.f32.mrf.mxu0
      %v3245 = vadd.f32 0.0, %v3244
      %v3246 = vpop.f32.mrf.mxu0
      %3247 = vmatprep.mubr.bf16.mxu0 0
      %3248 = vmatmul.mubr.bf16.gmra.mxu0 %v2978
      %v3249 = vpop.f32.mrf.mxu0
      %v3250 = vpop.f32.mrf.mxu0
      %v3251 = vpop.f32.mrf.mxu0
      %v3252 = vadd.f32 0.0, %v3251
      %v3253 = vpop.f32.mrf.mxu0
      %3254 = vmatprep.mubr.bf16.mxu0 0
      %3255 = vmatmul.mubr.bf16.gmra.mxu0 %v2980
      %v3256 = vpop.f32.mrf.mxu0
      %v3257 = vadd.f32 0.0, %v3256
      %v3258 = vpop.f32.mrf.mxu0
      %v3259 = vpop.f32.mrf.mxu0
      %v3260 = vpop.f32.mrf.mxu0
      %3261 = vdwg.mxu0
      %v3262 = vadd.f32 %v2878, %v3088
      %v3263 = vadd.f32 %v2879, %v3091
      %v3264 = vadd.f32 %v2880, %v3098
      %v3265 = vadd.f32 %v2881, %v3103
      %v3266 = vadd.f32 %v2882, %v3110
      %v3267 = vadd.f32 %v2883, %v3113
      %v3268 = vadd.f32 %v2884, %v3120
      %v3269 = vadd.f32 %v2885, %v3125
      %v3270 = vadd.f32 %v2886, %v3132
      %v3271 = vadd.f32 %v2887, %v3135
      %v3272 = vadd.f32 %v2888, %v3142
      %v3273 = vadd.f32 %v2889, %v3147
      %v3274 = vadd.f32 %v2890, %v3154
      %v3275 = vadd.f32 %v2891, %v3157
      %v3276 = vadd.f32 %v2892, %v3164
      %v3277 = vadd.f32 %v2893, %v3169
      %v3278 = vadd.f32 %v2894, %v3176
      %v3279 = vadd.f32 %v2895, %v3179
      %v3280 = vadd.f32 %v2896, %v3186
      %v3281 = vadd.f32 %v2897, %v3191
      %v3282 = vadd.f32 %v2898, %v3198
      %v3283 = vadd.f32 %v2899, %v3201
      %v3284 = vadd.f32 %v2900, %v3208
      %v3285 = vadd.f32 %v2901, %v3213
      %v3286 = vadd.f32 %v2902, %v3220
      %v3287 = vadd.f32 %v2903, %v3223
      %v3288 = vadd.f32 %v2904, %v3230
      %v3289 = vadd.f32 %v2905, %v3235
      %v3290 = vadd.f32 %v2906, %v3242
      %v3291 = vadd.f32 %v2907, %v3245
      %v3292 = vadd.f32 %v2908, %v3252
      %v3293 = vadd.f32 %v2909, %v3257
      %s3294 = scalar_lea.vmem %s172, 320
      %v3295 = vld [vmem:[%s3294] sm:$0xf]
      %v3296 = vld [vmem:[%s3294 + $0x4] sm:$0xf]
      %v3297 = vld [vmem:[%s3294 + $0x8] sm:$0xf]
      %v3298 = vld [vmem:[%s3294 + $0xc] sm:$0xf]
      %v3299 = vld [vmem:[%s3294 + $0x10] sm:$0xf]
      %v3300 = vld [vmem:[%s3294 + $0x14] sm:$0xf]
      %v3301 = vld [vmem:[%s3294 + $0x18] sm:$0xf]
      %v3302 = vld [vmem:[%s3294 + $0x1c] sm:$0xf]
      %v3303 = vld [vmem:[%s3294 + $0x20] sm:$0xf]
      %v3304 = vld [vmem:[%s3294 + $0x24] sm:$0xf]
      %v3305 = vld [vmem:[%s3294 + $0x28] sm:$0xf]
      %v3306 = vld [vmem:[%s3294 + $0x2c] sm:$0xf]
      %v3307 = vld [vmem:[%s3294 + $0x30] sm:$0xf]
      %v3308 = vld [vmem:[%s3294 + $0x34] sm:$0xf]
      %v3309 = vld [vmem:[%s3294 + $0x38] sm:$0xf]
      %v3310 = vld [vmem:[%s3294 + $0x3c] sm:$0xf]
      %v3311 = vrot.slane %v2027, 1
      %v3312 = vrot.slane %v2028, 1
      %v3313 = vsel %vm2931, %v3311, %v3312
      %v3314 = vrot.slane %v2029, 1
      %v3315 = vsel %vm2931, %v3312, %v3314
      %v3316 = vrot.slane %v2030, 1
      %v3317 = vsel %vm2931, %v3314, %v3316
      %v3318 = vrot.slane %v2031, 1
      %v3319 = vsel %vm2931, %v3316, %v3318
      %v3320 = vrot.slane %v2032, 1
      %v3321 = vsel %vm2931, %v3318, %v3320
      %v3322 = vrot.slane %v2033, 1
      %v3323 = vsel %vm2931, %v3320, %v3322
      %v3324 = vrot.slane %v2034, 1
      %v3325 = vsel %vm2931, %v3322, %v3324
      %v3326 = vrot.slane %v2035, 1
      %v3327 = vsel %vm2931, %v3324, %v3326
      %v3328 = vrot.slane %v2036, 1
      %v3329 = vsel %vm2931, %v3326, %v3328
      %v3330 = vrot.slane %v2037, 1
      %v3331 = vsel %vm2931, %v3328, %v3330
      %v3332 = vrot.slane %v2038, 1
      %v3333 = vsel %vm2931, %v3330, %v3332
      %v3334 = vrot.slane %v2039, 1
      %v3335 = vsel %vm2931, %v3332, %v3334
      %v3336 = vrot.slane %v2040, 1
      %v3337 = vsel %vm2931, %v3334, %v3336
      %v3338 = vrot.slane %v2041, 1
      %v3339 = vsel %vm2931, %v3336, %v3338
      %v3340 = vrot.slane %v2042, 1
      %v3341 = vsel %vm2931, %v3338, %v3340
      %v3342 = vrot.slane %v2043, 1
      %v3343 = vsel %vm2931, %v3340, %v3342
      %v3344 = vrot.slane %v2044, 1
      %v3345 = vsel %vm2931, %v3342, %v3344
      %v3346 = vrot.slane %v2045, 1
      %v3347 = vsel %vm2931, %v3344, %v3346
      %v3348 = vrot.slane %v2046, 1
      %v3349 = vsel %vm2931, %v3346, %v3348
      %v3350 = vrot.slane %v2047, 1
      %v3351 = vsel %vm2931, %v3348, %v3350
      %v3352 = vrot.slane %v2048, 1
      %v3353 = vsel %vm2931, %v3350, %v3352
      %v3354 = vrot.slane %v2049, 1
      %v3355 = vsel %vm2931, %v3352, %v3354
      %v3356 = vrot.slane %v2050, 1
      %v3357 = vsel %vm2931, %v3354, %v3356
      %v3358 = vrot.slane %v2051, 1
      %v3359 = vsel %vm2931, %v3356, %v3358
      %v3400 = vunpack.c.l.b16 %v3295
      %v3401 = vunpack.c.l.b16 %v3296
      %v3402 = vunpack.c.l.b16 %v3297
      %v3403 = vunpack.c.l.b16 %v3298
      %v3404 = vunpack.c.l.b16 %v3299
      %v3405 = vunpack.c.l.b16 %v3300
      %v3406 = vunpack.c.l.b16 %v3301
      %v3407 = vunpack.c.l.b16 %v3302
      %v3408 = vunpack.c.l.b16 %v3303
      %v3409 = vunpack.c.l.b16 %v3304
      %v3410 = vunpack.c.l.b16 %v3305
      %v3411 = vunpack.c.l.b16 %v3306
      %v3412 = vunpack.c.l.b16 %v3307
      %v3413 = vunpack.c.l.b16 %v3308
      %v3414 = vunpack.c.l.b16 %v3309
      %v3415 = vunpack.c.l.b16 %v3310
      %v3416 = vpack.c.b16 %v3401, %v3400
      %v3417 = vpack.c.b16 %v3403, %v3402
      %v3418 = vpack.c.b16 %v3405, %v3404
      %v3419 = vpack.c.b16 %v3407, %v3406
      %v3420 = vpack.c.b16 %v3409, %v3408
      %v3421 = vpack.c.b16 %v3411, %v3410
      %v3422 = vpack.c.b16 %v3413, %v3412
      %v3423 = vpack.c.b16 %v3415, %v3414
      %3432 = vmatprep.subr.bf16.mxu0 0
      %3433 = vmatpush1.bf16.msra.mxu0 %v3423
      %3434 = vmatprep.subr.bf16.mxu0 0
      %3435 = vmatpush1.bf16.msra.mxu0 %v3422
      %3436 = vmatprep.subr.bf16.mxu0 0
      %3437 = vmatpush1.bf16.msra.mxu0 %v3421
      %3438 = vmatprep.subr.bf16.mxu0 0
      %3439 = vmatpush1.bf16.msra.mxu0 %v3420
      %3440 = vmatprep.subr.bf16.mxu0 0
      %3441 = vmatpush1.bf16.msra.mxu0 %v3419
      %3442 = vmatprep.subr.bf16.mxu0 0
      %3443 = vmatpush1.bf16.msra.mxu0 %v3418
      %3444 = vmatprep.subr.bf16.mxu0 0
      %3445 = vmatpush1.bf16.msra.mxu0 %v3417
      %3446 = vmatprep.subr.bf16.mxu0 0
      %3447 = vmatpush1.bf16.msra.mxu0 %v3416
      %3448 = vmatprep.subr.bf16.mxu0 0
      %3449 = vmatpush2.bf16.msra.mxu0 0
      %3450 = vmatprep.subr.bf16.mxu0 0
      %3451 = vmatpush2.bf16.msra.mxu0 0
      %3452 = vmatprep.subr.bf16.mxu0 0
      %3453 = vmatpush2.bf16.msra.mxu0 0
      %3454 = vmatprep.subr.bf16.mxu0 0
      %3455 = vmatpush2.bf16.msra.mxu0 0
      %3456 = vmatprep.subr.bf16.mxu0 0
      %3457 = vmatpush2.bf16.msra.mxu0 0
      %3458 = vmatprep.subr.bf16.mxu0 0
      %3459 = vmatpush2.bf16.msra.mxu0 0
      %3460 = vmatprep.subr.bf16.mxu0 0
      %3461 = vmatpush2.bf16.msra.mxu0 0
      %3462 = vmatprep.subr.bf16.mxu0 0
      %3463 = vmatpush2.bf16.msra.mxu0 0
      %3464 = vmatprep.mubr.bf16.mxu0 0
      %3465 = vmatmul.mubr.bf16.gmra.mxu0 %v3313
      %v3466 = vpop.f32.mrf.mxu0
      %v3467 = vadd.f32 0.0, %v3466
      %v3468 = vpop.f32.mrf.mxu0
      %v3469 = vpop.f32.mrf.mxu0
      %v3470 = vadd.f32 0.0, %v3469
      %v3471 = vpop.f32.mrf.mxu0
      %3472 = vmatprep.mubr.bf16.mxu0 0
      %3473 = vmatmul.mubr.bf16.gmra.mxu0 %v3315
      %v3474 = vpop.f32.mrf.mxu0
      %v3475 = vpop.f32.mrf.mxu0
      %v3476 = vpop.f32.mrf.mxu0
      %v3477 = vadd.f32 0.0, %v3476
      %v3478 = vpop.f32.mrf.mxu0
      %3479 = vmatprep.mubr.bf16.mxu0 0
      %3480 = vmatmul.mubr.bf16.gmra.mxu0 %v3317
      %v3481 = vpop.f32.mrf.mxu0
      %v3482 = vadd.f32 0.0, %v3481
      %v3483 = vpop.f32.mrf.mxu0
      %v3484 = vpop.f32.mrf.mxu0
      %v3485 = vpop.f32.mrf.mxu0
      %3486 = vmatprep.mubr.bf16.mxu0 0
      %3487 = vmatmul.mubr.bf16.gmra.mxu0 %v3319
      %v3488 = vpop.f32.mrf.mxu0
      %v3489 = vadd.f32 0.0, %v3488
      %v3490 = vpop.f32.mrf.mxu0
      %v3491 = vpop.f32.mrf.mxu0
      %v3492 = vadd.f32 0.0, %v3491
      %v3493 = vpop.f32.mrf.mxu0
      %3494 = vmatprep.mubr.bf16.mxu0 0
      %3495 = vmatmul.mubr.bf16.gmra.mxu0 %v3321
      %v3496 = vpop.f32.mrf.mxu0
      %v3497 = vpop.f32.mrf.mxu0
      %v3498 = vpop.f32.mrf.mxu0
      %v3499 = vadd.f32 0.0, %v3498
      %v3500 = vpop.f32.mrf.mxu0
      %3501 = vmatprep.mubr.bf16.mxu0 0
      %3502 = vmatmul.mubr.bf16.gmra.mxu0 %v3323
      %v3503 = vpop.f32.mrf.mxu0
      %v3504 = vadd.f32 0.0, %v3503
      %v3505 = vpop.f32.mrf.mxu0
      %v3506 = vpop.f32.mrf.mxu0
      %v3507 = vpop.f32.mrf.mxu0
      %3508 = vmatprep.mubr.bf16.mxu0 0
      %3509 = vmatmul.mubr.bf16.gmra.mxu0 %v3325
      %v3510 = vpop.f32.mrf.mxu0
      %v3511 = vadd.f32 0.0, %v3510
      %v3512 = vpop.f32.mrf.mxu0
      %v3513 = vpop.f32.mrf.mxu0
      %v3514 = vadd.f32 0.0, %v3513
      %v3515 = vpop.f32.mrf.mxu0
      %3516 = vmatprep.mubr.bf16.mxu0 0
      %3517 = vmatmul.mubr.bf16.gmra.mxu0 %v3327
      %v3518 = vpop.f32.mrf.mxu0
      %v3519 = vpop.f32.mrf.mxu0
      %v3520 = vpop.f32.mrf.mxu0
      %v3521 = vadd.f32 0.0, %v3520
      %v3522 = vpop.f32.mrf.mxu0
      %3523 = vmatprep.mubr.bf16.mxu0 0
      %3524 = vmatmul.mubr.bf16.gmra.mxu0 %v3329
      %v3525 = vpop.f32.mrf.mxu0
      %v3526 = vadd.f32 0.0, %v3525
      %v3527 = vpop.f32.mrf.mxu0
      %v3528 = vpop.f32.mrf.mxu0
      %v3529 = vpop.f32.mrf.mxu0
      %3530 = vmatprep.mubr.bf16.mxu0 0
      %3531 = vmatmul.mubr.bf16.gmra.mxu0 %v3331
      %v3532 = vpop.f32.mrf.mxu0
      %v3533 = vadd.f32 0.0, %v3532
      %v3534 = vpop.f32.mrf.mxu0
      %v3535 = vpop.f32.mrf.mxu0
      %v3536 = vadd.f32 0.0, %v3535
      %v3537 = vpop.f32.mrf.mxu0
      %3538 = vmatprep.mubr.bf16.mxu0 0
      %3539 = vmatmul.mubr.bf16.gmra.mxu0 %v3333
      %v3540 = vpop.f32.mrf.mxu0
      %v3541 = vpop.f32.mrf.mxu0
      %v3542 = vpop.f32.mrf.mxu0
      %v3543 = vadd.f32 0.0, %v3542
      %v3544 = vpop.f32.mrf.mxu0
      %3545 = vmatprep.mubr.bf16.mxu0 0
      %3546 = vmatmul.mubr.bf16.gmra.mxu0 %v3335
      %v3547 = vpop.f32.mrf.mxu0
      %v3548 = vadd.f32 0.0, %v3547
      %v3549 = vpop.f32.mrf.mxu0
      %v3550 = vpop.f32.mrf.mxu0
      %v3551 = vpop.f32.mrf.mxu0
      %3552 = vmatprep.mubr.bf16.mxu0 0
      %3553 = vmatmul.mubr.bf16.gmra.mxu0 %v3337
      %v3554 = vpop.f32.mrf.mxu0
      %v3555 = vadd.f32 0.0, %v3554
      %v3556 = vpop.f32.mrf.mxu0
      %v3557 = vpop.f32.mrf.mxu0
      %v3558 = vadd.f32 0.0, %v3557
      %v3559 = vpop.f32.mrf.mxu0
      %3560 = vmatprep.mubr.bf16.mxu0 0
      %3561 = vmatmul.mubr.bf16.gmra.mxu0 %v3339
      %v3562 = vpop.f32.mrf.mxu0
      %v3563 = vpop.f32.mrf.mxu0
      %v3564 = vpop.f32.mrf.mxu0
      %v3565 = vadd.f32 0.0, %v3564
      %v3566 = vpop.f32.mrf.mxu0
      %3567 = vmatprep.mubr.bf16.mxu0 0
      %3568 = vmatmul.mubr.bf16.gmra.mxu0 %v3341
      %v3569 = vpop.f32.mrf.mxu0
      %v3570 = vadd.f32 0.0, %v3569
      %v3571 = vpop.f32.mrf.mxu0
      %v3572 = vpop.f32.mrf.mxu0
      %v3573 = vpop.f32.mrf.mxu0
      %3574 = vmatprep.mubr.bf16.mxu0 0
      %3575 = vmatmul.mubr.bf16.gmra.mxu0 %v3343
      %v3576 = vpop.f32.mrf.mxu0
      %v3577 = vadd.f32 0.0, %v3576
      %v3578 = vpop.f32.mrf.mxu0
      %v3579 = vpop.f32.mrf.mxu0
      %v3580 = vadd.f32 0.0, %v3579
      %v3581 = vpop.f32.mrf.mxu0
      %3582 = vmatprep.mubr.bf16.mxu0 0
      %3583 = vmatmul.mubr.bf16.gmra.mxu0 %v3345
      %v3584 = vpop.f32.mrf.mxu0
      %v3585 = vpop.f32.mrf.mxu0
      %v3586 = vpop.f32.mrf.mxu0
      %v3587 = vadd.f32 0.0, %v3586
      %v3588 = vpop.f32.mrf.mxu0
      %3589 = vmatprep.mubr.bf16.mxu0 0
      %3590 = vmatmul.mubr.bf16.gmra.mxu0 %v3347
      %v3591 = vpop.f32.mrf.mxu0
      %v3592 = vadd.f32 0.0, %v3591
      %v3593 = vpop.f32.mrf.mxu0
      %v3594 = vpop.f32.mrf.mxu0
      %v3595 = vpop.f32.mrf.mxu0
      %3596 = vmatprep.mubr.bf16.mxu0 0
      %3597 = vmatmul.mubr.bf16.gmra.mxu0 %v3349
      %v3598 = vpop.f32.mrf.mxu0
      %v3599 = vadd.f32 0.0, %v3598
      %v3600 = vpop.f32.mrf.mxu0
      %v3601 = vpop.f32.mrf.mxu0
      %v3602 = vadd.f32 0.0, %v3601
      %v3603 = vpop.f32.mrf.mxu0
      %3604 = vmatprep.mubr.bf16.mxu0 0
      %3605 = vmatmul.mubr.bf16.gmra.mxu0 %v3351
      %v3606 = vpop.f32.mrf.mxu0
      %v3607 = vpop.f32.mrf.mxu0
      %v3608 = vpop.f32.mrf.mxu0
      %v3609 = vadd.f32 0.0, %v3608
      %v3610 = vpop.f32.mrf.mxu0
      %3611 = vmatprep.mubr.bf16.mxu0 0
      %3612 = vmatmul.mubr.bf16.gmra.mxu0 %v3353
      %v3613 = vpop.f32.mrf.mxu0
      %v3614 = vadd.f32 0.0, %v3613
      %v3615 = vpop.f32.mrf.mxu0
      %v3616 = vpop.f32.mrf.mxu0
      %v3617 = vpop.f32.mrf.mxu0
      %3618 = vmatprep.mubr.bf16.mxu0 0
      %3619 = vmatmul.mubr.bf16.gmra.mxu0 %v3355
      %v3620 = vpop.f32.mrf.mxu0
      %v3621 = vadd.f32 0.0, %v3620
      %v3622 = vpop.f32.mrf.mxu0
      %v3623 = vpop.f32.mrf.mxu0
      %v3624 = vadd.f32 0.0, %v3623
      %v3625 = vpop.f32.mrf.mxu0
      %3626 = vmatprep.mubr.bf16.mxu0 0
      %3627 = vmatmul.mubr.bf16.gmra.mxu0 %v3357
      %v3628 = vpop.f32.mrf.mxu0
      %v3629 = vpop.f32.mrf.mxu0
      %v3630 = vpop.f32.mrf.mxu0
      %v3631 = vadd.f32 0.0, %v3630
      %v3632 = vpop.f32.mrf.mxu0
      %3633 = vmatprep.mubr.bf16.mxu0 0
      %3634 = vmatmul.mubr.bf16.gmra.mxu0 %v3359
      %v3635 = vpop.f32.mrf.mxu0
      %v3636 = vadd.f32 0.0, %v3635
      %v3637 = vpop.f32.mrf.mxu0
      %v3638 = vpop.f32.mrf.mxu0
      %v3639 = vpop.f32.mrf.mxu0
      %3640 = vdwg.mxu0
      %v3641 = vadd.f32 %v3262, %v3467
      %v3642 = vadd.f32 %v3263, %v3470
      %v3643 = vadd.f32 %v3264, %v3477
      %v3644 = vadd.f32 %v3265, %v3482
      %v3645 = vadd.f32 %v3266, %v3489
      %v3646 = vadd.f32 %v3267, %v3492
      %v3647 = vadd.f32 %v3268, %v3499
      %v3648 = vadd.f32 %v3269, %v3504
      %v3649 = vadd.f32 %v3270, %v3511
      %v3650 = vadd.f32 %v3271, %v3514
      %v3651 = vadd.f32 %v3272, %v3521
      %v3652 = vadd.f32 %v3273, %v3526
      %v3653 = vadd.f32 %v3274, %v3533
      %v3654 = vadd.f32 %v3275, %v3536
      %v3655 = vadd.f32 %v3276, %v3543
      %v3656 = vadd.f32 %v3277, %v3548
      %v3657 = vadd.f32 %v3278, %v3555
      %v3658 = vadd.f32 %v3279, %v3558
      %v3659 = vadd.f32 %v3280, %v3565
      %v3660 = vadd.f32 %v3281, %v3570
      %v3661 = vadd.f32 %v3282, %v3577
      %v3662 = vadd.f32 %v3283, %v3580
      %v3663 = vadd.f32 %v3284, %v3587
      %v3664 = vadd.f32 %v3285, %v3592
      %v3665 = vadd.f32 %v3286, %v3599
      %v3666 = vadd.f32 %v3287, %v3602
      %v3667 = vadd.f32 %v3288, %v3609
      %v3668 = vadd.f32 %v3289, %v3614
      %v3669 = vadd.f32 %v3290, %v3621
      %v3670 = vadd.f32 %v3291, %v3624
      %v3671 = vadd.f32 %v3292, %v3631
      %v3672 = vadd.f32 %v3293, %v3636
      %s3673 = scalar_lea.vmem %s172, 512
      %v3674 = vld [vmem:[%s3673] sm:$0xf]
      %v3675 = vld [vmem:[%s3673 + $0x4] sm:$0xf]
      %v3676 = vld [vmem:[%s3673 + $0x8] sm:$0xf]
      %v3677 = vld [vmem:[%s3673 + $0xc] sm:$0xf]
      %v3678 = vld [vmem:[%s3673 + $0x10] sm:$0xf]
      %v3679 = vld [vmem:[%s3673 + $0x14] sm:$0xf]
      %v3680 = vld [vmem:[%s3673 + $0x18] sm:$0xf]
      %v3681 = vld [vmem:[%s3673 + $0x1c] sm:$0xf]
      %v3682 = vld [vmem:[%s3673 + $0x20] sm:$0xf]
      %v3683 = vld [vmem:[%s3673 + $0x24] sm:$0xf]
      %v3684 = vld [vmem:[%s3673 + $0x28] sm:$0xf]
      %v3685 = vld [vmem:[%s3673 + $0x2c] sm:$0xf]
      %v3686 = vld [vmem:[%s3673 + $0x30] sm:$0xf]
      %v3687 = vld [vmem:[%s3673 + $0x34] sm:$0xf]
      %v3688 = vld [vmem:[%s3673 + $0x38] sm:$0xf]
      %v3689 = vld [vmem:[%s3673 + $0x3c] sm:$0xf]
      %v3690 = vrot.slane %v2584, 1
      %v3691 = vsel %vm2931, %v2977, %v3690
      %v3692 = vrot.slane %v2585, 1
      %v3693 = vsel %vm2931, %v3690, %v3692
      %v3694 = vrot.slane %v2586, 1
      %v3695 = vsel %vm2931, %v3692, %v3694
      %v3696 = vrot.slane %v2587, 1
      %v3697 = vsel %vm2931, %v3694, %v3696
      %v3718 = vunpack.c.l.b16 %v3674
      %v3719 = vunpack.c.l.b16 %v3675
      %v3720 = vunpack.c.l.b16 %v3676
      %v3721 = vunpack.c.l.b16 %v3677
      %v3722 = vunpack.c.l.b16 %v3678
      %v3723 = vunpack.c.l.b16 %v3679
      %v3724 = vunpack.c.l.b16 %v3680
      %v3725 = vunpack.c.l.b16 %v3681
      %v3726 = vunpack.c.l.b16 %v3682
      %v3727 = vunpack.c.l.b16 %v3683
      %v3728 = vunpack.c.l.b16 %v3684
      %v3729 = vunpack.c.l.b16 %v3685
      %v3730 = vunpack.c.l.b16 %v3686
      %v3731 = vunpack.c.l.b16 %v3687
      %v3732 = vunpack.c.l.b16 %v3688
      %v3733 = vunpack.c.l.b16 %v3689
      %v3734 = vpack.c.b16 %v3719, %v3718
      %v3735 = vpack.c.b16 %v3721, %v3720
      %v3736 = vpack.c.b16 %v3723, %v3722
      %v3737 = vpack.c.b16 %v3725, %v3724
      %v3738 = vpack.c.b16 %v3727, %v3726
      %v3739 = vpack.c.b16 %v3729, %v3728
      %v3740 = vpack.c.b16 %v3731, %v3730
      %v3741 = vpack.c.b16 %v3733, %v3732
      %3750 = vmatprep.subr.bf16.mxu0 0
      %3751 = vmatpush1.bf16.msra.mxu0 %v3741
      %3752 = vmatprep.subr.bf16.mxu0 0
      %3753 = vmatpush1.bf16.msra.mxu0 %v3740
      %3754 = vmatprep.subr.bf16.mxu0 0
      %3755 = vmatpush1.bf16.msra.mxu0 %v3739
      %3756 = vmatprep.subr.bf16.mxu0 0
      %3757 = vmatpush1.bf16.msra.mxu0 %v3738
      %3758 = vmatprep.subr.bf16.mxu0 0
      %3759 = vmatpush1.bf16.msra.mxu0 %v3737
      %3760 = vmatprep.subr.bf16.mxu0 0
      %3761 = vmatpush1.bf16.msra.mxu0 %v3736
      %3762 = vmatprep.subr.bf16.mxu0 0
      %3763 = vmatpush1.bf16.msra.mxu0 %v3735
      %3764 = vmatprep.subr.bf16.mxu0 0
      %3765 = vmatpush1.bf16.msra.mxu0 %v3734
      %3766 = vmatprep.subr.bf16.mxu0 0
      %3767 = vmatpush2.bf16.msra.mxu0 0
      %3768 = vmatprep.subr.bf16.mxu0 0
      %3769 = vmatpush2.bf16.msra.mxu0 0
      %3770 = vmatprep.subr.bf16.mxu0 0
      %3771 = vmatpush2.bf16.msra.mxu0 0
      %3772 = vmatprep.subr.bf16.mxu0 0
      %3773 = vmatpush2.bf16.msra.mxu0 0
      %3774 = vmatprep.subr.bf16.mxu0 0
      %3775 = vmatpush2.bf16.msra.mxu0 0
      %3776 = vmatprep.subr.bf16.mxu0 0
      %3777 = vmatpush2.bf16.msra.mxu0 0
      %3778 = vmatprep.subr.bf16.mxu0 0
      %3779 = vmatpush2.bf16.msra.mxu0 0
      %3780 = vmatprep.subr.bf16.mxu0 0
      %3781 = vmatpush2.bf16.msra.mxu0 0
      %3782 = vmatprep.mubr.bf16.mxu0 0
      %3783 = vmatmul.mubr.bf16.gmra.mxu0 %v2940
      %v3784 = vpop.f32.mrf.mxu0
      %v3785 = vadd.f32 0.0, %v3784
      %v3786 = vpop.f32.mrf.mxu0
      %v3787 = vpop.f32.mrf.mxu0
      %v3788 = vadd.f32 0.0, %v3787
      %v3789 = vpop.f32.mrf.mxu0
      %3790 = vmatprep.mubr.bf16.mxu0 0
      %3791 = vmatmul.mubr.bf16.gmra.mxu0 %v2942
      %v3792 = vpop.f32.mrf.mxu0
      %v3793 = vpop.f32.mrf.mxu0
      %v3794 = vpop.f32.mrf.mxu0
      %v3795 = vadd.f32 0.0, %v3794
      %v3796 = vpop.f32.mrf.mxu0
      %3797 = vmatprep.mubr.bf16.mxu0 0
      %3798 = vmatmul.mubr.bf16.gmra.mxu0 %v2944
      %v3799 = vpop.f32.mrf.mxu0
      %v3800 = vadd.f32 0.0, %v3799
      %v3801 = vpop.f32.mrf.mxu0
      %v3802 = vpop.f32.mrf.mxu0
      %v3803 = vpop.f32.mrf.mxu0
      %3804 = vmatprep.mubr.bf16.mxu0 0
      %3805 = vmatmul.mubr.bf16.gmra.mxu0 %v2946
      %v3806 = vpop.f32.mrf.mxu0
      %v3807 = vadd.f32 0.0, %v3806
      %v3808 = vpop.f32.mrf.mxu0
      %v3809 = vpop.f32.mrf.mxu0
      %v3810 = vadd.f32 0.0, %v3809
      %v3811 = vpop.f32.mrf.mxu0
      %3812 = vmatprep.mubr.bf16.mxu0 0
      %3813 = vmatmul.mubr.bf16.gmra.mxu0 %v2948
      %v3814 = vpop.f32.mrf.mxu0
      %v3815 = vpop.f32.mrf.mxu0
      %v3816 = vpop.f32.mrf.mxu0
      %v3817 = vadd.f32 0.0, %v3816
      %v3818 = vpop.f32.mrf.mxu0
      %3819 = vmatprep.mubr.bf16.mxu0 0
      %3820 = vmatmul.mubr.bf16.gmra.mxu0 %v2950
      %v3821 = vpop.f32.mrf.mxu0
      %v3822 = vadd.f32 0.0, %v3821
      %v3823 = vpop.f32.mrf.mxu0
      %v3824 = vpop.f32.mrf.mxu0
      %v3825 = vpop.f32.mrf.mxu0
      %3826 = vmatprep.mubr.bf16.mxu0 0
      %3827 = vmatmul.mubr.bf16.gmra.mxu0 %v2952
      %v3828 = vpop.f32.mrf.mxu0
      %v3829 = vadd.f32 0.0, %v3828
      %v3830 = vpop.f32.mrf.mxu0
      %v3831 = vpop.f32.mrf.mxu0
      %v3832 = vadd.f32 0.0, %v3831
      %v3833 = vpop.f32.mrf.mxu0
      %3834 = vmatprep.mubr.bf16.mxu0 0
      %3835 = vmatmul.mubr.bf16.gmra.mxu0 %v2954
      %v3836 = vpop.f32.mrf.mxu0
      %v3837 = vpop.f32.mrf.mxu0
      %v3838 = vpop.f32.mrf.mxu0
      %v3839 = vadd.f32 0.0, %v3838
      %v3840 = vpop.f32.mrf.mxu0
      %3841 = vmatprep.mubr.bf16.mxu0 0
      %3842 = vmatmul.mubr.bf16.gmra.mxu0 %v2956
      %v3843 = vpop.f32.mrf.mxu0
      %v3844 = vadd.f32 0.0, %v3843
      %v3845 = vpop.f32.mrf.mxu0
      %v3846 = vpop.f32.mrf.mxu0
      %v3847 = vpop.f32.mrf.mxu0
      %3848 = vmatprep.mubr.bf16.mxu0 0
      %3849 = vmatmul.mubr.bf16.gmra.mxu0 %v2958
      %v3850 = vpop.f32.mrf.mxu0
      %v3851 = vadd.f32 0.0, %v3850
      %v3852 = vpop.f32.mrf.mxu0
      %v3853 = vpop.f32.mrf.mxu0
      %v3854 = vadd.f32 0.0, %v3853
      %v3855 = vpop.f32.mrf.mxu0
      %3856 = vmatprep.mubr.bf16.mxu0 0
      %3857 = vmatmul.mubr.bf16.gmra.mxu0 %v2960
      %v3858 = vpop.f32.mrf.mxu0
      %v3859 = vpop.f32.mrf.mxu0
      %v3860 = vpop.f32.mrf.mxu0
      %v3861 = vadd.f32 0.0, %v3860
      %v3862 = vpop.f32.mrf.mxu0
      %3863 = vmatprep.mubr.bf16.mxu0 0
      %3864 = vmatmul.mubr.bf16.gmra.mxu0 %v2962
      %v3865 = vpop.f32.mrf.mxu0
      %v3866 = vadd.f32 0.0, %v3865
      %v3867 = vpop.f32.mrf.mxu0
      %v3868 = vpop.f32.mrf.mxu0
      %v3869 = vpop.f32.mrf.mxu0
      %3870 = vmatprep.mubr.bf16.mxu0 0
      %3871 = vmatmul.mubr.bf16.gmra.mxu0 %v2964
      %v3872 = vpop.f32.mrf.mxu0
      %v3873 = vadd.f32 0.0, %v3872
      %v3874 = vpop.f32.mrf.mxu0
      %v3875 = vpop.f32.mrf.mxu0
      %v3876 = vadd.f32 0.0, %v3875
      %v3877 = vpop.f32.mrf.mxu0
      %3878 = vmatprep.mubr.bf16.mxu0 0
      %3879 = vmatmul.mubr.bf16.gmra.mxu0 %v2966
      %v3880 = vpop.f32.mrf.mxu0
      %v3881 = vpop.f32.mrf.mxu0
      %v3882 = vpop.f32.mrf.mxu0
      %v3883 = vadd.f32 0.0, %v3882
      %v3884 = vpop.f32.mrf.mxu0
      %3885 = vmatprep.mubr.bf16.mxu0 0
      %3886 = vmatmul.mubr.bf16.gmra.mxu0 %v2968
      %v3887 = vpop.f32.mrf.mxu0
      %v3888 = vadd.f32 0.0, %v3887
      %v3889 = vpop.f32.mrf.mxu0
      %v3890 = vpop.f32.mrf.mxu0
      %v3891 = vpop.f32.mrf.mxu0
      %3892 = vmatprep.mubr.bf16.mxu0 0
      %3893 = vmatmul.mubr.bf16.gmra.mxu0 %v2970
      %v3894 = vpop.f32.mrf.mxu0
      %v3895 = vadd.f32 0.0, %v3894
      %v3896 = vpop.f32.mrf.mxu0
      %v3897 = vpop.f32.mrf.mxu0
      %v3898 = vadd.f32 0.0, %v3897
      %v3899 = vpop.f32.mrf.mxu0
      %3900 = vmatprep.mubr.bf16.mxu0 0
      %3901 = vmatmul.mubr.bf16.gmra.mxu0 %v2972
      %v3902 = vpop.f32.mrf.mxu0
      %v3903 = vpop.f32.mrf.mxu0
      %v3904 = vpop.f32.mrf.mxu0
      %v3905 = vadd.f32 0.0, %v3904
      %v3906 = vpop.f32.mrf.mxu0
      %3907 = vmatprep.mubr.bf16.mxu0 0
      %3908 = vmatmul.mubr.bf16.gmra.mxu0 %v2974
      %v3909 = vpop.f32.mrf.mxu0
      %v3910 = vadd.f32 0.0, %v3909
      %v3911 = vpop.f32.mrf.mxu0
      %v3912 = vpop.f32.mrf.mxu0
      %v3913 = vpop.f32.mrf.mxu0
      %3914 = vmatprep.mubr.bf16.mxu0 0
      %3915 = vmatmul.mubr.bf16.gmra.mxu0 %v2976
      %v3916 = vpop.f32.mrf.mxu0
      %v3917 = vadd.f32 0.0, %v3916
      %v3918 = vpop.f32.mrf.mxu0
      %v3919 = vpop.f32.mrf.mxu0
      %v3920 = vadd.f32 0.0, %v3919
      %v3921 = vpop.f32.mrf.mxu0
      %3922 = vmatprep.mubr.bf16.mxu0 0
      %3923 = vmatmul.mubr.bf16.gmra.mxu0 %v2978
      %v3924 = vpop.f32.mrf.mxu0
      %v3925 = vpop.f32.mrf.mxu0
      %v3926 = vpop.f32.mrf.mxu0
      %v3927 = vadd.f32 0.0, %v3926
      %v3928 = vpop.f32.mrf.mxu0
      %3929 = vmatprep.mubr.bf16.mxu0 0
      %3930 = vmatmul.mubr.bf16.gmra.mxu0 %v3691
      %v3931 = vpop.f32.mrf.mxu0
      %v3932 = vadd.f32 0.0, %v3931
      %v3933 = vpop.f32.mrf.mxu0
      %v3934 = vpop.f32.mrf.mxu0
      %v3935 = vpop.f32.mrf.mxu0
      %3936 = vmatprep.mubr.bf16.mxu0 0
      %3937 = vmatmul.mubr.bf16.gmra.mxu0 %v3693
      %v3938 = vpop.f32.mrf.mxu0
      %v3939 = vadd.f32 0.0, %v3938
      %v3940 = vpop.f32.mrf.mxu0
      %v3941 = vpop.f32.mrf.mxu0
      %v3942 = vadd.f32 0.0, %v3941
      %v3943 = vpop.f32.mrf.mxu0
      %3944 = vmatprep.mubr.bf16.mxu0 0
      %3945 = vmatmul.mubr.bf16.gmra.mxu0 %v3695
      %v3946 = vpop.f32.mrf.mxu0
      %v3947 = vpop.f32.mrf.mxu0
      %v3948 = vpop.f32.mrf.mxu0
      %v3949 = vadd.f32 0.0, %v3948
      %v3950 = vpop.f32.mrf.mxu0
      %3951 = vmatprep.mubr.bf16.mxu0 0
      %3952 = vmatmul.mubr.bf16.gmra.mxu0 %v3697
      %v3953 = vpop.f32.mrf.mxu0
      %v3954 = vadd.f32 0.0, %v3953
      %v3955 = vpop.f32.mrf.mxu0
      %v3956 = vpop.f32.mrf.mxu0
      %v3957 = vpop.f32.mrf.mxu0
      %3958 = vdwg.mxu0
      %v3959 = vadd.f32 %v3641, %v3785
      %v3960 = vadd.f32 %v3642, %v3788
      %v3961 = vadd.f32 %v3643, %v3795
      %v3962 = vadd.f32 %v3644, %v3800
      %v3963 = vadd.f32 %v3645, %v3807
      %v3964 = vadd.f32 %v3646, %v3810
      %v3965 = vadd.f32 %v3647, %v3817
      %v3966 = vadd.f32 %v3648, %v3822
      %v3967 = vadd.f32 %v3649, %v3829
      %v3968 = vadd.f32 %v3650, %v3832
      %v3969 = vadd.f32 %v3651, %v3839
      %v3970 = vadd.f32 %v3652, %v3844
      %v3971 = vadd.f32 %v3653, %v3851
      %v3972 = vadd.f32 %v3654, %v3854
      %v3973 = vadd.f32 %v3655, %v3861
      %v3974 = vadd.f32 %v3656, %v3866
      %v3975 = vadd.f32 %v3657, %v3873
      %v3976 = vadd.f32 %v3658, %v3876
      %v3977 = vadd.f32 %v3659, %v3883
      %v3978 = vadd.f32 %v3660, %v3888
      %v3979 = vadd.f32 %v3661, %v3895
      %v3980 = vadd.f32 %v3662, %v3898
      %v3981 = vadd.f32 %v3663, %v3905
      %v3982 = vadd.f32 %v3664, %v3910
      %v3983 = vadd.f32 %v3665, %v3917
      %v3984 = vadd.f32 %v3666, %v3920
      %v3985 = vadd.f32 %v3667, %v3927
      %v3986 = vadd.f32 %v3668, %v3932
      %v3987 = vadd.f32 %v3669, %v3939
      %v3988 = vadd.f32 %v3670, %v3942
      %v3989 = vadd.f32 %v3671, %v3949
      %v3990 = vadd.f32 %v3672, %v3954
      %v3991 = vadd.f32 %v3959, %v3960
      %v3992 = vadd.f32 %v3991, %v3961
      %v3993 = vadd.f32 %v3992, %v3962
      %v3994 = vadd.f32 %v3993, %v3963
      %v3995 = vadd.f32 %v3994, %v3964
      %v3996 = vadd.f32 %v3995, %v3965
      %v3997 = vadd.f32 %v3996, %v3966
      %v3998 = vadd.f32 %v3997, %v3967
      %v3999 = vadd.f32 %v3998, %v3968
      %v4000 = vadd.f32 %v3999, %v3969
      %v4001 = vadd.f32 %v4000, %v3970
      %v4002 = vadd.f32 %v4001, %v3971
      %v4003 = vadd.f32 %v4002, %v3972
      %v4004 = vadd.f32 %v4003, %v3973
      %v4005 = vadd.f32 %v4004, %v3974
      %v4006 = vadd.f32 %v4005, %v3975
      %v4007 = vadd.f32 %v4006, %v3976
      %v4008 = vadd.f32 %v4007, %v3977
      %v4009 = vadd.f32 %v4008, %v3978
      %v4010 = vadd.f32 %v4009, %v3979
      %v4011 = vadd.f32 %v4010, %v3980
      %v4012 = vadd.f32 %v4011, %v3981
      %v4013 = vadd.f32 %v4012, %v3982
      %v4014 = vadd.f32 %v4013, %v3983
      %v4015 = vadd.f32 %v4014, %v3984
      %v4016 = vadd.f32 %v4015, %v3985
      %v4017 = vadd.f32 %v4016, %v3986
      %v4018 = vadd.f32 %v4017, %v3987
      %v4019 = vadd.f32 %v4018, %v3988
      %v4020 = vadd.f32 %v4019, %v3989
      %v4021 = vadd.f32 %v4020, %v3990
      %v4022 = vrot.slane %v4021, 4
      %v4023 = vadd.f32 %v4021, %v4022
      %v4024 = vrot.slane %v4023, 2
      %v4025 = vadd.f32 %v4023, %v4024
      %v4026 = vrot.slane %v4025, 1
      %v4027 = vadd.f32 %v4025, %v4026
      %v4028 = vrcp.pop 256.0
      %v4029 = vmul.f32 %v4027, %v4028
      %v4030 = vsub.f32 %v3959, %v4029
      %v4031 = vsub.f32 %v3960, %v4029
      %v4032 = vsub.f32 %v3961, %v4029
      %v4033 = vsub.f32 %v3962, %v4029
      %v4034 = vsub.f32 %v3963, %v4029
      %v4035 = vsub.f32 %v3964, %v4029
      %v4036 = vsub.f32 %v3965, %v4029
      %v4037 = vsub.f32 %v3966, %v4029
      %v4038 = vsub.f32 %v3967, %v4029
      %v4039 = vsub.f32 %v3968, %v4029
      %v4040 = vsub.f32 %v3969, %v4029
      %v4041 = vsub.f32 %v3970, %v4029
      %v4042 = vsub.f32 %v3971, %v4029
      %v4043 = vsub.f32 %v3972, %v4029
      %v4044 = vsub.f32 %v3973, %v4029
      %v4045 = vsub.f32 %v3974, %v4029
      %v4046 = vsub.f32 %v3975, %v4029
      %v4047 = vsub.f32 %v3976, %v4029
      %v4048 = vsub.f32 %v3977, %v4029
      %v4049 = vsub.f32 %v3978, %v4029
      %v4050 = vsub.f32 %v3979, %v4029
      %v4051 = vsub.f32 %v3980, %v4029
      %v4052 = vsub.f32 %v3981, %v4029
      %v4053 = vsub.f32 %v3982, %v4029
      %v4054 = vsub.f32 %v3983, %v4029
      %v4055 = vsub.f32 %v3984, %v4029
      %v4056 = vsub.f32 %v3985, %v4029
      %v4057 = vsub.f32 %v3986, %v4029
      %v4058 = vsub.f32 %v3987, %v4029
      %v4059 = vsub.f32 %v3988, %v4029
      %v4060 = vsub.f32 %v3989, %v4029
      %v4061 = vsub.f32 %v3990, %v4029
      %v4062 = vmul.f32 %v4030, %v4030
      %v4063 = vmul.f32 %v4031, %v4031
      %v4064 = vmul.f32 %v4032, %v4032
      %v4065 = vmul.f32 %v4033, %v4033
      %v4066 = vmul.f32 %v4034, %v4034
      %v4067 = vmul.f32 %v4035, %v4035
      %v4068 = vmul.f32 %v4036, %v4036
      %v4069 = vmul.f32 %v4037, %v4037
      %v4070 = vmul.f32 %v4038, %v4038
      %v4071 = vmul.f32 %v4039, %v4039
      %v4072 = vmul.f32 %v4040, %v4040
      %v4073 = vmul.f32 %v4041, %v4041
      %v4074 = vmul.f32 %v4042, %v4042
      %v4075 = vmul.f32 %v4043, %v4043
      %v4076 = vmul.f32 %v4044, %v4044
      %v4077 = vmul.f32 %v4045, %v4045
      %v4078 = vmul.f32 %v4046, %v4046
      %v4079 = vmul.f32 %v4047, %v4047
      %v4080 = vmul.f32 %v4048, %v4048
      %v4081 = vmul.f32 %v4049, %v4049
      %v4082 = vmul.f32 %v4050, %v4050
      %v4083 = vmul.f32 %v4051, %v4051
      %v4084 = vmul.f32 %v4052, %v4052
      %v4085 = vmul.f32 %v4053, %v4053
      %v4086 = vmul.f32 %v4054, %v4054
      %v4087 = vmul.f32 %v4055, %v4055
      %v4088 = vmul.f32 %v4056, %v4056
      %v4089 = vmul.f32 %v4057, %v4057
      %v4090 = vmul.f32 %v4058, %v4058
      %v4091 = vmul.f32 %v4059, %v4059
      %v4092 = vmul.f32 %v4060, %v4060
      %v4093 = vmul.f32 %v4061, %v4061
      %v4094 = vadd.f32 %v4062, %v4063
      %v4095 = vadd.f32 %v4094, %v4064
      %v4096 = vadd.f32 %v4095, %v4065
      %v4097 = vadd.f32 %v4096, %v4066
      %v4098 = vadd.f32 %v4097, %v4067
      %v4099 = vadd.f32 %v4098, %v4068
      %v4100 = vadd.f32 %v4099, %v4069
      %v4101 = vadd.f32 %v4100, %v4070
      %v4102 = vadd.f32 %v4101, %v4071
      %v4103 = vadd.f32 %v4102, %v4072
      %v4104 = vadd.f32 %v4103, %v4073
      %v4105 = vadd.f32 %v4104, %v4074
      %v4106 = vadd.f32 %v4105, %v4075
      %v4107 = vadd.f32 %v4106, %v4076
      %v4108 = vadd.f32 %v4107, %v4077
      %v4109 = vadd.f32 %v4108, %v4078
      %v4110 = vadd.f32 %v4109, %v4079
      %v4111 = vadd.f32 %v4110, %v4080
      %v4112 = vadd.f32 %v4111, %v4081
      %v4113 = vadd.f32 %v4112, %v4082
      %v4114 = vadd.f32 %v4113, %v4083
      %v4115 = vadd.f32 %v4114, %v4084
      %v4116 = vadd.f32 %v4115, %v4085
      %v4117 = vadd.f32 %v4116, %v4086
      %v4118 = vadd.f32 %v4117, %v4087
      %v4119 = vadd.f32 %v4118, %v4088
      %v4120 = vadd.f32 %v4119, %v4089
      %v4121 = vadd.f32 %v4120, %v4090
      %v4122 = vadd.f32 %v4121, %v4091
      %v4123 = vadd.f32 %v4122, %v4092
      %v4124 = vadd.f32 %v4123, %v4093
      %v4125 = vrot.slane %v4124, 4
      %v4126 = vadd.f32 %v4124, %v4125
      %v4127 = vrot.slane %v4126, 2
      %v4128 = vadd.f32 %v4126, %v4127
      %v4129 = vrot.slane %v4128, 1
      %v4130 = vadd.f32 %v4128, %v4129
      %v4131 = vmul.f32 %v4130, %v4028
      %v4132 = vadd.f32 %v4131, 1e-05
      %v4133 = vrsqrt.pop %v4132
      %v4134 = vmul.f32 %v4030, %v4133
      %v4135 = vmul.f32 %v4031, %v4133
      %v4136 = vmul.f32 %v4032, %v4133
      %v4137 = vmul.f32 %v4033, %v4133
      %v4138 = vmul.f32 %v4034, %v4133
      %v4139 = vmul.f32 %v4035, %v4133
      %v4140 = vmul.f32 %v4036, %v4133
      %v4141 = vmul.f32 %v4037, %v4133
      %v4142 = vmul.f32 %v4038, %v4133
      %v4143 = vmul.f32 %v4039, %v4133
      %v4144 = vmul.f32 %v4040, %v4133
      %v4145 = vmul.f32 %v4041, %v4133
      %v4146 = vmul.f32 %v4042, %v4133
      %v4147 = vmul.f32 %v4043, %v4133
      %v4148 = vmul.f32 %v4044, %v4133
      %v4149 = vmul.f32 %v4045, %v4133
      %v4150 = vmul.f32 %v4046, %v4133
      %v4151 = vmul.f32 %v4047, %v4133
      %v4152 = vmul.f32 %v4048, %v4133
      %v4153 = vmul.f32 %v4049, %v4133
      %v4154 = vmul.f32 %v4050, %v4133
      %v4155 = vmul.f32 %v4051, %v4133
      %v4156 = vmul.f32 %v4052, %v4133
      %v4157 = vmul.f32 %v4053, %v4133
      %v4158 = vmul.f32 %v4054, %v4133
      %v4159 = vmul.f32 %v4055, %v4133
      %v4160 = vmul.f32 %v4056, %v4133
      %v4161 = vmul.f32 %v4057, %v4133
      %v4162 = vmul.f32 %v4058, %v4133
      %v4163 = vmul.f32 %v4059, %v4133
      %v4164 = vmul.f32 %v4060, %v4133
      %v4165 = vmul.f32 %v4061, %v4133
      %v4166 = vmax.f32 %v4134, 0.0
      %v4167 = vmax.f32 %v4135, 0.0
      %v4168 = vmax.f32 %v4136, 0.0
      %v4169 = vmax.f32 %v4137, 0.0
      %v4170 = vmax.f32 %v4138, 0.0
      %v4171 = vmax.f32 %v4139, 0.0
      %v4172 = vmax.f32 %v4140, 0.0
      %v4173 = vmax.f32 %v4141, 0.0
      %v4174 = vmax.f32 %v4142, 0.0
      %v4175 = vmax.f32 %v4143, 0.0
      %v4176 = vmax.f32 %v4144, 0.0
      %v4177 = vmax.f32 %v4145, 0.0
      %v4178 = vmax.f32 %v4146, 0.0
      %v4179 = vmax.f32 %v4147, 0.0
      %v4180 = vmax.f32 %v4148, 0.0
      %v4181 = vmax.f32 %v4149, 0.0
      %v4182 = vmax.f32 %v4150, 0.0
      %v4183 = vmax.f32 %v4151, 0.0
      %v4184 = vmax.f32 %v4152, 0.0
      %v4185 = vmax.f32 %v4153, 0.0
      %v4186 = vmax.f32 %v4154, 0.0
      %v4187 = vmax.f32 %v4155, 0.0
      %v4188 = vmax.f32 %v4156, 0.0
      %v4189 = vmax.f32 %v4157, 0.0
      %v4190 = vmax.f32 %v4158, 0.0
      %v4191 = vmax.f32 %v4159, 0.0
      %v4192 = vmax.f32 %v4160, 0.0
      %v4193 = vmax.f32 %v4161, 0.0
      %v4194 = vmax.f32 %v4162, 0.0
      %v4195 = vmax.f32 %v4163, 0.0
      %v4196 = vmax.f32 %v4164, 0.0
      %v4197 = vmax.f32 %v4165, 0.0
      %v4198 = vpack.c.bf16 %v4167, %v4166
      %v4199 = vpack.c.bf16 %v4169, %v4168
      %v4200 = vpack.c.bf16 %v4171, %v4170
      %v4201 = vpack.c.bf16 %v4173, %v4172
      %v4202 = vpack.c.bf16 %v4175, %v4174
      %v4203 = vpack.c.bf16 %v4177, %v4176
      %v4204 = vpack.c.bf16 %v4179, %v4178
      %v4205 = vpack.c.bf16 %v4181, %v4180
      %v4206 = vpack.c.bf16 %v4183, %v4182
      %v4207 = vpack.c.bf16 %v4185, %v4184
      %v4208 = vpack.c.bf16 %v4187, %v4186
      %v4209 = vpack.c.bf16 %v4189, %v4188
      %v4210 = vpack.c.bf16 %v4191, %v4190
      %v4211 = vpack.c.bf16 %v4193, %v4192
      %v4212 = vpack.c.bf16 %v4195, %v4194
      %v4213 = vpack.c.bf16 %v4197, %v4196
      %v4230 = vunpack.c.l.b16 %v4198
      %v4231 = vunpack.c.h.b16 %v4198
      %v4232 = vunpack.c.l.b16 %v4199
      %v4233 = vunpack.c.h.b16 %v4199
      %v4234 = vunpack.c.l.b16 %v4200
      %v4235 = vunpack.c.h.b16 %v4200
      %v4236 = vunpack.c.l.b16 %v4201
      %v4237 = vunpack.c.h.b16 %v4201
      %v4238 = vunpack.c.l.b16 %v4202
      %v4239 = vunpack.c.h.b16 %v4202
      %v4240 = vunpack.c.l.b16 %v4203
      %v4241 = vunpack.c.h.b16 %v4203
      %v4242 = vunpack.c.l.b16 %v4204
      %v4243 = vunpack.c.h.b16 %v4204
      %v4244 = vunpack.c.l.b16 %v4205
      %v4245 = vunpack.c.h.b16 %v4205
      %v4246 = vunpack.c.l.b16 %v4206
      %v4247 = vunpack.c.h.b16 %v4206
      %v4248 = vunpack.c.l.b16 %v4207
      %v4249 = vunpack.c.h.b16 %v4207
      %v4250 = vunpack.c.l.b16 %v4208
      %v4251 = vunpack.c.h.b16 %v4208
      %v4252 = vunpack.c.l.b16 %v4209
      %v4253 = vunpack.c.h.b16 %v4209
      %v4254 = vunpack.c.l.b16 %v4210
      %v4255 = vunpack.c.h.b16 %v4210
      %v4256 = vunpack.c.l.b16 %v4211
      %v4257 = vunpack.c.h.b16 %v4211
      %v4258 = vunpack.c.l.b16 %v4212
      %v4259 = vunpack.c.h.b16 %v4212
      %v4260 = vunpack.c.l.b16 %v4213
      %v4261 = vunpack.c.h.b16 %v4213
      %v4262 = vpack.c.b16 %v4230, %v4230
      %v4263 = vpack.c.b16 %v4231, %v4231
      %v4264 = vpack.c.b16 %v4232, %v4232
      %v4265 = vpack.c.b16 %v4233, %v4233
      %v4266 = vpack.c.b16 %v4234, %v4234
      %v4267 = vpack.c.b16 %v4235, %v4235
      %v4268 = vpack.c.b16 %v4236, %v4236
      %v4269 = vpack.c.b16 %v4237, %v4237
      %v4270 = vpack.c.b16 %v4238, %v4238
      %v4271 = vpack.c.b16 %v4239, %v4239
      %v4272 = vpack.c.b16 %v4240, %v4240
      %v4273 = vpack.c.b16 %v4241, %v4241
      %v4274 = vpack.c.b16 %v4242, %v4242
      %v4275 = vpack.c.b16 %v4243, %v4243
      %v4276 = vpack.c.b16 %v4244, %v4244
      %v4277 = vpack.c.b16 %v4245, %v4245
      %v4278 = vpack.c.b16 %v4246, %v4246
      %v4279 = vpack.c.b16 %v4247, %v4247
      %v4280 = vpack.c.b16 %v4248, %v4248
      %v4281 = vpack.c.b16 %v4249, %v4249
      %v4282 = vpack.c.b16 %v4250, %v4250
      %v4283 = vpack.c.b16 %v4251, %v4251
      %v4284 = vpack.c.b16 %v4252, %v4252
      %v4285 = vpack.c.b16 %v4253, %v4253
      %v4286 = vpack.c.b16 %v4254, %v4254
      %v4287 = vpack.c.b16 %v4255, %v4255
      %v4288 = vpack.c.b16 %v4256, %v4256
      %v4289 = vpack.c.b16 %v4257, %v4257
      %v4290 = vpack.c.b16 %v4258, %v4258
      %v4291 = vpack.c.b16 %v4259, %v4259
      %v4292 = vpack.c.b16 %v4260, %v4260
      %v4293 = vpack.c.b16 %v4261, %v4261
      %4326 = vst [vmem:[%s180] sm:$0xf] %v4262
      %4327 = vst [vmem:[%s180 + $0x4] sm:$0xf] %v4263
      %4328 = vst [vmem:[%s180 + $0x8] sm:$0xf] %v4264
      %4329 = vst [vmem:[%s180 + $0xc] sm:$0xf] %v4265
      %4330 = vst [vmem:[%s180 + $0x10] sm:$0xf] %v4266
      %4331 = vst [vmem:[%s180 + $0x14] sm:$0xf] %v4267
      %4332 = vst [vmem:[%s180 + $0x18] sm:$0xf] %v4268
      %4333 = vst [vmem:[%s180 + $0x1c] sm:$0xf] %v4269
      %4334 = vst [vmem:[%s180 + $0x20] sm:$0xf] %v4270
      %4335 = vst [vmem:[%s180 + $0x24] sm:$0xf] %v4271
      %4336 = vst [vmem:[%s180 + $0x28] sm:$0xf] %v4272
      %4337 = vst [vmem:[%s180 + $0x2c] sm:$0xf] %v4273
      %4338 = vst [vmem:[%s180 + $0x30] sm:$0xf] %v4274
      %4339 = vst [vmem:[%s180 + $0x34] sm:$0xf] %v4275
      %4340 = vst [vmem:[%s180 + $0x38] sm:$0xf] %v4276
      %4341 = vst [vmem:[%s180 + $0x3c] sm:$0xf] %v4277
      %4342 = vst [vmem:[%s180 + $0x40] sm:$0xf] %v4278
      %4343 = vst [vmem:[%s180 + $0x44] sm:$0xf] %v4279
      %4344 = vst [vmem:[%s180 + $0x48] sm:$0xf] %v4280
      %4345 = vst [vmem:[%s180 + $0x4c] sm:$0xf] %v4281
      %4346 = vst [vmem:[%s180 + $0x50] sm:$0xf] %v4282
      %4347 = vst [vmem:[%s180 + $0x54] sm:$0xf] %v4283
      %4348 = vst [vmem:[%s180 + $0x58] sm:$0xf] %v4284
      %4349 = vst [vmem:[%s180 + $0x5c] sm:$0xf] %v4285
      %4350 = vst [vmem:[%s180 + $0x60] sm:$0xf] %v4286
      %4351 = vst [vmem:[%s180 + $0x64] sm:$0xf] %v4287
      %4352 = vst [vmem:[%s180 + $0x68] sm:$0xf] %v4288
      %4353 = vst [vmem:[%s180 + $0x6c] sm:$0xf] %v4289
      %4354 = vst [vmem:[%s180 + $0x70] sm:$0xf] %v4290
      %4355 = vst [vmem:[%s180 + $0x74] sm:$0xf] %v4291
      %4356 = vst [vmem:[%s180 + $0x78] sm:$0xf] %v4292
      %4357 = vst [vmem:[%s180 + $0x7c] sm:$0xf] %v4293
      %p4358 = scmp.lt.s32.totalorder %s17, 1
      %s4359 = scalar_select %p4358, %s17, 1
      %p4360 = scmp.lt.s32.totalorder %s18, 0
      %s4361 = scalar_select %p4360, %s18, 0
      %s4362 = smul.addr %s4359, 32
      %s4363 = sadd.s32 %s4361, %s4362
      %s4364 = smul.addr %s4363, 4
      %s4365 = scalar_lea.vmem %s2, %s4364
      // Predicated region
      $region29: #{bottleneck_v0_forward.4} parent=27 // pred_check
        %p4366 = pneg %p97
      $region30: #{bottleneck_v0_forward.4} parent=27 // pred_check_branch
        %4368 = sbr.rel (%p4366) target = $region32
      $region31: #{bottleneck_v0_forward.4} parent=27 // pred_region
        _
      $region32: #{bottleneck_v0_forward.4} parent=27 // pred_fallthru
        _
    $region28: #{bottleneck_v0_forward.4} parent=5 // pred_fallthru
      _
    %p4369 = scmp.le.s32.totalorder 2, %s8
    // Predicated region
    $region33: #{bottleneck_v0_forward.4} parent=5 // pred_check
      %p4370 = pneg %p4369
    $region34: #{bottleneck_v0_forward.4} parent=5 // pred_check_branch
      %4372 = sbr.rel (%p4370) target = $region36
    $region35: #{bottleneck_v0_forward.4} parent=5 // pred_region
      %s4373 = ssub.s32 %s8, 2
      // Predicated region
      $region37: #{bottleneck_v0_forward.4} parent=35 // pred_check
        %p4374 = pneg %p103
      $region38: #{bottleneck_v0_forward.4} parent=35 // pred_check_branch
        %4376 = sbr.rel (%p4374) target = $region40
      $region39: #{bottleneck_v0_forward.4} parent=35 // pred_region
        %p4377 = scmp.lt.s32.totalorder %s19, 1
        %s4378 = scalar_select %p4377, %s19, 1
        %p4379 = scmp.lt.s32.totalorder %s20, 0
        %s4380 = scalar_select %p4379, %s20, 0
        %s4381 = smul.addr %s4378, 32
        %s4382 = sadd.s32 %s4380, %s4381
        %s4383 = smul.addr %s4382, 4
        %s4384 = scalar_lea.vmem %s2, %s4383
      $region40: #{bottleneck_v0_forward.4} parent=35 // pred_fallthru
        _
    $region36: #{bottleneck_v0_forward.4} parent=5 // pred_fallthru
      _
  $region6: #{bottleneck_v0_forward.4} parent=0 // loop_footer
    %s12 = sadd.s32 1, %s8
  $region7: #{bottleneck_v0_forward.4} parent=0 // loop_footer_branch
    %7 = sbr.rel target = $region3
  $region8: #{bottleneck_v0_forward.4} parent=0 // loop_exit
    _

</llo_original>
